<compile_context>
chip_gen: v5e
topology: v5e:2x2
jax: 0.10.0
libtpu: 0.0.40
codegen_flags: <defaults>
</compile_context>

<pallas_src>
import functools

import jax
import jax.numpy as jnp
from jax import lax
from jax.experimental import pallas as pl
from jax.experimental.pallas import tpu as pltpu

_BN_EPS = 1e-5
_COMPUTE_DTYPE = jnp.bfloat16      # MXU-native on v5e/v6e/v7x


def _round_up(x, m):
    return (x + m - 1) // m * m


def _nbytes(shape, dtype):
    n = 1
    for d in shape:
        n *= int(d)
    return n * jnp.dtype(dtype).itemsize


# --------------------------------------------------------------------------
# Pallas kernel: 3x3 conv as an im2col GEMM (BN folded into weights/bias)
#                (+ fused shortcut: identity residual OR 1x1-conv branch)
#                (+ ReLU)
# --------------------------------------------------------------------------
def _conv3x3_gemm_kernel(x_ref, w_ref, b_ref, *rest, stride, sc_stride, TH,
                         Wout, Cp, relu, shortcut):
    """One (batch n, row-tile r, Co-tile c) grid step.

    x_ref       : (1, Hp, Wp, Cp)       padded bf16 input, resident across r,c
    w_ref       : (9*Cp, co_tile)       bf16 BN-folded im2col weight slab
    b_ref       : (1, co_tile)          f32 folded BN bias
    rest:
      shortcut == "conv"     -> (xs_ref, ws_ref, bs_ref, o_ref, patches_ref)
      shortcut == "identity" -> (res_ref, o_ref, patches_ref)
      shortcut == "none"     -> (o_ref, patches_ref)
    o_ref       : (1, TH*Wout, co_tile) lane-dense flat output tile
    patches_ref : (TH*Wout, 9*Cp)       VMEM im2col scratch (persists across c)
    """
    if shortcut == "conv":
        xs_ref, ws_ref, bs_ref, o_ref, patches_ref = rest
    elif shortcut == "identity":
        res_ref, o_ref, patches_ref = rest
    else:
        o_ref, patches_ref = rest

    r = pl.program_id(1)
    c = pl.program_id(2)
    M = TH * Wout

    hi_end = (TH - 1) * stride + 1        # input rows covered per tap row
    wi_end = (Wout - 1) * stride + 1      # input cols covered per tap col

    # ---- im2col: build the (M, 9*Cp) patch matrix once per (n, r); it is
    # reused for every Co tile because the Co axis is innermost.
    @pl.when(c == 0)
    def _build_patches():
        row0 = pl.multiple_of(r * (TH * stride), TH * stride)
        for kh in range(3):
            # Aligned full-width read of the rows this tap row needs; the
            # +1/+2 column offsets are taken as value slices, and the window
            # is streamed straight into the VMEM patch scratch (lane-aligned
            # store: Cp is a multiple of 128).
            rows = x_ref[0, pl.ds(row0 + kh, hi_end)]        # (hi_end, Wp, Cp)
            for kw in range(3):
                win = rows[0:hi_end:stride, kw:kw + wi_end:stride, :]
                tap = kh * 3 + kw
                patches_ref[:, tap * Cp:(tap + 1) * Cp] = win.reshape(M, Cp)

    # ---- single MXU contraction, K = 9*Cp, f32 accumulation
    out = jnp.dot(patches_ref[...], w_ref[...],
                  preferred_element_type=jnp.float32)        # (M, co_tile)
    out = out + b_ref[0]                                     # folded BN bias

    if shortcut == "conv":
        # Fused 1x1 strided shortcut conv on the same output tile.
        xs = xs_ref[0]                                       # (TH*s, Ws, Cis)
        cis = xs.shape[-1]
        xs = xs[0:(TH - 1) * sc_stride + 1:sc_stride,
                0:(Wout - 1) * sc_stride + 1:sc_stride, :]   # (TH, Wout, Cis)
        out = out + (jnp.dot(xs.reshape(M, cis), ws_ref[...],
                             preferred_element_type=jnp.float32)
                     + bs_ref[0])
    elif shortcut == "identity":
        out = out + res_ref[0]          # residual added in f32 (like PyTorch)

    if relu:
        out = jnp.maximum(out, 0.0)
    o_ref[0] = out.astype(o_ref.dtype)


# --------------------------------------------------------------------------
# Tiling helpers
# --------------------------------------------------------------------------
def _pick_co_tile(cop):
    # 256 matches the v6e/v7x MXU; Cop is always a 128 multiple.
    return 256 if cop % 256 == 0 else 128


def _pick_row_tile(hout, wout, co_tile, cap_bytes=128 * 1024):
    """Largest divisor of Hout whose (TH*Wout, co_tile) f32 result tile fits
    the cap, with TH*Wout a multiple of 8 (or the full extent) so the flat
    output block satisfies the (8, 128) layout rule."""
    def legal(th):
        return (th * wout) % 8 == 0 or th == hout

    best = None
    for th in range(1, hout + 1):
        if hout % th:
            continue
        if not legal(th):
            continue
        if th * wout * co_tile * 4 > cap_bytes:
            continue
        best = th
    if best is not None:
        return best
    for th in range(1, hout + 1):          # fallback: smallest legal tile
        if hout % th == 0 and legal(th):
            return th
    return hout


def _vmem_limit_bytes(block_bytes, scratch_bytes):
    need = 2 * block_bytes + scratch_bytes + (4 << 20)
    # >= 32 MiB (v5e scoped default is only 16 MiB); <= 48 MiB so v7x's
    # 64 MiB physical VMEM keeps headroom for Mosaic-internal scratch.
    return int(min(max(need, 32 << 20), 48 << 20))


# --------------------------------------------------------------------------
# Wrapper around pallas_call
# --------------------------------------------------------------------------
def conv3x3_block(x, w, bias, *, stride=1, relu=True, shortcut=None,
                  out_dtype=None):
    """Fused 3x3 conv (pad=1, BN folded into w/bias) (+ shortcut) (+ ReLU).

    x        : (N, H, W, Ci) NHWC activation
    w        : (3, 3, Ci, Co) HWIO BN-folded weights
    bias     : (Co,) folded BN bias
    shortcut : None
               ("identity", residual_nhwc)                      f32 residual
               ("conv", x_orig_nhwc, ws_io, bias_s, sc_stride)  fused 1x1 conv
    Returns (N, Hout, Wout, Co).
    """
    N, H, W, Ci = x.shape
    Co = w.shape[-1]
    Hout = (H - 1) // stride + 1
    Wout = (W - 1) // stride + 1
    out_dtype = out_dtype if out_dtype is not None else x.dtype

    # Channels padded to 128-lane multiples: keeps every in-kernel slice and
    # store lane-aligned and the output store lane-dense even for small Co.
    Cp = _round_up(Ci, 128)
    Cop = _round_up(Co, 128)

    # TODO(synk): this jnp.pad is one HBM round trip of the activation per
    # conv; direct write into a pre-padded buffer would remove it.
    xp = jnp.pad(x.astype(_COMPUTE_DTYPE),
                 ((0, 0), (1, 1), (1, 1), (0, Cp - Ci)))
    Hp, Wp = H + 2, W + 2

    # BN-folded weights as a (9*Cp, Cop) GEMM slab, tap-major / channel-minor,
    # matching the im2col patch layout built in the kernel.
    wp = jnp.pad(w.astype(_COMPUTE_DTYPE),
                 ((0, 0), (0, 0), (0, Cp - Ci), (0, Cop - Co)))
    wp = wp.reshape(9 * Cp, Cop)
    bp = jnp.pad(bias.astype(jnp.float32), (0, Cop - Co)).reshape(1, Cop)

    co_tile = _pick_co_tile(Cop)
    TH = _pick_row_tile(Hout, Wout, co_tile)
    M = TH * Wout
    grid = (N, Hout // TH, Cop // co_tile)   # Co tiles innermost: the im2col
                                             # scratch built at c==0 is reused,
                                             # and x / weights stay resident.

    in_specs = [
        pl.BlockSpec((1, Hp, Wp, Cp), lambda n, r, c: (n, 0, 0, 0)),
        pl.BlockSpec((9 * Cp, co_tile), lambda n, r, c: (0, c)),
        pl.BlockSpec((1, co_tile), lambda n, r, c: (0, c)),
    ]
    args = [xp, wp, bp]
    blocks = [((1, Hp, Wp, Cp), _COMPUTE_DTYPE),
              ((9 * Cp, co_tile), _COMPUTE_DTYPE),
              ((1, co_tile), jnp.float32)]
    flops = 2 * N * Hout * Wout * Cop * (9 * Cp)

    sc_mode, sc_stride = "none", 1
    if shortcut is not None and shortcut[0] == "identity":
        sc_mode = "identity"
        res = shortcut[1]
        # Residual kept in f32 (PyTorch adds in fp32); channel-padded + flat.
        res = jnp.pad(res.astype(jnp.float32),
                      ((0, 0), (0, 0), (0, 0), (0, Cop - res.shape[-1])))
        res = res.reshape(N, Hout * Wout, Cop)
        in_specs.append(pl.BlockSpec((1, M, co_tile),
                                     lambda n, r, c: (n, r, c)))
        args.append(res)
        blocks.append(((1, M, co_tile), jnp.float32))
    elif shortcut is not None:
        sc_mode = "conv"
        _, xs, ws, bs, sc_stride = shortcut
        Cis = xs.shape[-1]
        Cisp = _round_up(Cis, 128)
        xs = jnp.pad(xs.astype(_COMPUTE_DTYPE),
                     ((0, 0), (0, 0), (0, 0), (0, Cisp - Cis)))
        wsp = jnp.pad(ws.astype(_COMPUTE_DTYPE),
                      ((0, Cisp - Cis), (0, Cop - Co)))
        bsp = jnp.pad(bs.astype(jnp.float32), (0, Cop - Co)).reshape(1, Cop)
        Ws = xs.shape[2]
        in_specs += [
            pl.BlockSpec((1, TH * sc_stride, Ws, Cisp),
                         lambda n, r, c: (n, r, 0, 0)),
            pl.BlockSpec((Cisp, co_tile), lambda n, r, c: (0, c)),
            pl.BlockSpec((1, co_tile), lambda n, r, c: (0, c)),
        ]
        args += [xs, wsp, bsp]
        blocks += [((1, TH * sc_stride, Ws, Cisp), _COMPUTE_DTYPE),
                   ((Cisp, co_tile), _COMPUTE_DTYPE),
                   ((1, co_tile), jnp.float32)]
        flops += 2 * N * Hout * Wout * Cop * Cisp

    blocks.append(((1, M, co_tile), out_dtype))
    block_bytes = sum(_nbytes(s, d) for s, d in blocks)
    scratch_bytes = _nbytes((M, 9 * Cp), _COMPUTE_DTYPE)
    bytes_accessed = sum(int(a.size) * jnp.dtype(a.dtype).itemsize
                         for a in args)
    bytes_accessed += _nbytes((N, Hout * Wout, Cop), out_dtype)

    kernel = functools.partial(_conv3x3_gemm_kernel, stride=stride,
                               sc_stride=sc_stride, TH=TH, Wout=Wout, Cp=Cp,
                               relu=relu, shortcut=sc_mode)

    out_flat = pl.pallas_call(
        kernel,
        out_shape=jax.ShapeDtypeStruct((N, Hout * Wout, Cop), out_dtype),
        grid=grid,
        in_specs=in_specs,
        out_specs=pl.BlockSpec((1, M, co_tile), lambda n, r, c: (n, r, c)),
        scratch_shapes=[pltpu.VMEM((M, 9 * Cp), _COMPUTE_DTYPE)],
        compiler_params=pltpu.CompilerParams(
            # Row/Co axes stay sequential: the Co axis reuses the im2col
            # scratch built at c == 0, and megacore-sharding the row axis
            # (v7x) would re-DMA the resident image per core.
            dimension_semantics=("parallel", "arbitrary", "arbitrary"),
            vmem_limit_bytes=_vmem_limit_bytes(block_bytes, scratch_bytes)),
        cost_estimate=pl.CostEstimate(flops=int(flops), transcendentals=0,
                                      bytes_accessed=int(bytes_accessed)),
    )(*args)

    out = out_flat.reshape(N, Hout, Wout, Cop)
    return out[..., :Co] if Cop != Co else out


# --------------------------------------------------------------------------
# BN folding + ResBlock forward
# --------------------------------------------------------------------------
def _bn_scale_bias(gamma, beta, mean, var):
    scale = gamma / jnp.sqrt(var + _BN_EPS)
    return scale, beta - mean * scale


def fold_bn_into_conv3x3(w_hwio, gamma, beta, mean, var):
    scale, bias = _bn_scale_bias(gamma, beta, mean, var)
    return w_hwio * scale[None, None, None, :], bias


def fold_bn_into_conv1x1(w_io, gamma, beta, mean, var):
    scale, bias = _bn_scale_bias(gamma, beta, mean, var)
    return w_io * scale[None, :], bias


def res_block_forward(x_nchw, params, stride=1):
    """ResBlock forward (eval-mode BN), NCHW in/out like the PyTorch module."""
    x = jnp.transpose(x_nchw, (0, 2, 3, 1))                 # NCHW -> NHWC
    in_dtype = x.dtype

    w1, b1 = fold_bn_into_conv3x3(params["w1"], *params["bn1"])
    w2, b2 = fold_bn_into_conv3x3(params["w2"], *params["bn2"])

    # conv1 + bn1 + relu (one fused kernel); bf16 intermediate.
    out = conv3x3_block(x, w1, b1, stride=stride, relu=True,
                        out_dtype=_COMPUTE_DTYPE)

    # conv2 + bn2 + shortcut add + relu, all fused in a single kernel.
    if "ws" in params:
        ws, bs = fold_bn_into_conv1x1(params["ws"], *params["bns"])
        shortcut = ("conv", x, ws, bs, stride)
    else:
        shortcut = ("identity", x)
    out = conv3x3_block(out, w2, b2, stride=1, relu=True, shortcut=shortcut,
                        out_dtype=in_dtype)
    return jnp.transpose(out, (0, 3, 1, 2))                 # NHWC -> NCHW


# --------------------------------------------------------------------------
# Parameter construction + pure-JAX reference
# --------------------------------------------------------------------------
def init_resblock_params(key, in_planes, planes, stride=1):
    ks = list(jax.random.split(key, 8))
    p = {
        "w1": 0.1 * jax.random.normal(ks[0], (3, 3, in_planes, planes),
                                      jnp.float32),
        "bn1": (1.0 + 0.1 * jax.random.normal(ks[1], (planes,), jnp.float32),
                0.1 * jax.random.normal(ks[2], (planes,), jnp.float32),
                0.1 * jax.random.normal(ks[3], (planes,), jnp.float32),
                0.5 + jax.random.uniform(ks[4], (planes,), jnp.float32)),
        "w2": 0.1 * jax.random.normal(ks[5], (3, 3, planes, planes),
                                      jnp.float32),
        "bn2": (jnp.ones((planes,), jnp.float32),
                jnp.zeros((planes,), jnp.float32),
                0.1 * jax.random.normal(ks[6], (planes,), jnp.float32),
                jnp.ones((planes,), jnp.float32)),
    }
    if stride != 1 or in_planes != planes:
        p["ws"] = 0.1 * jax.random.normal(ks[7], (in_planes, planes),
                                          jnp.float32)
        p["bns"] = (jnp.ones((planes,), jnp.float32),
                    jnp.zeros((planes,), jnp.float32),
                    jnp.zeros((planes,), jnp.float32),
                    jnp.ones((planes,), jnp.float32))
    return p


def ref_res_block(x_nchw, params, stride=1):
    x = jnp.transpose(x_nchw, (0, 2, 3, 1))

    def conv(x, w, s, pad):
        return lax.conv_general_dilated(
            x, w, (s, s), [(pad, pad), (pad, pad)],
            dimension_numbers=("NHWC", "HWIO", "NHWC"))

    def bn(x, g, b, m, v):
        return (x - m) / jnp.sqrt(v + _BN_EPS) * g + b

    out = jax.nn.relu(bn(conv(x, params["w1"], stride, 1), *params["bn1"]))
    out = bn(conv(out, params["w2"], 1, 1), *params["bn2"])
    if "ws" in params:
        ws = params["ws"].reshape(1, 1, *params["ws"].shape)
        sc = bn(conv(x, ws, stride, 0), *params["bns"])
    else:
        sc = x
    out = jax.nn.relu(out + sc)
    return jnp.transpose(out, (0, 3, 1, 2))


# --------------------------------------------------------------------------
if __name__ == "__main__":
    key = jax.random.PRNGKey(0)

    configs = [
        # (N, in_planes, planes, H, W, stride)
        (2, 4, 8, 16, 16, 1),    # projection (1x1 conv + BN) shortcut
        (2, 8, 8, 16, 16, 1),    # identity shortcut
    ]
    for i, (N, cin, cout, H, W, stride) in enumerate(configs):
        k_x, k_p, key = jax.random.split(key, 3)
        x = jax.random.normal(k_x, (N, cin, H, W), jnp.float32)   # NCHW
        params = init_resblock_params(k_p, cin, cout, stride)

        out = jax.block_until_ready(res_block_forward(x, params,
                                                      stride=stride))
        ref = jax.block_until_ready(ref_res_block(x, params, stride=stride))
        assert out.shape == ref.shape == (N, cout, H // stride, W // stride)
        err = float(jnp.max(jnp.abs(out - ref)))
        # bf16 matmul inputs with f32 accumulation -> tolerance ~1e-2.
        assert jnp.allclose(out, ref, atol=3e-2, rtol=3e-2), (i, err)

    print("KERNEL_OK")
</pallas_src>

<mosaic_0001>
module attributes {stable_mosaic.version = 11 : i64} {
  func.func @_conv3x3_gemm_kernel(%arg0: i32, %arg1: i32, %arg2: i32, %arg3: memref<1x18x18x128xbf16, #tpu.memory_space<vmem>>, %arg4: memref<1152x128xbf16, #tpu.memory_space<vmem>>, %arg5: memref<1x128xf32, #tpu.memory_space<vmem>>, %arg6: memref<1x256x128xbf16, #tpu.memory_space<vmem>>, %arg7: memref<256x1152xbf16, #tpu.memory_space<vmem>>) attributes {dimension_semantics = [#tpu.dimension_semantics<parallel>, #tpu.dimension_semantics<arbitrary>, #tpu.dimension_semantics<arbitrary>], iteration_bounds = array<i64: 2, 1, 1>, scalar_prefetch = 0 : i64, scratch_operands = 1 : i64, tpu.core_type = #tpu.core_type<tc>, window_params = [{transform_indices = @transform_0, window_bounds = array<i64: 1, 18, 18, 128>}, {transform_indices = @transform_1, window_bounds = array<i64: 1152, 128>}, {transform_indices = @transform_2, window_bounds = array<i64: 1, 128>}, {transform_indices = @transform_3, window_bounds = array<i64: 1, 256, 128>}]} {
    %c0_i32 = arith.constant 0 : i32
    %0 = arith.cmpi eq, %arg2, %c0_i32 : i32
    %1 = arith.extui %0 : i1 to i32
    %c0_i32_0 = arith.constant 0 : i32
    %2 = arith.cmpi ne, %1, %c0_i32_0 : i32
    scf.if %2 {
      %c16_i32 = arith.constant 16 : i32
      %17 = arith.muli %arg1, %c16_i32 : i32
      %18 = tpu.assume_multiple %17, 16 : i32
      %c0_i32_10 = arith.constant 0 : i32
      %19 = arith.addi %18, %c0_i32_10 : i32
      %c0_11 = arith.constant 0 : index
      %20 = arith.index_cast %19 : i32 to index
      %c0_12 = arith.constant 0 : index
      %c0_13 = arith.constant 0 : index
      %21 = vector.load %arg3[%c0_11, %20, %c0_12, %c0_13] : memref<1x18x18x128xbf16, #tpu.memory_space<vmem>>, vector<1x16x18x128xbf16>
      %22 = vector.shape_cast %21 : vector<1x16x18x128xbf16> to vector<16x18x128xbf16>
      %23 = vector.extract_strided_slice %22 {offsets = [0, 0, 0], sizes = [16, 16, 128], strides = [1, 1, 1]} : vector<16x18x128xbf16> to vector<16x16x128xbf16>
      %24 = vector.shape_cast %23 : vector<16x16x128xbf16> to vector<256x128xbf16>
      %c0_14 = arith.constant 0 : index
      %c0_15 = arith.constant 0 : index
      %25 = vector.load %arg7[%c0_14, %c0_15] : memref<256x1152xbf16, #tpu.memory_space<vmem>>, vector<256x128xbf16>
      tpu.vector_store %arg7[%c0_14, %c0_15], %24 {strides = array<i32>} : memref<256x1152xbf16, #tpu.memory_space<vmem>>, vector<256x128xbf16>,
      %26 = vector.extract_strided_slice %22 {offsets = [0, 1, 0], sizes = [16, 16, 128], strides = [1, 1, 1]} : vector<16x18x128xbf16> to vector<16x16x128xbf16>
      %27 = vector.shape_cast %26 : vector<16x16x128xbf16> to vector<256x128xbf16>
      %c0_16 = arith.constant 0 : index
      %c128 = arith.constant 128 : index
      %28 = vector.load %arg7[%c0_16, %c128] : memref<256x1152xbf16, #tpu.memory_space<vmem>>, vector<256x128xbf16>
      tpu.vector_store %arg7[%c0_16, %c128], %27 {strides = array<i32>} : memref<256x1152xbf16, #tpu.memory_space<vmem>>, vector<256x128xbf16>,
      %29 = vector.extract_strided_slice %22 {offsets = [0, 2, 0], sizes = [16, 16, 128], strides = [1, 1, 1]} : vector<16x18x128xbf16> to vector<16x16x128xbf16>
      %30 = vector.shape_cast %29 : vector<16x16x128xbf16> to vector<256x128xbf16>
      %c0_17 = arith.constant 0 : index
      %c256 = arith.constant 256 : index
      %31 = vector.load %arg7[%c0_17, %c256] : memref<256x1152xbf16, #tpu.memory_space<vmem>>, vector<256x128xbf16>
      tpu.vector_store %arg7[%c0_17, %c256], %30 {strides = array<i32>} : memref<256x1152xbf16, #tpu.memory_space<vmem>>, vector<256x128xbf16>,
      %c1_i32 = arith.constant 1 : i32
      %32 = arith.addi %18, %c1_i32 : i32
      %c0_18 = arith.constant 0 : index
      %33 = arith.index_cast %32 : i32 to index
      %c0_19 = arith.constant 0 : index
      %c0_20 = arith.constant 0 : index
      %34 = vector.load %arg3[%c0_18, %33, %c0_19, %c0_20] : memref<1x18x18x128xbf16, #tpu.memory_space<vmem>>, vector<1x16x18x128xbf16>
      %35 = vector.shape_cast %34 : vector<1x16x18x128xbf16> to vector<16x18x128xbf16>
      %36 = vector.extract_strided_slice %35 {offsets = [0, 0, 0], sizes = [16, 16, 128], strides = [1, 1, 1]} : vector<16x18x128xbf16> to vector<16x16x128xbf16>
      %37 = vector.shape_cast %36 : vector<16x16x128xbf16> to vector<256x128xbf16>
      %c0_21 = arith.constant 0 : index
      %c384 = arith.constant 384 : index
      %38 = vector.load %arg7[%c0_21, %c384] : memref<256x1152xbf16, #tpu.memory_space<vmem>>, vector<256x128xbf16>
      tpu.vector_store %arg7[%c0_21, %c384], %37 {strides = array<i32>} : memref<256x1152xbf16, #tpu.memory_space<vmem>>, vector<256x128xbf16>,
      %39 = vector.extract_strided_slice %35 {offsets = [0, 1, 0], sizes = [16, 16, 128], strides = [1, 1, 1]} : vector<16x18x128xbf16> to vector<16x16x128xbf16>
      %40 = vector.shape_cast %39 : vector<16x16x128xbf16> to vector<256x128xbf16>
      %c0_22 = arith.constant 0 : index
      %c512 = arith.constant 512 : index
      %41 = vector.load %arg7[%c0_22, %c512] : memref<256x1152xbf16, #tpu.memory_space<vmem>>, vector<256x128xbf16>
      tpu.vector_store %arg7[%c0_22, %c512], %40 {strides = array<i32>} : memref<256x1152xbf16, #tpu.memory_space<vmem>>, vector<256x128xbf16>,
      %42 = vector.extract_strided_slice %35 {offsets = [0, 2, 0], sizes = [16, 16, 128], strides = [1, 1, 1]} : vector<16x18x128xbf16> to vector<16x16x128xbf16>
      %43 = vector.shape_cast %42 : vector<16x16x128xbf16> to vector<256x128xbf16>
      %c0_23 = arith.constant 0 : index
      %c640 = arith.constant 640 : index
      %44 = vector.load %arg7[%c0_23, %c640] : memref<256x1152xbf16, #tpu.memory_space<vmem>>, vector<256x128xbf16>
      tpu.vector_store %arg7[%c0_23, %c640], %43 {strides = array<i32>} : memref<256x1152xbf16, #tpu.memory_space<vmem>>, vector<256x128xbf16>,
      %c2_i32 = arith.constant 2 : i32
      %45 = arith.addi %18, %c2_i32 : i32
      %c0_24 = arith.constant 0 : index
      %46 = arith.index_cast %45 : i32 to index
      %c0_25 = arith.constant 0 : index
      %c0_26 = arith.constant 0 : index
      %47 = vector.load %arg3[%c0_24, %46, %c0_25, %c0_26] : memref<1x18x18x128xbf16, #tpu.memory_space<vmem>>, vector<1x16x18x128xbf16>
      %48 = vector.shape_cast %47 : vector<1x16x18x128xbf16> to vector<16x18x128xbf16>
      %49 = vector.extract_strided_slice %48 {offsets = [0, 0, 0], sizes = [16, 16, 128], strides = [1, 1, 1]} : vector<16x18x128xbf16> to vector<16x16x128xbf16>
      %50 = vector.shape_cast %49 : vector<16x16x128xbf16> to vector<256x128xbf16>
      %c0_27 = arith.constant 0 : index
      %c768 = arith.constant 768 : index
      %51 = vector.load %arg7[%c0_27, %c768] : memref<256x1152xbf16, #tpu.memory_space<vmem>>, vector<256x128xbf16>
      tpu.vector_store %arg7[%c0_27, %c768], %50 {strides = array<i32>} : memref<256x1152xbf16, #tpu.memory_space<vmem>>, vector<256x128xbf16>,
      %52 = vector.extract_strided_slice %48 {offsets = [0, 1, 0], sizes = [16, 16, 128], strides = [1, 1, 1]} : vector<16x18x128xbf16> to vector<16x16x128xbf16>
      %53 = vector.shape_cast %52 : vector<16x16x128xbf16> to vector<256x128xbf16>
      %c0_28 = arith.constant 0 : index
      %c896 = arith.constant 896 : index
      %54 = vector.load %arg7[%c0_28, %c896] : memref<256x1152xbf16, #tpu.memory_space<vmem>>, vector<256x128xbf16>
      tpu.vector_store %arg7[%c0_28, %c896], %53 {strides = array<i32>} : memref<256x1152xbf16, #tpu.memory_space<vmem>>, vector<256x128xbf16>,
      %55 = vector.extract_strided_slice %48 {offsets = [0, 2, 0], sizes = [16, 16, 128], strides = [1, 1, 1]} : vector<16x18x128xbf16> to vector<16x16x128xbf16>
      %56 = vector.shape_cast %55 : vector<16x16x128xbf16> to vector<256x128xbf16>
      %c0_29 = arith.constant 0 : index
      %c1024 = arith.constant 1024 : index
      %57 = vector.load %arg7[%c0_29, %c1024] : memref<256x1152xbf16, #tpu.memory_space<vmem>>, vector<256x128xbf16>
      tpu.vector_store %arg7[%c0_29, %c1024], %56 {strides = array<i32>} : memref<256x1152xbf16, #tpu.memory_space<vmem>>, vector<256x128xbf16>,
    } else {
    }
    %c0 = arith.constant 0 : index
    %c0_1 = arith.constant 0 : index
    %3 = vector.load %arg7[%c0, %c0_1] : memref<256x1152xbf16, #tpu.memory_space<vmem>>, vector<256x1152xbf16>
    %c0_2 = arith.constant 0 : index
    %c0_3 = arith.constant 0 : index
    %4 = vector.load %arg4[%c0_2, %c0_3] : memref<1152x128xbf16, #tpu.memory_space<vmem>>, vector<1152x128xbf16>
    %cst = arith.constant dense<0.000000e+00> : vector<256x128xf32>
    %5 = tpu.matmul %3, %4, %cst {dimension_numbers = #tpu.dot_dimension_numbers<[1], [0], [0], [1], [0, 0, 1, 1], [], []>} : vector<256x1152xbf16>, vector<1152x128xbf16>, vector<256x128xf32> -> vector<256x128xf32>
    %c0_4 = arith.constant 0 : index
    %c0_5 = arith.constant 0 : index
    %6 = vector.load %arg5[%c0_4, %c0_5] : memref<1x128xf32, #tpu.memory_space<vmem>>, vector<1x128xf32>
    %7 = vector.shape_cast %6 : vector<1x128xf32> to vector<128xf32>
    %8 = vector.shape_cast %7 : vector<128xf32> to vector<1x128xf32>
    %9 = vector.broadcast %8 : vector<1x128xf32> to vector<256x128xf32>
    %10 = arith.addf %5, %9 : vector<256x128xf32>
    %cst_6 = arith.constant 0.000000e+00 : f32
    %11 = vector.broadcast %cst_6 : f32 to vector<256x128xf32>
    %12 = arith.maximumf %10, %11 : vector<256x128xf32>
    %13 = arith.truncf %12 : vector<256x128xf32> to vector<256x128xbf16>
    %c0_7 = arith.constant 0 : index
    %c0_8 = arith.constant 0 : index
    %c0_9 = arith.constant 0 : index
    %14 = vector.load %arg6[%c0_7, %c0_8, %c0_9] : memref<1x256x128xbf16, #tpu.memory_space<vmem>>, vector<1x256x128xbf16>
    %15 = vector.shape_cast %14 : vector<1x256x128xbf16> to vector<256x128xbf16>
    %16 = vector.shape_cast %13 : vector<256x128xbf16> to vector<1x256x128xbf16>
    tpu.vector_store %arg6[%c0_7, %c0_8, %c0_9], %16 {strides = array<i32>} : memref<1x256x128xbf16, #tpu.memory_space<vmem>>, vector<1x256x128xbf16>,
    return
  }
  func.func @transform_0(%arg0: i32, %arg1: i32, %arg2: i32) -> (i32, i32, i32, i32) {
    %c0_i32 = arith.constant 0 : i32
    %c0_i32_0 = arith.constant 0 : i32
    %c0_i32_1 = arith.constant 0 : i32
    %c0_i32_2 = arith.constant 0 : i32
    return %arg0, %c0_i32, %c0_i32_0, %c0_i32_1 : i32, i32, i32, i32
  }
  func.func @transform_1(%arg0: i32, %arg1: i32, %arg2: i32) -> (i32, i32) {
    %c0_i32 = arith.constant 0 : i32
    %c0_i32_0 = arith.constant 0 : i32
    return %c0_i32, %arg2 : i32, i32
  }
  func.func @transform_2(%arg0: i32, %arg1: i32, %arg2: i32) -> (i32, i32) {
    %c0_i32 = arith.constant 0 : i32
    %c0_i32_0 = arith.constant 0 : i32
    return %c0_i32, %arg2 : i32, i32
  }
  func.func @transform_3(%arg0: i32, %arg1: i32, %arg2: i32) -> (i32, i32, i32) {
    %c0_i32 = arith.constant 0 : i32
    return %arg0, %arg1, %arg2 : i32, i32, i32
  }
}

</mosaic_0001>

<llo_original>
// kernel: tpu_custom_call.1
$region0: #{tpu_custom_call.1}
  #allocation0 [shape = 'u32[]', space=smem, size = 0x4, offset = 0x4, fixed_abs, tag = 'smem constant byte address 0x4 - core index']
  #allocation1 [shape = 'u32[72,128]{1,0:T(1,128)}', space=vmem, size = 0x9000, scoped, tag = 'internal scratch']
  #allocation2 [shape = 'bf16[256,1152]{1,0:T(8,128)(2,1)}', space=vmem, size = 0x90000, scoped, tag = 'scratch operand']
  %s0 = inlined_call_operand.vmem [shape: bf16[2,18,18,128], index: 0, kind: input, shape index: {}]
  %s1 = inlined_call_operand.vmem [shape: bf16[1152,128], index: 1, kind: input, shape index: {}]
  %s2 = inlined_call_operand.vmem [shape: f32[1,128], index: 2, kind: input, shape index: {}]
  %s3 = inlined_call_operand.hbm [shape: bf16[2,256,128], index: 3, kind: output, shape index: {}]
  %s4 = sld [smem:[#allocation0]]
  $region49: #{tpu_custom_call.1} parent=0
    _
  %s6 = ssub.s32 1, %s4
  %s7 = scalar_select 0, %s6, %s4
  $region1: #{tpu_custom_call.1} parent=0
    #allocation3 [shape = 'u8[131072]{0}', space=vmem, size = 0x20000, scoped, tag = 'output window, operand 0']
    #allocation4 [shape = 's32[2]{0}', space=sflag, size = 0x8, scoped, tag = 'scoped memory for tpu_custom_call.1']
    %8 = vsyncpa [#allocation4], 0
    %s9 = scalar_lea.sflag [#allocation4], 1
    %10 = vsyncpa %s9, 0
    loop: start=0, step=1, limit=4
    $region2: #{tpu_custom_call.1} parent=1 // loop_pre_header
      _
    $region3: #{tpu_custom_call.1} parent=1 // loop_header
      %s12 = sphi 0, %s16
      %p13 = scmp.ge.s32.totalorder %s12, 4
      %s19 = sphi 0, %s38
      %s20 = sphi 0, %s34
      %s21 = sphi 0, %s30
      %s22 = sphi 0, %s19
      %s23 = sphi 0, %s20
      %s24 = sphi 0, %s21
      %s25 = sphi 0, %s22
      %s26 = sphi 0, %s23
      %s27 = sphi 0, %s24
      %s41 = sphi 0, %s43
      %s44 = sphi 0, %s41
      %s45 = sphi 0, %s44
      %s61 = sphi 0, %s45
      %s67 = sphi 0, %s69
      %s70 = sphi 0, %s67
      %s71 = sphi 0, %s70
      %s87 = sphi 0, %s71
      %s93 = sphi 0, %s95
      %s96 = sphi 0, %s93
      %s97 = sphi 0, %s96
      %s113 = sphi 0, %s97
      %s123 = sphi 0, %s125
      %s126 = sphi 0, %s123
      %s127 = sphi 0, %s126
      %s143 = sphi 0, %s127
    $region4: #{tpu_custom_call.1} parent=1 // loop_header_branch
      %15 = sbr.rel (%p13) target = $region8
    $region5: #{tpu_custom_call.1} parent=1 // loop_body
      %s17 = ssub.s32 %s12, 1
      %s18 = ssub.s32 %s12, 2
      %s28 = sadd.s32 1, %s21
      %p29 = scmp.ge.s32.totalorder %s28, 1
      %s30 = scalar_select %p29, 0, %s28
      %s31 = sadd.s32 1, %s20
      %s32 = scalar_select %p29, %s31, %s20
      %p33 = scmp.ge.s32.totalorder %s32, 1
      %s34 = scalar_select %p33, 0, %s32
      %s35 = sadd.s32 1, %s19
      %s36 = scalar_select %p33, %s35, %s19
      %p37 = scmp.ge.s32.totalorder %s36, 2
      %s38 = scalar_select %p37, 0, %s36
      %s39 = ssub.s32 %s19, %s38
      %p40 = scmp.eq.s32.totalorder %s39, 0
      %s42 = sadd.s32 %s41, 1
      %s43 = scalar_select %p40, %s41, %s42
      %p46 = pneg %p40
      %p47 = scmp.eq.s32.totalorder %s12, 1
      %p48 = por %p46, %p47
      %p49 = scmp.ne.s32.totalorder %s41, %s44
      %p50 = scmp.eq.s32.totalorder %s12, 0
      %p51 = por %p49, %p50
      %p52 = scmp.ne.s32.totalorder %s41, %s44
      %p53 = scmp.eq.s32.totalorder %s17, 1
      %p54 = por %p52, %p53
      %p55 = scmp.ne.s32.totalorder %s44, %s45
      %p56 = scmp.eq.s32.totalorder %s17, 0
      %p57 = por %p55, %p56
      %p58 = scmp.ne.s32.totalorder %s44, %s45
      %p59 = scmp.eq.s32.totalorder %s18, 1
      %p60 = por %p58, %p59
      %p62 = scmp.ne.s32.totalorder %s45, %s61
      %p63 = scmp.eq.s32.totalorder %s18, 0
      %p64 = por %p62, %p63
      %s65 = ssub.s32 %s21, %s30
      %p66 = scmp.eq.s32.totalorder %s65, 0
      %s68 = sadd.s32 %s67, 1
      %s69 = scalar_select %p66, %s67, %s68
      %p72 = pneg %p66
      %p73 = scmp.eq.s32.totalorder %s12, 1
      %p74 = por %p72, %p73
      %p75 = scmp.ne.s32.totalorder %s67, %s70
      %p76 = scmp.eq.s32.totalorder %s12, 0
      %p77 = por %p75, %p76
      %p78 = scmp.ne.s32.totalorder %s67, %s70
      %p79 = scmp.eq.s32.totalorder %s17, 1
      %p80 = por %p78, %p79
      %p81 = scmp.ne.s32.totalorder %s70, %s71
      %p82 = scmp.eq.s32.totalorder %s17, 0
      %p83 = por %p81, %p82
      %p84 = scmp.ne.s32.totalorder %s70, %s71
      %p85 = scmp.eq.s32.totalorder %s18, 1
      %p86 = por %p84, %p85
      %p88 = scmp.ne.s32.totalorder %s71, %s87
      %p89 = scmp.eq.s32.totalorder %s18, 0
      %p90 = por %p88, %p89
      %s91 = ssub.s32 %s21, %s30
      %p92 = scmp.eq.s32.totalorder %s91, 0
      %s94 = sadd.s32 %s93, 1
      %s95 = scalar_select %p92, %s93, %s94
      %p98 = pneg %p92
      %p99 = scmp.eq.s32.totalorder %s12, 1
      %p100 = por %p98, %p99
      %p101 = scmp.ne.s32.totalorder %s93, %s96
      %p102 = scmp.eq.s32.totalorder %s12, 0
      %p103 = por %p101, %p102
      %p104 = scmp.ne.s32.totalorder %s93, %s96
      %p105 = scmp.eq.s32.totalorder %s17, 1
      %p106 = por %p104, %p105
      %p107 = scmp.ne.s32.totalorder %s96, %s97
      %p108 = scmp.eq.s32.totalorder %s17, 0
      %p109 = por %p107, %p108
      %p110 = scmp.ne.s32.totalorder %s96, %s97
      %p111 = scmp.eq.s32.totalorder %s18, 1
      %p112 = por %p110, %p111
      %p114 = scmp.ne.s32.totalorder %s97, %s113
      %p115 = scmp.eq.s32.totalorder %s18, 0
      %p116 = por %p114, %p115
      %s117 = ssub.s32 %s19, %s38
      %s118 = ssub.s32 %s20, %s34
      %s119 = sor.u32 %s117, %s118
      %s120 = ssub.s32 %s21, %s30
      %s121 = sor.u32 %s119, %s120
      %p122 = scmp.eq.s32.totalorder %s121, 0
      %s124 = sadd.s32 %s123, 1
      %s125 = scalar_select %p122, %s123, %s124
      %p128 = pneg %p122
      %p129 = scmp.eq.s32.totalorder %s12, 1
      %p130 = por %p128, %p129
      %p131 = scmp.ne.s32.totalorder %s123, %s126
      %p132 = scmp.eq.s32.totalorder %s12, 0
      %p133 = por %p131, %p132
      %p134 = scmp.ne.s32.totalorder %s123, %s126
      %p135 = scmp.eq.s32.totalorder %s17, 1
      %p136 = por %p134, %p135
      %p137 = scmp.ne.s32.totalorder %s126, %s127
      %p138 = scmp.eq.s32.totalorder %s17, 0
      %p139 = por %p137, %p138
      %p140 = scmp.ne.s32.totalorder %s126, %s127
      %p141 = scmp.eq.s32.totalorder %s18, 1
      %p142 = por %p140, %p141
      %p144 = scmp.ne.s32.totalorder %s127, %s143
      %p145 = scmp.eq.s32.totalorder %s18, 0
      %p146 = por %p144, %p145
      %p147 = scmp.le.s32.totalorder 1, %s12
      %p148 = scmp.lt.s32.totalorder %s12, 3
      %p149 = pnand %p147, %p148
      %p150 = pneg %p149
      // Predicated region
      $region9: #{tpu_custom_call.1} parent=5 // pred_check
        _
      $region10: #{tpu_custom_call.1} parent=5 // pred_check_branch
        %152 = sbr.rel (%p149) target = $region12
      $region11: #{tpu_custom_call.1} parent=5 // pred_region
        %s153 = ssub.s32 %s12, 1
        // Predicated region
        $region13: #{tpu_custom_call.1} parent=11 // pred_check
          %p154 = pneg %p83
        $region14: #{tpu_custom_call.1} parent=11 // pred_check_branch
          %156 = sbr.rel (%p154) target = $region16
        $region15: #{tpu_custom_call.1} parent=11 // pred_region
          %p157 = scmp.lt.s32.totalorder %s24, 0
          %s158 = scalar_select %p157, %s24, 0
          %s159 = smul.addr %s158, 4
          %s160 = scalar_lea.vmem %s1, %s159
        $region16: #{tpu_custom_call.1} parent=11 // pred_fallthru
          _
        // Predicated region
        $region17: #{tpu_custom_call.1} parent=11 // pred_check
          %p161 = pneg %p109
        $region18: #{tpu_custom_call.1} parent=11 // pred_check_branch
          %163 = sbr.rel (%p161) target = $region20
        $region19: #{tpu_custom_call.1} parent=11 // pred_region
          %p164 = scmp.lt.s32.totalorder %s24, 0
          %s165 = scalar_select %p164, %s24, 0
          %s166 = scalar_lea.vmem %s2, %s165
        $region20: #{tpu_custom_call.1} parent=11 // pred_fallthru
          _
      $region12: #{tpu_custom_call.1} parent=5 // pred_fallthru
        _
      %p167 = scmp.lt.s32.totalorder %s12, 2
      // Predicated region
      $region21: #{tpu_custom_call.1} parent=5 // pred_check
        %p168 = pneg %p167
      $region22: #{tpu_custom_call.1} parent=5 // pred_check_branch
        %170 = sbr.rel (%p168) target = $region24
      $region23: #{tpu_custom_call.1} parent=5 // pred_region
        // Predicated region
        $region25: #{tpu_custom_call.1} parent=23 // pred_check
          %p171 = pneg %p51
        $region26: #{tpu_custom_call.1} parent=23 // pred_check_branch
          %173 = sbr.rel (%p171) target = $region28
        $region27: #{tpu_custom_call.1} parent=23 // pred_region
          %p174 = scmp.lt.s32.totalorder %s19, 1
          %s175 = scalar_select %p174, %s19, 1
          %s176 = smul.addr %s175, 54
          %s177 = smul.addr %s176, 4
          %s178 = scalar_lea.vmem %s0, %s177
        $region28: #{tpu_custom_call.1} parent=23 // pred_fallthru
          _
      $region24: #{tpu_custom_call.1} parent=5 // pred_fallthru
        _
      %p179 = scmp.le.s32.totalorder 1, %s12
      %p180 = scmp.lt.s32.totalorder %s12, 3
      %p181 = pnand %p179, %p180
      %p182 = pneg %p181
      // Predicated region
      $region29: #{tpu_custom_call.1} parent=5 // pred_check
        _
      $region30: #{tpu_custom_call.1} parent=5 // pred_check_branch
        %184 = sbr.rel (%p181) target = $region32
      $region31: #{tpu_custom_call.1} parent=5 // pred_region
        %s185 = ssub.s32 %s12, 1
        %p186 = scmp.lt.s32.totalorder %s22, 1
        %s187 = scalar_select %p186, %s22, 1
        %s188 = smul.addr %s187, 54
        %s189 = smul.addr %s188, 4
        %s190 = scalar_lea.vmem %s0, %s189
        %p191 = pneg %p57
        %p192 = pneg %p54
        %p193 = scmp.lt.s32.totalorder %s24, 0
        %s194 = scalar_select %p193, %s24, 0
        %s195 = smul.addr %s194, 4
        %s196 = scalar_lea.vmem %s1, %s195
        %p197 = pneg %p83
        %p198 = pneg %p80
        %p199 = scmp.lt.s32.totalorder %s24, 0
        %s200 = scalar_select %p199, %s24, 0
        %s201 = scalar_lea.vmem %s2, %s200
        %p202 = pneg %p109
        %p203 = pneg %p106
        %p204 = pneg %p139
        %p205 = pneg %p136
        %s206 = sand.u32 %s126, 1
        %s207 = scalar_lea.sflag [#allocation4], %s206
        %s208 = sand.u32 %s126, 1
        %s209 = smul.addr %s208, 128
        %s210 = scalar_lea.vmem [#allocation3], %s209
        %p211 = scmp.lt.s32.totalorder %s22, 1
        %s212 = scalar_select %p211, %s22, 1
        %s213 = smul.addr %s212, 54
        %s214 = smul.addr %s213, 4
        %s215 = scalar_lea.vmem %s0, %s214
        %p216 = scmp.lt.s32.totalorder %s24, 0
        %s217 = scalar_select %p216, %s24, 0
        %s218 = smul.addr %s217, 4
        %s219 = scalar_lea.vmem %s1, %s218
        %p220 = scmp.lt.s32.totalorder %s24, 0
        %s221 = scalar_select %p220, %s24, 0
        %s222 = scalar_lea.vmem %s2, %s221
        %s223 = smul.u32 32, %s23
        %p224 = scmp.eq.s32.totalorder %s24, 0
        // Predicated region
        $region33: #{tpu_custom_call.1} parent=31 // pred_check
          %p225 = pneg %p224
        $region34: #{tpu_custom_call.1} parent=31 // pred_check_branch
          %227 = sbr.rel (%p225) target = $region36
        $region35: #{tpu_custom_call.1} parent=31 // pred_region
          %s228 = smul.u32 %s23, 16
          %s229 = smul.u32 %s228, 3
          %s230 = smul.addr %s229, 4
          %s231 = scalar_lea.vmem %s215, %s230
          %v232 = vld [vmem:[%s231] sm:$0xf]
          %v233 = vld [vmem:[%s231 + $0x4] sm:$0xf]
          %v234 = vld [vmem:[%s231 + $0x8] sm:$0x1]
          %v235 = vld [vmem:[%s231 + $0xc] sm:$0xf]
          %v236 = vld [vmem:[%s231 + $0x10] sm:$0xf]
          %v237 = vld [vmem:[%s231 + $0x14] sm:$0x1]
          %v238 = vld [vmem:[%s231 + $0x18] sm:$0xf]
          %v239 = vld [vmem:[%s231 + $0x1c] sm:$0xf]
          %v240 = vld [vmem:[%s231 + $0x20] sm:$0x1]
          %v241 = vld [vmem:[%s231 + $0x24] sm:$0xf]
          %v242 = vld [vmem:[%s231 + $0x28] sm:$0xf]
          %v243 = vld [vmem:[%s231 + $0x2c] sm:$0x1]
          %v244 = vld [vmem:[%s231 + $0x30] sm:$0xf]
          %v245 = vld [vmem:[%s231 + $0x34] sm:$0xf]
          %v246 = vld [vmem:[%s231 + $0x38] sm:$0x1]
          %v247 = vld [vmem:[%s231 + $0x3c] sm:$0xf]
          %v248 = vld [vmem:[%s231 + $0x40] sm:$0xf]
          %v249 = vld [vmem:[%s231 + $0x44] sm:$0x1]
          %v250 = vld [vmem:[%s231 + $0x48] sm:$0xf]
          %v251 = vld [vmem:[%s231 + $0x4c] sm:$0xf]
          %v252 = vld [vmem:[%s231 + $0x50] sm:$0x1]
          %v253 = vld [vmem:[%s231 + $0x54] sm:$0xf]
          %v254 = vld [vmem:[%s231 + $0x58] sm:$0xf]
          %v255 = vld [vmem:[%s231 + $0x5c] sm:$0x1]
          %v256 = vld [vmem:[%s231 + $0x60] sm:$0xf]
          %v257 = vld [vmem:[%s231 + $0x64] sm:$0xf]
          %v258 = vld [vmem:[%s231 + $0x68] sm:$0x1]
          %v259 = vld [vmem:[%s231 + $0x6c] sm:$0xf]
          %v260 = vld [vmem:[%s231 + $0x70] sm:$0xf]
          %v261 = vld [vmem:[%s231 + $0x74] sm:$0x1]
          %v262 = vld [vmem:[%s231 + $0x78] sm:$0xf]
          %v263 = vld [vmem:[%s231 + $0x7c] sm:$0xf]
          %v264 = vld [vmem:[%s231 + $0x80] sm:$0x1]
          %v265 = vld [vmem:[%s231 + $0x84] sm:$0xf]
          %v266 = vld [vmem:[%s231 + $0x88] sm:$0xf]
          %v267 = vld [vmem:[%s231 + $0x8c] sm:$0x1]
          %v268 = vld [vmem:[%s231 + $0x90] sm:$0xf]
          %v269 = vld [vmem:[%s231 + $0x94] sm:$0xf]
          %v270 = vld [vmem:[%s231 + $0x98] sm:$0x1]
          %v271 = vld [vmem:[%s231 + $0x9c] sm:$0xf]
          %v272 = vld [vmem:[%s231 + $0xa0] sm:$0xf]
          %v273 = vld [vmem:[%s231 + $0xa4] sm:$0x1]
          %v274 = vld [vmem:[%s231 + $0xa8] sm:$0xf]
          %v275 = vld [vmem:[%s231 + $0xac] sm:$0xf]
          %v276 = vld [vmem:[%s231 + $0xb0] sm:$0x1]
          %v277 = vld [vmem:[%s231 + $0xb4] sm:$0xf]
          %v278 = vld [vmem:[%s231 + $0xb8] sm:$0xf]
          %v279 = vld [vmem:[%s231 + $0xbc] sm:$0x1]
          %280 = vst [vmem:[#allocation2] sm:$0xf] %v232
          %281 = vst [vmem:[#allocation2 + $0x24] sm:$0xf] %v233
          %282 = vst [vmem:[#allocation2 + $0x48] sm:$0xf] %v235
          %283 = vst [vmem:[#allocation2 + $0x6c] sm:$0xf] %v236
          %284 = vst [vmem:[#allocation2 + $0x90] sm:$0xf] %v238
          %285 = vst [vmem:[#allocation2 + $0xb4] sm:$0xf] %v239
          %286 = vst [vmem:[#allocation2 + $0xd8] sm:$0xf] %v241
          %287 = vst [vmem:[#allocation2 + $0xfc] sm:$0xf] %v242
          %288 = vst [vmem:[#allocation2 + $0x120] sm:$0xf] %v244
          %289 = vst [vmem:[#allocation2 + $0x144] sm:$0xf] %v245
          %290 = vst [vmem:[#allocation2 + $0x168] sm:$0xf] %v247
          %291 = vst [vmem:[#allocation2 + $0x18c] sm:$0xf] %v248
          %292 = vst [vmem:[#allocation2 + $0x1b0] sm:$0xf] %v250
          %293 = vst [vmem:[#allocation2 + $0x1d4] sm:$0xf] %v251
          %294 = vst [vmem:[#allocation2 + $0x1f8] sm:$0xf] %v253
          %295 = vst [vmem:[#allocation2 + $0x21c] sm:$0xf] %v254
          %296 = vst [vmem:[#allocation2 + $0x240] sm:$0xf] %v256
          %297 = vst [vmem:[#allocation2 + $0x264] sm:$0xf] %v257
          %298 = vst [vmem:[#allocation2 + $0x288] sm:$0xf] %v259
          %299 = vst [vmem:[#allocation2 + $0x2ac] sm:$0xf] %v260
          %300 = vst [vmem:[#allocation2 + $0x2d0] sm:$0xf] %v262
          %301 = vst [vmem:[#allocation2 + $0x2f4] sm:$0xf] %v263
          %302 = vst [vmem:[#allocation2 + $0x318] sm:$0xf] %v265
          %303 = vst [vmem:[#allocation2 + $0x33c] sm:$0xf] %v266
          %304 = vst [vmem:[#allocation2 + $0x360] sm:$0xf] %v268
          %305 = vst [vmem:[#allocation2 + $0x384] sm:$0xf] %v269
          %306 = vst [vmem:[#allocation2 + $0x3a8] sm:$0xf] %v271
          %307 = vst [vmem:[#allocation2 + $0x3cc] sm:$0xf] %v272
          %308 = vst [vmem:[#allocation2 + $0x3f0] sm:$0xf] %v274
          %309 = vst [vmem:[#allocation2 + $0x414] sm:$0xf] %v275
          %310 = vst [vmem:[#allocation2 + $0x438] sm:$0xf] %v277
          %311 = vst [vmem:[#allocation2 + $0x45c] sm:$0xf] %v278
          %vm312 = vsmask.f32 3328
          %vm313 = vsmask.f32 7440
          %vm314 = vmor %vm312, %vm313
          %v316 = vshrl.u32 %v232, 16
          %v318 = vrot.slane %v316, 4
          %v319 = vshll.u32 %v232, 16
          %v321 = vrot.slane %v319, 5
          %v322 = vor.u32 %v318, %v321
          %v323 = vrot.slane %v322, 4
          %v325 = vshll.u32 %v233, 16
          %v327 = vrot.slane %v325, 5
          %v328 = vsel %vm314, %v323, %v327
          %v329 = vshrl.u32 %v233, 16
          %v331 = vrot.slane %v329, 4
          %v332 = vor.u32 %v331, %v327
          %v333 = vrot.slane %v332, 4
          %v335 = vshll.u32 %v234, 16
          %v337 = vrot.slane %v335, 5
          %v338 = vsel %vm314, %v333, %v337
          %v340 = vshrl.u32 %v235, 16
          %v342 = vrot.slane %v340, 4
          %v343 = vshll.u32 %v235, 16
          %v345 = vrot.slane %v343, 5
          %v346 = vor.u32 %v342, %v345
          %v347 = vrot.slane %v346, 4
          %v349 = vshll.u32 %v236, 16
          %v351 = vrot.slane %v349, 5
          %v352 = vsel %vm314, %v347, %v351
          %v353 = vshrl.u32 %v236, 16
          %v355 = vrot.slane %v353, 4
          %v356 = vor.u32 %v355, %v351
          %v357 = vrot.slane %v356, 4
          %v359 = vshll.u32 %v237, 16
          %v361 = vrot.slane %v359, 5
          %v362 = vsel %vm314, %v357, %v361
          %v364 = vshrl.u32 %v238, 16
          %v366 = vrot.slane %v364, 4
          %v367 = vshll.u32 %v238, 16
          %v369 = vrot.slane %v367, 5
          %v370 = vor.u32 %v366, %v369
          %v371 = vrot.slane %v370, 4
          %v373 = vshll.u32 %v239, 16
          %v375 = vrot.slane %v373, 5
          %v376 = vsel %vm314, %v371, %v375
          %v377 = vshrl.u32 %v239, 16
          %v379 = vrot.slane %v377, 4
          %v380 = vor.u32 %v379, %v375
          %v381 = vrot.slane %v380, 4
          %v383 = vshll.u32 %v240, 16
          %v385 = vrot.slane %v383, 5
          %v386 = vsel %vm314, %v381, %v385
          %v388 = vshrl.u32 %v241, 16
          %v390 = vrot.slane %v388, 4
          %v391 = vshll.u32 %v241, 16
          %v393 = vrot.slane %v391, 5
          %v394 = vor.u32 %v390, %v393
          %v395 = vrot.slane %v394, 4
          %v397 = vshll.u32 %v242, 16
          %v399 = vrot.slane %v397, 5
          %v400 = vsel %vm314, %v395, %v399
          %v401 = vshrl.u32 %v242, 16
          %v403 = vrot.slane %v401, 4
          %v404 = vor.u32 %v403, %v399
          %v405 = vrot.slane %v404, 4
          %v407 = vshll.u32 %v243, 16
          %v409 = vrot.slane %v407, 5
          %v410 = vsel %vm314, %v405, %v409
          %v412 = vshrl.u32 %v244, 16
          %v414 = vrot.slane %v412, 4
          %v415 = vshll.u32 %v244, 16
          %v417 = vrot.slane %v415, 5
          %v418 = vor.u32 %v414, %v417
          %v419 = vrot.slane %v418, 4
          %v421 = vshll.u32 %v245, 16
          %v423 = vrot.slane %v421, 5
          %v424 = vsel %vm314, %v419, %v423
          %v425 = vshrl.u32 %v245, 16
          %v427 = vrot.slane %v425, 4
          %v428 = vor.u32 %v427, %v423
          %v429 = vrot.slane %v428, 4
          %v431 = vshll.u32 %v246, 16
          %v433 = vrot.slane %v431, 5
          %v434 = vsel %vm314, %v429, %v433
          %v436 = vshrl.u32 %v247, 16
          %v438 = vrot.slane %v436, 4
          %v439 = vshll.u32 %v247, 16
          %v441 = vrot.slane %v439, 5
          %v442 = vor.u32 %v438, %v441
          %v443 = vrot.slane %v442, 4
          %v445 = vshll.u32 %v248, 16
          %v447 = vrot.slane %v445, 5
          %v448 = vsel %vm314, %v443, %v447
          %v449 = vshrl.u32 %v248, 16
          %v451 = vrot.slane %v449, 4
          %v452 = vor.u32 %v451, %v447
          %v453 = vrot.slane %v452, 4
          %v455 = vshll.u32 %v249, 16
          %v457 = vrot.slane %v455, 5
          %v458 = vsel %vm314, %v453, %v457
          %v460 = vshrl.u32 %v250, 16
          %v462 = vrot.slane %v460, 4
          %v463 = vshll.u32 %v250, 16
          %v465 = vrot.slane %v463, 5
          %v466 = vor.u32 %v462, %v465
          %v467 = vrot.slane %v466, 4
          %v469 = vshll.u32 %v251, 16
          %v471 = vrot.slane %v469, 5
          %v472 = vsel %vm314, %v467, %v471
          %v473 = vshrl.u32 %v251, 16
          %v475 = vrot.slane %v473, 4
          %v476 = vor.u32 %v475, %v471
          %v477 = vrot.slane %v476, 4
          %v479 = vshll.u32 %v252, 16
          %v481 = vrot.slane %v479, 5
          %v482 = vsel %vm314, %v477, %v481
          %v484 = vshrl.u32 %v253, 16
          %v486 = vrot.slane %v484, 4
          %v487 = vshll.u32 %v253, 16
          %v489 = vrot.slane %v487, 5
          %v490 = vor.u32 %v486, %v489
          %v491 = vrot.slane %v490, 4
          %v493 = vshll.u32 %v254, 16
          %v495 = vrot.slane %v493, 5
          %v496 = vsel %vm314, %v491, %v495
          %v497 = vshrl.u32 %v254, 16
          %v499 = vrot.slane %v497, 4
          %v500 = vor.u32 %v499, %v495
          %v501 = vrot.slane %v500, 4
          %v503 = vshll.u32 %v255, 16
          %v505 = vrot.slane %v503, 5
          %v506 = vsel %vm314, %v501, %v505
          %v508 = vshrl.u32 %v256, 16
          %v510 = vrot.slane %v508, 4
          %v511 = vshll.u32 %v256, 16
          %v513 = vrot.slane %v511, 5
          %v514 = vor.u32 %v510, %v513
          %v515 = vrot.slane %v514, 4
          %v517 = vshll.u32 %v257, 16
          %v519 = vrot.slane %v517, 5
          %v520 = vsel %vm314, %v515, %v519
          %v521 = vshrl.u32 %v257, 16
          %v523 = vrot.slane %v521, 4
          %v524 = vor.u32 %v523, %v519
          %v525 = vrot.slane %v524, 4
          %v527 = vshll.u32 %v258, 16
          %v529 = vrot.slane %v527, 5
          %v530 = vsel %vm314, %v525, %v529
          %v532 = vshrl.u32 %v259, 16
          %v534 = vrot.slane %v532, 4
          %v535 = vshll.u32 %v259, 16
          %v537 = vrot.slane %v535, 5
          %v538 = vor.u32 %v534, %v537
          %v539 = vrot.slane %v538, 4
          %v541 = vshll.u32 %v260, 16
          %v543 = vrot.slane %v541, 5
          %v544 = vsel %vm314, %v539, %v543
          %v545 = vshrl.u32 %v260, 16
          %v547 = vrot.slane %v545, 4
          %v548 = vor.u32 %v547, %v543
          %v549 = vrot.slane %v548, 4
          %v551 = vshll.u32 %v261, 16
          %v553 = vrot.slane %v551, 5
          %v554 = vsel %vm314, %v549, %v553
          %v556 = vshrl.u32 %v262, 16
          %v558 = vrot.slane %v556, 4
          %v559 = vshll.u32 %v262, 16
          %v561 = vrot.slane %v559, 5
          %v562 = vor.u32 %v558, %v561
          %v563 = vrot.slane %v562, 4
          %v565 = vshll.u32 %v263, 16
          %v567 = vrot.slane %v565, 5
          %v568 = vsel %vm314, %v563, %v567
          %v569 = vshrl.u32 %v263, 16
          %v571 = vrot.slane %v569, 4
          %v572 = vor.u32 %v571, %v567
          %v573 = vrot.slane %v572, 4
          %v575 = vshll.u32 %v264, 16
          %v577 = vrot.slane %v575, 5
          %v578 = vsel %vm314, %v573, %v577
          %v580 = vshrl.u32 %v265, 16
          %v582 = vrot.slane %v580, 4
          %v583 = vshll.u32 %v265, 16
          %v585 = vrot.slane %v583, 5
          %v586 = vor.u32 %v582, %v585
          %v587 = vrot.slane %v586, 4
          %v589 = vshll.u32 %v266, 16
          %v591 = vrot.slane %v589, 5
          %v592 = vsel %vm314, %v587, %v591
          %v593 = vshrl.u32 %v266, 16
          %v595 = vrot.slane %v593, 4
          %v596 = vor.u32 %v595, %v591
          %v597 = vrot.slane %v596, 4
          %v599 = vshll.u32 %v267, 16
          %v601 = vrot.slane %v599, 5
          %v602 = vsel %vm314, %v597, %v601
          %v604 = vshrl.u32 %v268, 16
          %v606 = vrot.slane %v604, 4
          %v607 = vshll.u32 %v268, 16
          %v609 = vrot.slane %v607, 5
          %v610 = vor.u32 %v606, %v609
          %v611 = vrot.slane %v610, 4
          %v613 = vshll.u32 %v269, 16
          %v615 = vrot.slane %v613, 5
          %v616 = vsel %vm314, %v611, %v615
          %v617 = vshrl.u32 %v269, 16
          %v619 = vrot.slane %v617, 4
          %v620 = vor.u32 %v619, %v615
          %v621 = vrot.slane %v620, 4
          %v623 = vshll.u32 %v270, 16
          %v625 = vrot.slane %v623, 5
          %v626 = vsel %vm314, %v621, %v625
          %v628 = vshrl.u32 %v271, 16
          %v630 = vrot.slane %v628, 4
          %v631 = vshll.u32 %v271, 16
          %v633 = vrot.slane %v631, 5
          %v634 = vor.u32 %v630, %v633
          %v635 = vrot.slane %v634, 4
          %v637 = vshll.u32 %v272, 16
          %v639 = vrot.slane %v637, 5
          %v640 = vsel %vm314, %v635, %v639
          %v641 = vshrl.u32 %v272, 16
          %v643 = vrot.slane %v641, 4
          %v644 = vor.u32 %v643, %v639
          %v645 = vrot.slane %v644, 4
          %v647 = vshll.u32 %v273, 16
          %v649 = vrot.slane %v647, 5
          %v650 = vsel %vm314, %v645, %v649
          %v652 = vshrl.u32 %v274, 16
          %v654 = vrot.slane %v652, 4
          %v655 = vshll.u32 %v274, 16
          %v657 = vrot.slane %v655, 5
          %v658 = vor.u32 %v654, %v657
          %v659 = vrot.slane %v658, 4
          %v661 = vshll.u32 %v275, 16
          %v663 = vrot.slane %v661, 5
          %v664 = vsel %vm314, %v659, %v663
          %v665 = vshrl.u32 %v275, 16
          %v667 = vrot.slane %v665, 4
          %v668 = vor.u32 %v667, %v663
          %v669 = vrot.slane %v668, 4
          %v671 = vshll.u32 %v276, 16
          %v673 = vrot.slane %v671, 5
          %v674 = vsel %vm314, %v669, %v673
          %v676 = vshrl.u32 %v277, 16
          %v678 = vrot.slane %v676, 4
          %v679 = vshll.u32 %v277, 16
          %v681 = vrot.slane %v679, 5
          %v682 = vor.u32 %v678, %v681
          %v683 = vrot.slane %v682, 4
          %v685 = vshll.u32 %v278, 16
          %v687 = vrot.slane %v685, 5
          %v688 = vsel %vm314, %v683, %v687
          %v689 = vshrl.u32 %v278, 16
          %v691 = vrot.slane %v689, 4
          %v692 = vor.u32 %v691, %v687
          %v693 = vrot.slane %v692, 4
          %v695 = vshll.u32 %v279, 16
          %v697 = vrot.slane %v695, 5
          %v698 = vsel %vm314, %v693, %v697
          %731 = vst [vmem:[#allocation2 + $0x4] sm:$0xf] %v328
          %732 = vst [vmem:[#allocation2 + $0x28] sm:$0xf] %v338
          %733 = vst [vmem:[#allocation2 + $0x4c] sm:$0xf] %v352
          %734 = vst [vmem:[#allocation2 + $0x70] sm:$0xf] %v362
          %735 = vst [vmem:[#allocation2 + $0x94] sm:$0xf] %v376
          %736 = vst [vmem:[#allocation2 + $0xb8] sm:$0xf] %v386
          %737 = vst [vmem:[#allocation2 + $0xdc] sm:$0xf] %v400
          %738 = vst [vmem:[#allocation2 + $0x100] sm:$0xf] %v410
          %739 = vst [vmem:[#allocation2 + $0x124] sm:$0xf] %v424
          %740 = vst [vmem:[#allocation2 + $0x148] sm:$0xf] %v434
          %741 = vst [vmem:[#allocation2 + $0x16c] sm:$0xf] %v448
          %742 = vst [vmem:[#allocation2 + $0x190] sm:$0xf] %v458
          %743 = vst [vmem:[#allocation2 + $0x1b4] sm:$0xf] %v472
          %744 = vst [vmem:[#allocation2 + $0x1d8] sm:$0xf] %v482
          %745 = vst [vmem:[#allocation2 + $0x1fc] sm:$0xf] %v496
          %746 = vst [vmem:[#allocation2 + $0x220] sm:$0xf] %v506
          %747 = vst [vmem:[#allocation2 + $0x244] sm:$0xf] %v520
          %748 = vst [vmem:[#allocation2 + $0x268] sm:$0xf] %v530
          %749 = vst [vmem:[#allocation2 + $0x28c] sm:$0xf] %v544
          %750 = vst [vmem:[#allocation2 + $0x2b0] sm:$0xf] %v554
          %751 = vst [vmem:[#allocation2 + $0x2d4] sm:$0xf] %v568
          %752 = vst [vmem:[#allocation2 + $0x2f8] sm:$0xf] %v578
          %753 = vst [vmem:[#allocation2 + $0x31c] sm:$0xf] %v592
          %754 = vst [vmem:[#allocation2 + $0x340] sm:$0xf] %v602
          %755 = vst [vmem:[#allocation2 + $0x364] sm:$0xf] %v616
          %756 = vst [vmem:[#allocation2 + $0x388] sm:$0xf] %v626
          %757 = vst [vmem:[#allocation2 + $0x3ac] sm:$0xf] %v640
          %758 = vst [vmem:[#allocation2 + $0x3d0] sm:$0xf] %v650
          %759 = vst [vmem:[#allocation2 + $0x3f4] sm:$0xf] %v664
          %760 = vst [vmem:[#allocation2 + $0x418] sm:$0xf] %v674
          %761 = vst [vmem:[#allocation2 + $0x43c] sm:$0xf] %v688
          %762 = vst [vmem:[#allocation2 + $0x460] sm:$0xf] %v698
          %vm811 = vcmask 1042432
          %vm812 = vcmask 1046532
          %vm813 = vmor %vm811, %vm812
          %v814 = vrot.slane %v232, 5
          %v815 = vrot.slane %v814, 4
          %v816 = vrot.slane %v233, 5
          %v817 = vsel %vm813, %v815, %v816
          %v818 = vrot.slane %v816, 4
          %v819 = vrot.slane %v234, 5
          %v820 = vsel %vm813, %v818, %v819
          %v821 = vrot.slane %v235, 5
          %v822 = vrot.slane %v821, 4
          %v823 = vrot.slane %v236, 5
          %v824 = vsel %vm813, %v822, %v823
          %v825 = vrot.slane %v823, 4
          %v826 = vrot.slane %v237, 5
          %v827 = vsel %vm813, %v825, %v826
          %v828 = vrot.slane %v238, 5
          %v829 = vrot.slane %v828, 4
          %v830 = vrot.slane %v239, 5
          %v831 = vsel %vm813, %v829, %v830
          %v832 = vrot.slane %v830, 4
          %v833 = vrot.slane %v240, 5
          %v834 = vsel %vm813, %v832, %v833
          %v835 = vrot.slane %v241, 5
          %v836 = vrot.slane %v835, 4
          %v837 = vrot.slane %v242, 5
          %v838 = vsel %vm813, %v836, %v837
          %v839 = vrot.slane %v837, 4
          %v840 = vrot.slane %v243, 5
          %v841 = vsel %vm813, %v839, %v840
          %v842 = vrot.slane %v244, 5
          %v843 = vrot.slane %v842, 4
          %v844 = vrot.slane %v245, 5
          %v845 = vsel %vm813, %v843, %v844
          %v846 = vrot.slane %v844, 4
          %v847 = vrot.slane %v246, 5
          %v848 = vsel %vm813, %v846, %v847
          %v849 = vrot.slane %v247, 5
          %v850 = vrot.slane %v849, 4
          %v851 = vrot.slane %v248, 5
          %v852 = vsel %vm813, %v850, %v851
          %v853 = vrot.slane %v851, 4
          %v854 = vrot.slane %v249, 5
          %v855 = vsel %vm813, %v853, %v854
          %v856 = vrot.slane %v250, 5
          %v857 = vrot.slane %v856, 4
          %v858 = vrot.slane %v251, 5
          %v859 = vsel %vm813, %v857, %v858
          %v860 = vrot.slane %v858, 4
          %v861 = vrot.slane %v252, 5
          %v862 = vsel %vm813, %v860, %v861
          %v863 = vrot.slane %v253, 5
          %v864 = vrot.slane %v863, 4
          %v865 = vrot.slane %v254, 5
          %v866 = vsel %vm813, %v864, %v865
          %v867 = vrot.slane %v865, 4
          %v868 = vrot.slane %v255, 5
          %v869 = vsel %vm813, %v867, %v868
          %v870 = vrot.slane %v256, 5
          %v871 = vrot.slane %v870, 4
          %v872 = vrot.slane %v257, 5
          %v873 = vsel %vm813, %v871, %v872
          %v874 = vrot.slane %v872, 4
          %v875 = vrot.slane %v258, 5
          %v876 = vsel %vm813, %v874, %v875
          %v877 = vrot.slane %v259, 5
          %v878 = vrot.slane %v877, 4
          %v879 = vrot.slane %v260, 5
          %v880 = vsel %vm813, %v878, %v879
          %v881 = vrot.slane %v879, 4
          %v882 = vrot.slane %v261, 5
          %v883 = vsel %vm813, %v881, %v882
          %v884 = vrot.slane %v262, 5
          %v885 = vrot.slane %v884, 4
          %v886 = vrot.slane %v263, 5
          %v887 = vsel %vm813, %v885, %v886
          %v888 = vrot.slane %v886, 4
          %v889 = vrot.slane %v264, 5
          %v890 = vsel %vm813, %v888, %v889
          %v891 = vrot.slane %v265, 5
          %v892 = vrot.slane %v891, 4
          %v893 = vrot.slane %v266, 5
          %v894 = vsel %vm813, %v892, %v893
          %v895 = vrot.slane %v893, 4
          %v896 = vrot.slane %v267, 5
          %v897 = vsel %vm813, %v895, %v896
          %v898 = vrot.slane %v268, 5
          %v899 = vrot.slane %v898, 4
          %v900 = vrot.slane %v269, 5
          %v901 = vsel %vm813, %v899, %v900
          %v902 = vrot.slane %v900, 4
          %v903 = vrot.slane %v270, 5
          %v904 = vsel %vm813, %v902, %v903
          %v905 = vrot.slane %v271, 5
          %v906 = vrot.slane %v905, 4
          %v907 = vrot.slane %v272, 5
          %v908 = vsel %vm813, %v906, %v907
          %v909 = vrot.slane %v907, 4
          %v910 = vrot.slane %v273, 5
          %v911 = vsel %vm813, %v909, %v910
          %v912 = vrot.slane %v274, 5
          %v913 = vrot.slane %v912, 4
          %v914 = vrot.slane %v275, 5
          %v915 = vsel %vm813, %v913, %v914
          %v916 = vrot.slane %v914, 4
          %v917 = vrot.slane %v276, 5
          %v918 = vsel %vm813, %v916, %v917
          %v919 = vrot.slane %v277, 5
          %v920 = vrot.slane %v919, 4
          %v921 = vrot.slane %v278, 5
          %v922 = vsel %vm813, %v920, %v921
          %v923 = vrot.slane %v921, 4
          %v924 = vrot.slane %v279, 5
          %v925 = vsel %vm813, %v923, %v924
          %958 = vst [vmem:[#allocation2 + $0x8] sm:$0xf] %v817
          %959 = vst [vmem:[#allocation2 + $0x2c] sm:$0xf] %v820
          %960 = vst [vmem:[#allocation2 + $0x50] sm:$0xf] %v824
          %961 = vst [vmem:[#allocation2 + $0x74] sm:$0xf] %v827
          %962 = vst [vmem:[#allocation2 + $0x98] sm:$0xf] %v831
          %963 = vst [vmem:[#allocation2 + $0xbc] sm:$0xf] %v834
          %964 = vst [vmem:[#allocation2 + $0xe0] sm:$0xf] %v838
          %965 = vst [vmem:[#allocation2 + $0x104] sm:$0xf] %v841
          %966 = vst [vmem:[#allocation2 + $0x128] sm:$0xf] %v845
          %967 = vst [vmem:[#allocation2 + $0x14c] sm:$0xf] %v848
          %968 = vst [vmem:[#allocation2 + $0x170] sm:$0xf] %v852
          %969 = vst [vmem:[#allocation2 + $0x194] sm:$0xf] %v855
          %970 = vst [vmem:[#allocation2 + $0x1b8] sm:$0xf] %v859
          %971 = vst [vmem:[#allocation2 + $0x1dc] sm:$0xf] %v862
          %972 = vst [vmem:[#allocation2 + $0x200] sm:$0xf] %v866
          %973 = vst [vmem:[#allocation2 + $0x224] sm:$0xf] %v869
          %974 = vst [vmem:[#allocation2 + $0x248] sm:$0xf] %v873
          %975 = vst [vmem:[#allocation2 + $0x26c] sm:$0xf] %v876
          %976 = vst [vmem:[#allocation2 + $0x290] sm:$0xf] %v880
          %977 = vst [vmem:[#allocation2 + $0x2b4] sm:$0xf] %v883
          %978 = vst [vmem:[#allocation2 + $0x2d8] sm:$0xf] %v887
          %979 = vst [vmem:[#allocation2 + $0x2fc] sm:$0xf] %v890
          %980 = vst [vmem:[#allocation2 + $0x320] sm:$0xf] %v894
          %981 = vst [vmem:[#allocation2 + $0x344] sm:$0xf] %v897
          %982 = vst [vmem:[#allocation2 + $0x368] sm:$0xf] %v901
          %983 = vst [vmem:[#allocation2 + $0x38c] sm:$0xf] %v904
          %984 = vst [vmem:[#allocation2 + $0x3b0] sm:$0xf] %v908
          %985 = vst [vmem:[#allocation2 + $0x3d4] sm:$0xf] %v911
          %986 = vst [vmem:[#allocation2 + $0x3f8] sm:$0xf] %v915
          %987 = vst [vmem:[#allocation2 + $0x41c] sm:$0xf] %v918
          %988 = vst [vmem:[#allocation2 + $0x440] sm:$0xf] %v922
          %989 = vst [vmem:[#allocation2 + $0x464] sm:$0xf] %v925
          %s990 = sadd.s32 %s228, 1
          %s991 = smul.u32 %s990, 3
          %s992 = smul.addr %s991, 4
          %s993 = scalar_lea.vmem %s215, %s992
          %v994 = vld [vmem:[%s993] sm:$0xf]
          %v995 = vld [vmem:[%s993 + $0x4] sm:$0xf]
          %v996 = vld [vmem:[%s993 + $0x8] sm:$0x1]
          %v997 = vld [vmem:[%s993 + $0xc] sm:$0xf]
          %v998 = vld [vmem:[%s993 + $0x10] sm:$0xf]
          %v999 = vld [vmem:[%s993 + $0x14] sm:$0x1]
          %v1000 = vld [vmem:[%s993 + $0x18] sm:$0xf]
          %v1001 = vld [vmem:[%s993 + $0x1c] sm:$0xf]
          %v1002 = vld [vmem:[%s993 + $0x20] sm:$0x1]
          %v1003 = vld [vmem:[%s993 + $0x24] sm:$0xf]
          %v1004 = vld [vmem:[%s993 + $0x28] sm:$0xf]
          %v1005 = vld [vmem:[%s993 + $0x2c] sm:$0x1]
          %v1006 = vld [vmem:[%s993 + $0x30] sm:$0xf]
          %v1007 = vld [vmem:[%s993 + $0x34] sm:$0xf]
          %v1008 = vld [vmem:[%s993 + $0x38] sm:$0x1]
          %v1009 = vld [vmem:[%s993 + $0x3c] sm:$0xf]
          %v1010 = vld [vmem:[%s993 + $0x40] sm:$0xf]
          %v1011 = vld [vmem:[%s993 + $0x44] sm:$0x1]
          %v1012 = vld [vmem:[%s993 + $0x48] sm:$0xf]
          %v1013 = vld [vmem:[%s993 + $0x4c] sm:$0xf]
          %v1014 = vld [vmem:[%s993 + $0x50] sm:$0x1]
          %v1015 = vld [vmem:[%s993 + $0x54] sm:$0xf]
          %v1016 = vld [vmem:[%s993 + $0x58] sm:$0xf]
          %v1017 = vld [vmem:[%s993 + $0x5c] sm:$0x1]
          %v1018 = vld [vmem:[%s993 + $0x60] sm:$0xf]
          %v1019 = vld [vmem:[%s993 + $0x64] sm:$0xf]
          %v1020 = vld [vmem:[%s993 + $0x68] sm:$0x1]
          %v1021 = vld [vmem:[%s993 + $0x6c] sm:$0xf]
          %v1022 = vld [vmem:[%s993 + $0x70] sm:$0xf]
          %v1023 = vld [vmem:[%s993 + $0x74] sm:$0x1]
          %v1024 = vld [vmem:[%s993 + $0x78] sm:$0xf]
          %v1025 = vld [vmem:[%s993 + $0x7c] sm:$0xf]
          %v1026 = vld [vmem:[%s993 + $0x80] sm:$0x1]
          %v1027 = vld [vmem:[%s993 + $0x84] sm:$0xf]
          %v1028 = vld [vmem:[%s993 + $0x88] sm:$0xf]
          %v1029 = vld [vmem:[%s993 + $0x8c] sm:$0x1]
          %v1030 = vld [vmem:[%s993 + $0x90] sm:$0xf]
          %v1031 = vld [vmem:[%s993 + $0x94] sm:$0xf]
          %v1032 = vld [vmem:[%s993 + $0x98] sm:$0x1]
          %v1033 = vld [vmem:[%s993 + $0x9c] sm:$0xf]
          %v1034 = vld [vmem:[%s993 + $0xa0] sm:$0xf]
          %v1035 = vld [vmem:[%s993 + $0xa4] sm:$0x1]
          %v1036 = vld [vmem:[%s993 + $0xa8] sm:$0xf]
          %v1037 = vld [vmem:[%s993 + $0xac] sm:$0xf]
          %v1038 = vld [vmem:[%s993 + $0xb0] sm:$0x1]
          %v1039 = vld [vmem:[%s993 + $0xb4] sm:$0xf]
          %v1040 = vld [vmem:[%s993 + $0xb8] sm:$0xf]
          %v1041 = vld [vmem:[%s993 + $0xbc] sm:$0x1]
          %1042 = vst [vmem:[#allocation2 + $0xc] sm:$0xf] %v994
          %1043 = vst [vmem:[#allocation2 + $0x30] sm:$0xf] %v995
          %1044 = vst [vmem:[#allocation2 + $0x54] sm:$0xf] %v997
          %1045 = vst [vmem:[#allocation2 + $0x78] sm:$0xf] %v998
          %1046 = vst [vmem:[#allocation2 + $0x9c] sm:$0xf] %v1000
          %1047 = vst [vmem:[#allocation2 + $0xc0] sm:$0xf] %v1001
          %1048 = vst [vmem:[#allocation2 + $0xe4] sm:$0xf] %v1003
          %1049 = vst [vmem:[#allocation2 + $0x108] sm:$0xf] %v1004
          %1050 = vst [vmem:[#allocation2 + $0x12c] sm:$0xf] %v1006
          %1051 = vst [vmem:[#allocation2 + $0x150] sm:$0xf] %v1007
          %1052 = vst [vmem:[#allocation2 + $0x174] sm:$0xf] %v1009
          %1053 = vst [vmem:[#allocation2 + $0x198] sm:$0xf] %v1010
          %1054 = vst [vmem:[#allocation2 + $0x1bc] sm:$0xf] %v1012
          %1055 = vst [vmem:[#allocation2 + $0x1e0] sm:$0xf] %v1013
          %1056 = vst [vmem:[#allocation2 + $0x204] sm:$0xf] %v1015
          %1057 = vst [vmem:[#allocation2 + $0x228] sm:$0xf] %v1016
          %1058 = vst [vmem:[#allocation2 + $0x24c] sm:$0xf] %v1018
          %1059 = vst [vmem:[#allocation2 + $0x270] sm:$0xf] %v1019
          %1060 = vst [vmem:[#allocation2 + $0x294] sm:$0xf] %v1021
          %1061 = vst [vmem:[#allocation2 + $0x2b8] sm:$0xf] %v1022
          %1062 = vst [vmem:[#allocation2 + $0x2dc] sm:$0xf] %v1024
          %1063 = vst [vmem:[#allocation2 + $0x300] sm:$0xf] %v1025
          %1064 = vst [vmem:[#allocation2 + $0x324] sm:$0xf] %v1027
          %1065 = vst [vmem:[#allocation2 + $0x348] sm:$0xf] %v1028
          %1066 = vst [vmem:[#allocation2 + $0x36c] sm:$0xf] %v1030
          %1067 = vst [vmem:[#allocation2 + $0x390] sm:$0xf] %v1031
          %1068 = vst [vmem:[#allocation2 + $0x3b4] sm:$0xf] %v1033
          %1069 = vst [vmem:[#allocation2 + $0x3d8] sm:$0xf] %v1034
          %1070 = vst [vmem:[#allocation2 + $0x3fc] sm:$0xf] %v1036
          %1071 = vst [vmem:[#allocation2 + $0x420] sm:$0xf] %v1037
          %1072 = vst [vmem:[#allocation2 + $0x444] sm:$0xf] %v1039
          %1073 = vst [vmem:[#allocation2 + $0x468] sm:$0xf] %v1040
          %v1075 = vshrl.u32 %v994, 16
          %v1077 = vrot.slane %v1075, 4
          %v1078 = vshll.u32 %v994, 16
          %v1080 = vrot.slane %v1078, 5
          %v1081 = vor.u32 %v1077, %v1080
          %v1082 = vrot.slane %v1081, 4
          %v1084 = vshll.u32 %v995, 16
          %v1086 = vrot.slane %v1084, 5
          %v1087 = vsel %vm314, %v1082, %v1086
          %v1088 = vshrl.u32 %v995, 16
          %v1090 = vrot.slane %v1088, 4
          %v1091 = vor.u32 %v1090, %v1086
          %v1092 = vrot.slane %v1091, 4
          %v1094 = vshll.u32 %v996, 16
          %v1096 = vrot.slane %v1094, 5
          %v1097 = vsel %vm314, %v1092, %v1096
          %v1099 = vshrl.u32 %v997, 16
          %v1101 = vrot.slane %v1099, 4
          %v1102 = vshll.u32 %v997, 16
          %v1104 = vrot.slane %v1102, 5
          %v1105 = vor.u32 %v1101, %v1104
          %v1106 = vrot.slane %v1105, 4
          %v1108 = vshll.u32 %v998, 16
          %v1110 = vrot.slane %v1108, 5
          %v1111 = vsel %vm314, %v1106, %v1110
          %v1112 = vshrl.u32 %v998, 16
          %v1114 = vrot.slane %v1112, 4
          %v1115 = vor.u32 %v1114, %v1110
          %v1116 = vrot.slane %v1115, 4
          %v1118 = vshll.u32 %v999, 16
          %v1120 = vrot.slane %v1118, 5
          %v1121 = vsel %vm314, %v1116, %v1120
          %v1123 = vshrl.u32 %v1000, 16
          %v1125 = vrot.slane %v1123, 4
          %v1126 = vshll.u32 %v1000, 16
          %v1128 = vrot.slane %v1126, 5
          %v1129 = vor.u32 %v1125, %v1128
          %v1130 = vrot.slane %v1129, 4
          %v1132 = vshll.u32 %v1001, 16
          %v1134 = vrot.slane %v1132, 5
          %v1135 = vsel %vm314, %v1130, %v1134
          %v1136 = vshrl.u32 %v1001, 16
          %v1138 = vrot.slane %v1136, 4
          %v1139 = vor.u32 %v1138, %v1134
          %v1140 = vrot.slane %v1139, 4
          %v1142 = vshll.u32 %v1002, 16
          %v1144 = vrot.slane %v1142, 5
          %v1145 = vsel %vm314, %v1140, %v1144
          %v1147 = vshrl.u32 %v1003, 16
          %v1149 = vrot.slane %v1147, 4
          %v1150 = vshll.u32 %v1003, 16
          %v1152 = vrot.slane %v1150, 5
          %v1153 = vor.u32 %v1149, %v1152
          %v1154 = vrot.slane %v1153, 4
          %v1156 = vshll.u32 %v1004, 16
          %v1158 = vrot.slane %v1156, 5
          %v1159 = vsel %vm314, %v1154, %v1158
          %v1160 = vshrl.u32 %v1004, 16
          %v1162 = vrot.slane %v1160, 4
          %v1163 = vor.u32 %v1162, %v1158
          %v1164 = vrot.slane %v1163, 4
          %v1166 = vshll.u32 %v1005, 16
          %v1168 = vrot.slane %v1166, 5
          %v1169 = vsel %vm314, %v1164, %v1168
          %v1171 = vshrl.u32 %v1006, 16
          %v1173 = vrot.slane %v1171, 4
          %v1174 = vshll.u32 %v1006, 16
          %v1176 = vrot.slane %v1174, 5
          %v1177 = vor.u32 %v1173, %v1176
          %v1178 = vrot.slane %v1177, 4
          %v1180 = vshll.u32 %v1007, 16
          %v1182 = vrot.slane %v1180, 5
          %v1183 = vsel %vm314, %v1178, %v1182
          %v1184 = vshrl.u32 %v1007, 16
          %v1186 = vrot.slane %v1184, 4
          %v1187 = vor.u32 %v1186, %v1182
          %v1188 = vrot.slane %v1187, 4
          %v1190 = vshll.u32 %v1008, 16
          %v1192 = vrot.slane %v1190, 5
          %v1193 = vsel %vm314, %v1188, %v1192
          %v1195 = vshrl.u32 %v1009, 16
          %v1197 = vrot.slane %v1195, 4
          %v1198 = vshll.u32 %v1009, 16
          %v1200 = vrot.slane %v1198, 5
          %v1201 = vor.u32 %v1197, %v1200
          %v1202 = vrot.slane %v1201, 4
          %v1204 = vshll.u32 %v1010, 16
          %v1206 = vrot.slane %v1204, 5
          %v1207 = vsel %vm314, %v1202, %v1206
          %v1208 = vshrl.u32 %v1010, 16
          %v1210 = vrot.slane %v1208, 4
          %v1211 = vor.u32 %v1210, %v1206
          %v1212 = vrot.slane %v1211, 4
          %v1214 = vshll.u32 %v1011, 16
          %v1216 = vrot.slane %v1214, 5
          %v1217 = vsel %vm314, %v1212, %v1216
          %v1219 = vshrl.u32 %v1012, 16
          %v1221 = vrot.slane %v1219, 4
          %v1222 = vshll.u32 %v1012, 16
          %v1224 = vrot.slane %v1222, 5
          %v1225 = vor.u32 %v1221, %v1224
          %v1226 = vrot.slane %v1225, 4
          %v1228 = vshll.u32 %v1013, 16
          %v1230 = vrot.slane %v1228, 5
          %v1231 = vsel %vm314, %v1226, %v1230
          %v1232 = vshrl.u32 %v1013, 16
          %v1234 = vrot.slane %v1232, 4
          %v1235 = vor.u32 %v1234, %v1230
          %v1236 = vrot.slane %v1235, 4
          %v1238 = vshll.u32 %v1014, 16
          %v1240 = vrot.slane %v1238, 5
          %v1241 = vsel %vm314, %v1236, %v1240
          %v1243 = vshrl.u32 %v1015, 16
          %v1245 = vrot.slane %v1243, 4
          %v1246 = vshll.u32 %v1015, 16
          %v1248 = vrot.slane %v1246, 5
          %v1249 = vor.u32 %v1245, %v1248
          %v1250 = vrot.slane %v1249, 4
          %v1252 = vshll.u32 %v1016, 16
          %v1254 = vrot.slane %v1252, 5
          %v1255 = vsel %vm314, %v1250, %v1254
          %v1256 = vshrl.u32 %v1016, 16
          %v1258 = vrot.slane %v1256, 4
          %v1259 = vor.u32 %v1258, %v1254
          %v1260 = vrot.slane %v1259, 4
          %v1262 = vshll.u32 %v1017, 16
          %v1264 = vrot.slane %v1262, 5
          %v1265 = vsel %vm314, %v1260, %v1264
          %v1267 = vshrl.u32 %v1018, 16
          %v1269 = vrot.slane %v1267, 4
          %v1270 = vshll.u32 %v1018, 16
          %v1272 = vrot.slane %v1270, 5
          %v1273 = vor.u32 %v1269, %v1272
          %v1274 = vrot.slane %v1273, 4
          %v1276 = vshll.u32 %v1019, 16
          %v1278 = vrot.slane %v1276, 5
          %v1279 = vsel %vm314, %v1274, %v1278
          %v1280 = vshrl.u32 %v1019, 16
          %v1282 = vrot.slane %v1280, 4
          %v1283 = vor.u32 %v1282, %v1278
          %v1284 = vrot.slane %v1283, 4
          %v1286 = vshll.u32 %v1020, 16
          %v1288 = vrot.slane %v1286, 5
          %v1289 = vsel %vm314, %v1284, %v1288
          %v1291 = vshrl.u32 %v1021, 16
          %v1293 = vrot.slane %v1291, 4
          %v1294 = vshll.u32 %v1021, 16
          %v1296 = vrot.slane %v1294, 5
          %v1297 = vor.u32 %v1293, %v1296
          %v1298 = vrot.slane %v1297, 4
          %v1300 = vshll.u32 %v1022, 16
          %v1302 = vrot.slane %v1300, 5
          %v1303 = vsel %vm314, %v1298, %v1302
          %v1304 = vshrl.u32 %v1022, 16
          %v1306 = vrot.slane %v1304, 4
          %v1307 = vor.u32 %v1306, %v1302
          %v1308 = vrot.slane %v1307, 4
          %v1310 = vshll.u32 %v1023, 16
          %v1312 = vrot.slane %v1310, 5
          %v1313 = vsel %vm314, %v1308, %v1312
          %v1315 = vshrl.u32 %v1024, 16
          %v1317 = vrot.slane %v1315, 4
          %v1318 = vshll.u32 %v1024, 16
          %v1320 = vrot.slane %v1318, 5
          %v1321 = vor.u32 %v1317, %v1320
          %v1322 = vrot.slane %v1321, 4
          %v1324 = vshll.u32 %v1025, 16
          %v1326 = vrot.slane %v1324, 5
          %v1327 = vsel %vm314, %v1322, %v1326
          %v1328 = vshrl.u32 %v1025, 16
          %v1330 = vrot.slane %v1328, 4
          %v1331 = vor.u32 %v1330, %v1326
          %v1332 = vrot.slane %v1331, 4
          %v1334 = vshll.u32 %v1026, 16
          %v1336 = vrot.slane %v1334, 5
          %v1337 = vsel %vm314, %v1332, %v1336
          %v1339 = vshrl.u32 %v1027, 16
          %v1341 = vrot.slane %v1339, 4
          %v1342 = vshll.u32 %v1027, 16
          %v1344 = vrot.slane %v1342, 5
          %v1345 = vor.u32 %v1341, %v1344
          %v1346 = vrot.slane %v1345, 4
          %v1348 = vshll.u32 %v1028, 16
          %v1350 = vrot.slane %v1348, 5
          %v1351 = vsel %vm314, %v1346, %v1350
          %v1352 = vshrl.u32 %v1028, 16
          %v1354 = vrot.slane %v1352, 4
          %v1355 = vor.u32 %v1354, %v1350
          %v1356 = vrot.slane %v1355, 4
          %v1358 = vshll.u32 %v1029, 16
          %v1360 = vrot.slane %v1358, 5
          %v1361 = vsel %vm314, %v1356, %v1360
          %v1363 = vshrl.u32 %v1030, 16
          %v1365 = vrot.slane %v1363, 4
          %v1366 = vshll.u32 %v1030, 16
          %v1368 = vrot.slane %v1366, 5
          %v1369 = vor.u32 %v1365, %v1368
          %v1370 = vrot.slane %v1369, 4
          %v1372 = vshll.u32 %v1031, 16
          %v1374 = vrot.slane %v1372, 5
          %v1375 = vsel %vm314, %v1370, %v1374
          %v1376 = vshrl.u32 %v1031, 16
          %v1378 = vrot.slane %v1376, 4
          %v1379 = vor.u32 %v1378, %v1374
          %v1380 = vrot.slane %v1379, 4
          %v1382 = vshll.u32 %v1032, 16
          %v1384 = vrot.slane %v1382, 5
          %v1385 = vsel %vm314, %v1380, %v1384
          %v1387 = vshrl.u32 %v1033, 16
          %v1389 = vrot.slane %v1387, 4
          %v1390 = vshll.u32 %v1033, 16
          %v1392 = vrot.slane %v1390, 5
          %v1393 = vor.u32 %v1389, %v1392
          %v1394 = vrot.slane %v1393, 4
          %v1396 = vshll.u32 %v1034, 16
          %v1398 = vrot.slane %v1396, 5
          %v1399 = vsel %vm314, %v1394, %v1398
          %v1400 = vshrl.u32 %v1034, 16
          %v1402 = vrot.slane %v1400, 4
          %v1403 = vor.u32 %v1402, %v1398
          %v1404 = vrot.slane %v1403, 4
          %v1406 = vshll.u32 %v1035, 16
          %v1408 = vrot.slane %v1406, 5
          %v1409 = vsel %vm314, %v1404, %v1408
          %v1411 = vshrl.u32 %v1036, 16
          %v1413 = vrot.slane %v1411, 4
          %v1414 = vshll.u32 %v1036, 16
          %v1416 = vrot.slane %v1414, 5
          %v1417 = vor.u32 %v1413, %v1416
          %v1418 = vrot.slane %v1417, 4
          %v1420 = vshll.u32 %v1037, 16
          %v1422 = vrot.slane %v1420, 5
          %v1423 = vsel %vm314, %v1418, %v1422
          %v1424 = vshrl.u32 %v1037, 16
          %v1426 = vrot.slane %v1424, 4
          %v1427 = vor.u32 %v1426, %v1422
          %v1428 = vrot.slane %v1427, 4
          %v1430 = vshll.u32 %v1038, 16
          %v1432 = vrot.slane %v1430, 5
          %v1433 = vsel %vm314, %v1428, %v1432
          %v1435 = vshrl.u32 %v1039, 16
          %v1437 = vrot.slane %v1435, 4
          %v1438 = vshll.u32 %v1039, 16
          %v1440 = vrot.slane %v1438, 5
          %v1441 = vor.u32 %v1437, %v1440
          %v1442 = vrot.slane %v1441, 4
          %v1444 = vshll.u32 %v1040, 16
          %v1446 = vrot.slane %v1444, 5
          %v1447 = vsel %vm314, %v1442, %v1446
          %v1448 = vshrl.u32 %v1040, 16
          %v1450 = vrot.slane %v1448, 4
          %v1451 = vor.u32 %v1450, %v1446
          %v1452 = vrot.slane %v1451, 4
          %v1454 = vshll.u32 %v1041, 16
          %v1456 = vrot.slane %v1454, 5
          %v1457 = vsel %vm314, %v1452, %v1456
          %1490 = vst [vmem:[#allocation2 + $0x10] sm:$0xf] %v1087
          %1491 = vst [vmem:[#allocation2 + $0x34] sm:$0xf] %v1097
          %1492 = vst [vmem:[#allocation2 + $0x58] sm:$0xf] %v1111
          %1493 = vst [vmem:[#allocation2 + $0x7c] sm:$0xf] %v1121
          %1494 = vst [vmem:[#allocation2 + $0xa0] sm:$0xf] %v1135
          %1495 = vst [vmem:[#allocation2 + $0xc4] sm:$0xf] %v1145
          %1496 = vst [vmem:[#allocation2 + $0xe8] sm:$0xf] %v1159
          %1497 = vst [vmem:[#allocation2 + $0x10c] sm:$0xf] %v1169
          %1498 = vst [vmem:[#allocation2 + $0x130] sm:$0xf] %v1183
          %1499 = vst [vmem:[#allocation2 + $0x154] sm:$0xf] %v1193
          %1500 = vst [vmem:[#allocation2 + $0x178] sm:$0xf] %v1207
          %1501 = vst [vmem:[#allocation2 + $0x19c] sm:$0xf] %v1217
          %1502 = vst [vmem:[#allocation2 + $0x1c0] sm:$0xf] %v1231
          %1503 = vst [vmem:[#allocation2 + $0x1e4] sm:$0xf] %v1241
          %1504 = vst [vmem:[#allocation2 + $0x208] sm:$0xf] %v1255
          %1505 = vst [vmem:[#allocation2 + $0x22c] sm:$0xf] %v1265
          %1506 = vst [vmem:[#allocation2 + $0x250] sm:$0xf] %v1279
          %1507 = vst [vmem:[#allocation2 + $0x274] sm:$0xf] %v1289
          %1508 = vst [vmem:[#allocation2 + $0x298] sm:$0xf] %v1303
          %1509 = vst [vmem:[#allocation2 + $0x2bc] sm:$0xf] %v1313
          %1510 = vst [vmem:[#allocation2 + $0x2e0] sm:$0xf] %v1327
          %1511 = vst [vmem:[#allocation2 + $0x304] sm:$0xf] %v1337
          %1512 = vst [vmem:[#allocation2 + $0x328] sm:$0xf] %v1351
          %1513 = vst [vmem:[#allocation2 + $0x34c] sm:$0xf] %v1361
          %1514 = vst [vmem:[#allocation2 + $0x370] sm:$0xf] %v1375
          %1515 = vst [vmem:[#allocation2 + $0x394] sm:$0xf] %v1385
          %1516 = vst [vmem:[#allocation2 + $0x3b8] sm:$0xf] %v1399
          %1517 = vst [vmem:[#allocation2 + $0x3dc] sm:$0xf] %v1409
          %1518 = vst [vmem:[#allocation2 + $0x400] sm:$0xf] %v1423
          %1519 = vst [vmem:[#allocation2 + $0x424] sm:$0xf] %v1433
          %1520 = vst [vmem:[#allocation2 + $0x448] sm:$0xf] %v1447
          %1521 = vst [vmem:[#allocation2 + $0x46c] sm:$0xf] %v1457
          %v1570 = vrot.slane %v994, 5
          %v1571 = vrot.slane %v1570, 4
          %v1572 = vrot.slane %v995, 5
          %v1573 = vsel %vm813, %v1571, %v1572
          %v1574 = vrot.slane %v1572, 4
          %v1575 = vrot.slane %v996, 5
          %v1576 = vsel %vm813, %v1574, %v1575
          %v1577 = vrot.slane %v997, 5
          %v1578 = vrot.slane %v1577, 4
          %v1579 = vrot.slane %v998, 5
          %v1580 = vsel %vm813, %v1578, %v1579
          %v1581 = vrot.slane %v1579, 4
          %v1582 = vrot.slane %v999, 5
          %v1583 = vsel %vm813, %v1581, %v1582
          %v1584 = vrot.slane %v1000, 5
          %v1585 = vrot.slane %v1584, 4
          %v1586 = vrot.slane %v1001, 5
          %v1587 = vsel %vm813, %v1585, %v1586
          %v1588 = vrot.slane %v1586, 4
          %v1589 = vrot.slane %v1002, 5
          %v1590 = vsel %vm813, %v1588, %v1589
          %v1591 = vrot.slane %v1003, 5
          %v1592 = vrot.slane %v1591, 4
          %v1593 = vrot.slane %v1004, 5
          %v1594 = vsel %vm813, %v1592, %v1593
          %v1595 = vrot.slane %v1593, 4
          %v1596 = vrot.slane %v1005, 5
          %v1597 = vsel %vm813, %v1595, %v1596
          %v1598 = vrot.slane %v1006, 5
          %v1599 = vrot.slane %v1598, 4
          %v1600 = vrot.slane %v1007, 5
          %v1601 = vsel %vm813, %v1599, %v1600
          %v1602 = vrot.slane %v1600, 4
          %v1603 = vrot.slane %v1008, 5
          %v1604 = vsel %vm813, %v1602, %v1603
          %v1605 = vrot.slane %v1009, 5
          %v1606 = vrot.slane %v1605, 4
          %v1607 = vrot.slane %v1010, 5
          %v1608 = vsel %vm813, %v1606, %v1607
          %v1609 = vrot.slane %v1607, 4
          %v1610 = vrot.slane %v1011, 5
          %v1611 = vsel %vm813, %v1609, %v1610
          %v1612 = vrot.slane %v1012, 5
          %v1613 = vrot.slane %v1612, 4
          %v1614 = vrot.slane %v1013, 5
          %v1615 = vsel %vm813, %v1613, %v1614
          %v1616 = vrot.slane %v1614, 4
          %v1617 = vrot.slane %v1014, 5
          %v1618 = vsel %vm813, %v1616, %v1617
          %v1619 = vrot.slane %v1015, 5
          %v1620 = vrot.slane %v1619, 4
          %v1621 = vrot.slane %v1016, 5
          %v1622 = vsel %vm813, %v1620, %v1621
          %v1623 = vrot.slane %v1621, 4
          %v1624 = vrot.slane %v1017, 5
          %v1625 = vsel %vm813, %v1623, %v1624
          %v1626 = vrot.slane %v1018, 5
          %v1627 = vrot.slane %v1626, 4
          %v1628 = vrot.slane %v1019, 5
          %v1629 = vsel %vm813, %v1627, %v1628
          %v1630 = vrot.slane %v1628, 4
          %v1631 = vrot.slane %v1020, 5
          %v1632 = vsel %vm813, %v1630, %v1631
          %v1633 = vrot.slane %v1021, 5
          %v1634 = vrot.slane %v1633, 4
          %v1635 = vrot.slane %v1022, 5
          %v1636 = vsel %vm813, %v1634, %v1635
          %v1637 = vrot.slane %v1635, 4
          %v1638 = vrot.slane %v1023, 5
          %v1639 = vsel %vm813, %v1637, %v1638
          %v1640 = vrot.slane %v1024, 5
          %v1641 = vrot.slane %v1640, 4
          %v1642 = vrot.slane %v1025, 5
          %v1643 = vsel %vm813, %v1641, %v1642
          %v1644 = vrot.slane %v1642, 4
          %v1645 = vrot.slane %v1026, 5
          %v1646 = vsel %vm813, %v1644, %v1645
          %v1647 = vrot.slane %v1027, 5
          %v1648 = vrot.slane %v1647, 4
          %v1649 = vrot.slane %v1028, 5
          %v1650 = vsel %vm813, %v1648, %v1649
          %v1651 = vrot.slane %v1649, 4
          %v1652 = vrot.slane %v1029, 5
          %v1653 = vsel %vm813, %v1651, %v1652
          %v1654 = vrot.slane %v1030, 5
          %v1655 = vrot.slane %v1654, 4
          %v1656 = vrot.slane %v1031, 5
          %v1657 = vsel %vm813, %v1655, %v1656
          %v1658 = vrot.slane %v1656, 4
          %v1659 = vrot.slane %v1032, 5
          %v1660 = vsel %vm813, %v1658, %v1659
          %v1661 = vrot.slane %v1033, 5
          %v1662 = vrot.slane %v1661, 4
          %v1663 = vrot.slane %v1034, 5
          %v1664 = vsel %vm813, %v1662, %v1663
          %v1665 = vrot.slane %v1663, 4
          %v1666 = vrot.slane %v1035, 5
          %v1667 = vsel %vm813, %v1665, %v1666
          %v1668 = vrot.slane %v1036, 5
          %v1669 = vrot.slane %v1668, 4
          %v1670 = vrot.slane %v1037, 5
          %v1671 = vsel %vm813, %v1669, %v1670
          %v1672 = vrot.slane %v1670, 4
          %v1673 = vrot.slane %v1038, 5
          %v1674 = vsel %vm813, %v1672, %v1673
          %v1675 = vrot.slane %v1039, 5
          %v1676 = vrot.slane %v1675, 4
          %v1677 = vrot.slane %v1040, 5
          %v1678 = vsel %vm813, %v1676, %v1677
          %v1679 = vrot.slane %v1677, 4
          %v1680 = vrot.slane %v1041, 5
          %v1681 = vsel %vm813, %v1679, %v1680
          %1714 = vst [vmem:[#allocation2 + $0x14] sm:$0xf] %v1573
          %1715 = vst [vmem:[#allocation2 + $0x38] sm:$0xf] %v1576
          %1716 = vst [vmem:[#allocation2 + $0x5c] sm:$0xf] %v1580
          %1717 = vst [vmem:[#allocation2 + $0x80] sm:$0xf] %v1583
          %1718 = vst [vmem:[#allocation2 + $0xa4] sm:$0xf] %v1587
          %1719 = vst [vmem:[#allocation2 + $0xc8] sm:$0xf] %v1590
          %1720 = vst [vmem:[#allocation2 + $0xec] sm:$0xf] %v1594
          %1721 = vst [vmem:[#allocation2 + $0x110] sm:$0xf] %v1597
          %1722 = vst [vmem:[#allocation2 + $0x134] sm:$0xf] %v1601
          %1723 = vst [vmem:[#allocation2 + $0x158] sm:$0xf] %v1604
          %1724 = vst [vmem:[#allocation2 + $0x17c] sm:$0xf] %v1608
          %1725 = vst [vmem:[#allocation2 + $0x1a0] sm:$0xf] %v1611
          %1726 = vst [vmem:[#allocation2 + $0x1c4] sm:$0xf] %v1615
          %1727 = vst [vmem:[#allocation2 + $0x1e8] sm:$0xf] %v1618
          %1728 = vst [vmem:[#allocation2 + $0x20c] sm:$0xf] %v1622
          %1729 = vst [vmem:[#allocation2 + $0x230] sm:$0xf] %v1625
          %1730 = vst [vmem:[#allocation2 + $0x254] sm:$0xf] %v1629
          %1731 = vst [vmem:[#allocation2 + $0x278] sm:$0xf] %v1632
          %1732 = vst [vmem:[#allocation2 + $0x29c] sm:$0xf] %v1636
          %1733 = vst [vmem:[#allocation2 + $0x2c0] sm:$0xf] %v1639
          %1734 = vst [vmem:[#allocation2 + $0x2e4] sm:$0xf] %v1643
          %1735 = vst [vmem:[#allocation2 + $0x308] sm:$0xf] %v1646
          %1736 = vst [vmem:[#allocation2 + $0x32c] sm:$0xf] %v1650
          %1737 = vst [vmem:[#allocation2 + $0x350] sm:$0xf] %v1653
          %1738 = vst [vmem:[#allocation2 + $0x374] sm:$0xf] %v1657
          %1739 = vst [vmem:[#allocation2 + $0x398] sm:$0xf] %v1660
          %1740 = vst [vmem:[#allocation2 + $0x3bc] sm:$0xf] %v1664
          %1741 = vst [vmem:[#allocation2 + $0x3e0] sm:$0xf] %v1667
          %1742 = vst [vmem:[#allocation2 + $0x404] sm:$0xf] %v1671
          %1743 = vst [vmem:[#allocation2 + $0x428] sm:$0xf] %v1674
          %1744 = vst [vmem:[#allocation2 + $0x44c] sm:$0xf] %v1678
          %1745 = vst [vmem:[#allocation2 + $0x470] sm:$0xf] %v1681
          %s1746 = sadd.s32 %s228, 2
          %s1747 = smul.u32 %s1746, 3
          %s1748 = smul.addr %s1747, 4
          %s1749 = scalar_lea.vmem %s215, %s1748
          %v1750 = vld [vmem:[%s1749] sm:$0xf]
          %v1751 = vld [vmem:[%s1749 + $0x4] sm:$0xf]
          %v1752 = vld [vmem:[%s1749 + $0x8] sm:$0x1]
          %v1753 = vld [vmem:[%s1749 + $0xc] sm:$0xf]
          %v1754 = vld [vmem:[%s1749 + $0x10] sm:$0xf]
          %v1755 = vld [vmem:[%s1749 + $0x14] sm:$0x1]
          %v1756 = vld [vmem:[%s1749 + $0x18] sm:$0xf]
          %v1757 = vld [vmem:[%s1749 + $0x1c] sm:$0xf]
          %v1758 = vld [vmem:[%s1749 + $0x20] sm:$0x1]
          %v1759 = vld [vmem:[%s1749 + $0x24] sm:$0xf]
          %v1760 = vld [vmem:[%s1749 + $0x28] sm:$0xf]
          %v1761 = vld [vmem:[%s1749 + $0x2c] sm:$0x1]
          %v1762 = vld [vmem:[%s1749 + $0x30] sm:$0xf]
          %v1763 = vld [vmem:[%s1749 + $0x34] sm:$0xf]
          %v1764 = vld [vmem:[%s1749 + $0x38] sm:$0x1]
          %v1765 = vld [vmem:[%s1749 + $0x3c] sm:$0xf]
          %v1766 = vld [vmem:[%s1749 + $0x40] sm:$0xf]
          %v1767 = vld [vmem:[%s1749 + $0x44] sm:$0x1]
          %v1768 = vld [vmem:[%s1749 + $0x48] sm:$0xf]
          %v1769 = vld [vmem:[%s1749 + $0x4c] sm:$0xf]
          %v1770 = vld [vmem:[%s1749 + $0x50] sm:$0x1]
          %v1771 = vld [vmem:[%s1749 + $0x54] sm:$0xf]
          %v1772 = vld [vmem:[%s1749 + $0x58] sm:$0xf]
          %v1773 = vld [vmem:[%s1749 + $0x5c] sm:$0x1]
          %v1774 = vld [vmem:[%s1749 + $0x60] sm:$0xf]
          %v1775 = vld [vmem:[%s1749 + $0x64] sm:$0xf]
          %v1776 = vld [vmem:[%s1749 + $0x68] sm:$0x1]
          %v1777 = vld [vmem:[%s1749 + $0x6c] sm:$0xf]
          %v1778 = vld [vmem:[%s1749 + $0x70] sm:$0xf]
          %v1779 = vld [vmem:[%s1749 + $0x74] sm:$0x1]
          %v1780 = vld [vmem:[%s1749 + $0x78] sm:$0xf]
          %v1781 = vld [vmem:[%s1749 + $0x7c] sm:$0xf]
          %v1782 = vld [vmem:[%s1749 + $0x80] sm:$0x1]
          %v1783 = vld [vmem:[%s1749 + $0x84] sm:$0xf]
          %v1784 = vld [vmem:[%s1749 + $0x88] sm:$0xf]
          %v1785 = vld [vmem:[%s1749 + $0x8c] sm:$0x1]
          %v1786 = vld [vmem:[%s1749 + $0x90] sm:$0xf]
          %v1787 = vld [vmem:[%s1749 + $0x94] sm:$0xf]
          %v1788 = vld [vmem:[%s1749 + $0x98] sm:$0x1]
          %v1789 = vld [vmem:[%s1749 + $0x9c] sm:$0xf]
          %v1790 = vld [vmem:[%s1749 + $0xa0] sm:$0xf]
          %v1791 = vld [vmem:[%s1749 + $0xa4] sm:$0x1]
          %v1792 = vld [vmem:[%s1749 + $0xa8] sm:$0xf]
          %v1793 = vld [vmem:[%s1749 + $0xac] sm:$0xf]
          %v1794 = vld [vmem:[%s1749 + $0xb0] sm:$0x1]
          %v1795 = vld [vmem:[%s1749 + $0xb4] sm:$0xf]
          %v1796 = vld [vmem:[%s1749 + $0xb8] sm:$0xf]
          %v1797 = vld [vmem:[%s1749 + $0xbc] sm:$0x1]
          %1798 = vst [vmem:[#allocation2 + $0x18] sm:$0xf] %v1750
          %1799 = vst [vmem:[#allocation2 + $0x3c] sm:$0xf] %v1751
          %1800 = vst [vmem:[#allocation2 + $0x60] sm:$0xf] %v1753
          %1801 = vst [vmem:[#allocation2 + $0x84] sm:$0xf] %v1754
          %1802 = vst [vmem:[#allocation2 + $0xa8] sm:$0xf] %v1756
          %1803 = vst [vmem:[#allocation2 + $0xcc] sm:$0xf] %v1757
          %1804 = vst [vmem:[#allocation2 + $0xf0] sm:$0xf] %v1759
          %1805 = vst [vmem:[#allocation2 + $0x114] sm:$0xf] %v1760
          %1806 = vst [vmem:[#allocation2 + $0x138] sm:$0xf] %v1762
          %1807 = vst [vmem:[#allocation2 + $0x15c] sm:$0xf] %v1763
          %1808 = vst [vmem:[#allocation2 + $0x180] sm:$0xf] %v1765
          %1809 = vst [vmem:[#allocation2 + $0x1a4] sm:$0xf] %v1766
          %1810 = vst [vmem:[#allocation2 + $0x1c8] sm:$0xf] %v1768
          %1811 = vst [vmem:[#allocation2 + $0x1ec] sm:$0xf] %v1769
          %1812 = vst [vmem:[#allocation2 + $0x210] sm:$0xf] %v1771
          %1813 = vst [vmem:[#allocation2 + $0x234] sm:$0xf] %v1772
          %1814 = vst [vmem:[#allocation2 + $0x258] sm:$0xf] %v1774
          %1815 = vst [vmem:[#allocation2 + $0x27c] sm:$0xf] %v1775
          %1816 = vst [vmem:[#allocation2 + $0x2a0] sm:$0xf] %v1777
          %1817 = vst [vmem:[#allocation2 + $0x2c4] sm:$0xf] %v1778
          %1818 = vst [vmem:[#allocation2 + $0x2e8] sm:$0xf] %v1780
          %1819 = vst [vmem:[#allocation2 + $0x30c] sm:$0xf] %v1781
          %1820 = vst [vmem:[#allocation2 + $0x330] sm:$0xf] %v1783
          %1821 = vst [vmem:[#allocation2 + $0x354] sm:$0xf] %v1784
          %1822 = vst [vmem:[#allocation2 + $0x378] sm:$0xf] %v1786
          %1823 = vst [vmem:[#allocation2 + $0x39c] sm:$0xf] %v1787
          %1824 = vst [vmem:[#allocation2 + $0x3c0] sm:$0xf] %v1789
          %1825 = vst [vmem:[#allocation2 + $0x3e4] sm:$0xf] %v1790
          %1826 = vst [vmem:[#allocation2 + $0x408] sm:$0xf] %v1792
          %1827 = vst [vmem:[#allocation2 + $0x42c] sm:$0xf] %v1793
          %1828 = vst [vmem:[#allocation2 + $0x450] sm:$0xf] %v1795
          %1829 = vst [vmem:[#allocation2 + $0x474] sm:$0xf] %v1796
          %v1831 = vshrl.u32 %v1750, 16
          %v1833 = vrot.slane %v1831, 4
          %v1834 = vshll.u32 %v1750, 16
          %v1836 = vrot.slane %v1834, 5
          %v1837 = vor.u32 %v1833, %v1836
          %v1838 = vrot.slane %v1837, 4
          %v1840 = vshll.u32 %v1751, 16
          %v1842 = vrot.slane %v1840, 5
          %v1843 = vsel %vm314, %v1838, %v1842
          %v1844 = vshrl.u32 %v1751, 16
          %v1846 = vrot.slane %v1844, 4
          %v1847 = vor.u32 %v1846, %v1842
          %v1848 = vrot.slane %v1847, 4
          %v1850 = vshll.u32 %v1752, 16
          %v1852 = vrot.slane %v1850, 5
          %v1853 = vsel %vm314, %v1848, %v1852
          %v1855 = vshrl.u32 %v1753, 16
          %v1857 = vrot.slane %v1855, 4
          %v1858 = vshll.u32 %v1753, 16
          %v1860 = vrot.slane %v1858, 5
          %v1861 = vor.u32 %v1857, %v1860
          %v1862 = vrot.slane %v1861, 4
          %v1864 = vshll.u32 %v1754, 16
          %v1866 = vrot.slane %v1864, 5
          %v1867 = vsel %vm314, %v1862, %v1866
          %v1868 = vshrl.u32 %v1754, 16
          %v1870 = vrot.slane %v1868, 4
          %v1871 = vor.u32 %v1870, %v1866
          %v1872 = vrot.slane %v1871, 4
          %v1874 = vshll.u32 %v1755, 16
          %v1876 = vrot.slane %v1874, 5
          %v1877 = vsel %vm314, %v1872, %v1876
          %v1879 = vshrl.u32 %v1756, 16
          %v1881 = vrot.slane %v1879, 4
          %v1882 = vshll.u32 %v1756, 16
          %v1884 = vrot.slane %v1882, 5
          %v1885 = vor.u32 %v1881, %v1884
          %v1886 = vrot.slane %v1885, 4
          %v1888 = vshll.u32 %v1757, 16
          %v1890 = vrot.slane %v1888, 5
          %v1891 = vsel %vm314, %v1886, %v1890
          %v1892 = vshrl.u32 %v1757, 16
          %v1894 = vrot.slane %v1892, 4
          %v1895 = vor.u32 %v1894, %v1890
          %v1896 = vrot.slane %v1895, 4
          %v1898 = vshll.u32 %v1758, 16
          %v1900 = vrot.slane %v1898, 5
          %v1901 = vsel %vm314, %v1896, %v1900
          %v1903 = vshrl.u32 %v1759, 16
          %v1905 = vrot.slane %v1903, 4
          %v1906 = vshll.u32 %v1759, 16
          %v1908 = vrot.slane %v1906, 5
          %v1909 = vor.u32 %v1905, %v1908
          %v1910 = vrot.slane %v1909, 4
          %v1912 = vshll.u32 %v1760, 16
          %v1914 = vrot.slane %v1912, 5
          %v1915 = vsel %vm314, %v1910, %v1914
          %v1916 = vshrl.u32 %v1760, 16
          %v1918 = vrot.slane %v1916, 4
          %v1919 = vor.u32 %v1918, %v1914
          %v1920 = vrot.slane %v1919, 4
          %v1922 = vshll.u32 %v1761, 16
          %v1924 = vrot.slane %v1922, 5
          %v1925 = vsel %vm314, %v1920, %v1924
          %v1927 = vshrl.u32 %v1762, 16
          %v1929 = vrot.slane %v1927, 4
          %v1930 = vshll.u32 %v1762, 16
          %v1932 = vrot.slane %v1930, 5
          %v1933 = vor.u32 %v1929, %v1932
          %v1934 = vrot.slane %v1933, 4
          %v1936 = vshll.u32 %v1763, 16
          %v1938 = vrot.slane %v1936, 5
          %v1939 = vsel %vm314, %v1934, %v1938
          %v1940 = vshrl.u32 %v1763, 16
          %v1942 = vrot.slane %v1940, 4
          %v1943 = vor.u32 %v1942, %v1938
          %v1944 = vrot.slane %v1943, 4
          %v1946 = vshll.u32 %v1764, 16
          %v1948 = vrot.slane %v1946, 5
          %v1949 = vsel %vm314, %v1944, %v1948
          %v1951 = vshrl.u32 %v1765, 16
          %v1953 = vrot.slane %v1951, 4
          %v1954 = vshll.u32 %v1765, 16
          %v1956 = vrot.slane %v1954, 5
          %v1957 = vor.u32 %v1953, %v1956
          %v1958 = vrot.slane %v1957, 4
          %v1960 = vshll.u32 %v1766, 16
          %v1962 = vrot.slane %v1960, 5
          %v1963 = vsel %vm314, %v1958, %v1962
          %v1964 = vshrl.u32 %v1766, 16
          %v1966 = vrot.slane %v1964, 4
          %v1967 = vor.u32 %v1966, %v1962
          %v1968 = vrot.slane %v1967, 4
          %v1970 = vshll.u32 %v1767, 16
          %v1972 = vrot.slane %v1970, 5
          %v1973 = vsel %vm314, %v1968, %v1972
          %v1975 = vshrl.u32 %v1768, 16
          %v1977 = vrot.slane %v1975, 4
          %v1978 = vshll.u32 %v1768, 16
          %v1980 = vrot.slane %v1978, 5
          %v1981 = vor.u32 %v1977, %v1980
          %v1982 = vrot.slane %v1981, 4
          %v1984 = vshll.u32 %v1769, 16
          %v1986 = vrot.slane %v1984, 5
          %v1987 = vsel %vm314, %v1982, %v1986
          %v1988 = vshrl.u32 %v1769, 16
          %v1990 = vrot.slane %v1988, 4
          %v1991 = vor.u32 %v1990, %v1986
          %v1992 = vrot.slane %v1991, 4
          %v1994 = vshll.u32 %v1770, 16
          %v1996 = vrot.slane %v1994, 5
          %v1997 = vsel %vm314, %v1992, %v1996
          %v1999 = vshrl.u32 %v1771, 16
          %v2001 = vrot.slane %v1999, 4
          %v2002 = vshll.u32 %v1771, 16
          %v2004 = vrot.slane %v2002, 5
          %v2005 = vor.u32 %v2001, %v2004
          %v2006 = vrot.slane %v2005, 4
          %v2008 = vshll.u32 %v1772, 16
          %v2010 = vrot.slane %v2008, 5
          %v2011 = vsel %vm314, %v2006, %v2010
          %v2012 = vshrl.u32 %v1772, 16
          %v2014 = vrot.slane %v2012, 4
          %v2015 = vor.u32 %v2014, %v2010
          %v2016 = vrot.slane %v2015, 4
          %v2018 = vshll.u32 %v1773, 16
          %v2020 = vrot.slane %v2018, 5
          %v2021 = vsel %vm314, %v2016, %v2020
          %v2023 = vshrl.u32 %v1774, 16
          %v2025 = vrot.slane %v2023, 4
          %v2026 = vshll.u32 %v1774, 16
          %v2028 = vrot.slane %v2026, 5
          %v2029 = vor.u32 %v2025, %v2028
          %v2030 = vrot.slane %v2029, 4
          %v2032 = vshll.u32 %v1775, 16
          %v2034 = vrot.slane %v2032, 5
          %v2035 = vsel %vm314, %v2030, %v2034
          %v2036 = vshrl.u32 %v1775, 16
          %v2038 = vrot.slane %v2036, 4
          %v2039 = vor.u32 %v2038, %v2034
          %v2040 = vrot.slane %v2039, 4
          %v2042 = vshll.u32 %v1776, 16
          %v2044 = vrot.slane %v2042, 5
          %v2045 = vsel %vm314, %v2040, %v2044
          %v2047 = vshrl.u32 %v1777, 16
          %v2049 = vrot.slane %v2047, 4
          %v2050 = vshll.u32 %v1777, 16
          %v2052 = vrot.slane %v2050, 5
          %v2053 = vor.u32 %v2049, %v2052
          %v2054 = vrot.slane %v2053, 4
          %v2056 = vshll.u32 %v1778, 16
          %v2058 = vrot.slane %v2056, 5
          %v2059 = vsel %vm314, %v2054, %v2058
          %v2060 = vshrl.u32 %v1778, 16
          %v2062 = vrot.slane %v2060, 4
          %v2063 = vor.u32 %v2062, %v2058
          %v2064 = vrot.slane %v2063, 4
          %v2066 = vshll.u32 %v1779, 16
          %v2068 = vrot.slane %v2066, 5
          %v2069 = vsel %vm314, %v2064, %v2068
          %v2071 = vshrl.u32 %v1780, 16
          %v2073 = vrot.slane %v2071, 4
          %v2074 = vshll.u32 %v1780, 16
          %v2076 = vrot.slane %v2074, 5
          %v2077 = vor.u32 %v2073, %v2076
          %v2078 = vrot.slane %v2077, 4
          %v2080 = vshll.u32 %v1781, 16
          %v2082 = vrot.slane %v2080, 5
          %v2083 = vsel %vm314, %v2078, %v2082
          %v2084 = vshrl.u32 %v1781, 16
          %v2086 = vrot.slane %v2084, 4
          %v2087 = vor.u32 %v2086, %v2082
          %v2088 = vrot.slane %v2087, 4
          %v2090 = vshll.u32 %v1782, 16
          %v2092 = vrot.slane %v2090, 5
          %v2093 = vsel %vm314, %v2088, %v2092
          %v2095 = vshrl.u32 %v1783, 16
          %v2097 = vrot.slane %v2095, 4
          %v2098 = vshll.u32 %v1783, 16
          %v2100 = vrot.slane %v2098, 5
          %v2101 = vor.u32 %v2097, %v2100
          %v2102 = vrot.slane %v2101, 4
          %v2104 = vshll.u32 %v1784, 16
          %v2106 = vrot.slane %v2104, 5
          %v2107 = vsel %vm314, %v2102, %v2106
          %v2108 = vshrl.u32 %v1784, 16
          %v2110 = vrot.slane %v2108, 4
          %v2111 = vor.u32 %v2110, %v2106
          %v2112 = vrot.slane %v2111, 4
          %v2114 = vshll.u32 %v1785, 16
          %v2116 = vrot.slane %v2114, 5
          %v2117 = vsel %vm314, %v2112, %v2116
          %v2119 = vshrl.u32 %v1786, 16
          %v2121 = vrot.slane %v2119, 4
          %v2122 = vshll.u32 %v1786, 16
          %v2124 = vrot.slane %v2122, 5
          %v2125 = vor.u32 %v2121, %v2124
          %v2126 = vrot.slane %v2125, 4
          %v2128 = vshll.u32 %v1787, 16
          %v2130 = vrot.slane %v2128, 5
          %v2131 = vsel %vm314, %v2126, %v2130
          %v2132 = vshrl.u32 %v1787, 16
          %v2134 = vrot.slane %v2132, 4
          %v2135 = vor.u32 %v2134, %v2130
          %v2136 = vrot.slane %v2135, 4
          %v2138 = vshll.u32 %v1788, 16
          %v2140 = vrot.slane %v2138, 5
          %v2141 = vsel %vm314, %v2136, %v2140
          %v2143 = vshrl.u32 %v1789, 16
          %v2145 = vrot.slane %v2143, 4
          %v2146 = vshll.u32 %v1789, 16
          %v2148 = vrot.slane %v2146, 5
          %v2149 = vor.u32 %v2145, %v2148
          %v2150 = vrot.slane %v2149, 4
          %v2152 = vshll.u32 %v1790, 16
          %v2154 = vrot.slane %v2152, 5
          %v2155 = vsel %vm314, %v2150, %v2154
          %v2156 = vshrl.u32 %v1790, 16
          %v2158 = vrot.slane %v2156, 4
          %v2159 = vor.u32 %v2158, %v2154
          %v2160 = vrot.slane %v2159, 4
          %v2162 = vshll.u32 %v1791, 16
          %v2164 = vrot.slane %v2162, 5
          %v2165 = vsel %vm314, %v2160, %v2164
          %v2167 = vshrl.u32 %v1792, 16
          %v2169 = vrot.slane %v2167, 4
          %v2170 = vshll.u32 %v1792, 16
          %v2172 = vrot.slane %v2170, 5
          %v2173 = vor.u32 %v2169, %v2172
          %v2174 = vrot.slane %v2173, 4
          %v2176 = vshll.u32 %v1793, 16
          %v2178 = vrot.slane %v2176, 5
          %v2179 = vsel %vm314, %v2174, %v2178
          %v2180 = vshrl.u32 %v1793, 16
          %v2182 = vrot.slane %v2180, 4
          %v2183 = vor.u32 %v2182, %v2178
          %v2184 = vrot.slane %v2183, 4
          %v2186 = vshll.u32 %v1794, 16
          %v2188 = vrot.slane %v2186, 5
          %v2189 = vsel %vm314, %v2184, %v2188
          %v2191 = vshrl.u32 %v1795, 16
          %v2193 = vrot.slane %v2191, 4
          %v2194 = vshll.u32 %v1795, 16
          %v2196 = vrot.slane %v2194, 5
          %v2197 = vor.u32 %v2193, %v2196
          %v2198 = vrot.slane %v2197, 4
          %v2200 = vshll.u32 %v1796, 16
          %v2202 = vrot.slane %v2200, 5
          %v2203 = vsel %vm314, %v2198, %v2202
          %v2204 = vshrl.u32 %v1796, 16
          %v2206 = vrot.slane %v2204, 4
          %v2207 = vor.u32 %v2206, %v2202
          %v2208 = vrot.slane %v2207, 4
          %v2210 = vshll.u32 %v1797, 16
          %v2212 = vrot.slane %v2210, 5
          %v2213 = vsel %vm314, %v2208, %v2212
          %2246 = vst [vmem:[#allocation2 + $0x1c] sm:$0xf] %v1843
          %2247 = vst [vmem:[#allocation2 + $0x40] sm:$0xf] %v1853
          %2248 = vst [vmem:[#allocation2 + $0x64] sm:$0xf] %v1867
          %2249 = vst [vmem:[#allocation2 + $0x88] sm:$0xf] %v1877
          %2250 = vst [vmem:[#allocation2 + $0xac] sm:$0xf] %v1891
          %2251 = vst [vmem:[#allocation2 + $0xd0] sm:$0xf] %v1901
          %2252 = vst [vmem:[#allocation2 + $0xf4] sm:$0xf] %v1915
          %2253 = vst [vmem:[#allocation2 + $0x118] sm:$0xf] %v1925
          %2254 = vst [vmem:[#allocation2 + $0x13c] sm:$0xf] %v1939
          %2255 = vst [vmem:[#allocation2 + $0x160] sm:$0xf] %v1949
          %2256 = vst [vmem:[#allocation2 + $0x184] sm:$0xf] %v1963
          %2257 = vst [vmem:[#allocation2 + $0x1a8] sm:$0xf] %v1973
          %2258 = vst [vmem:[#allocation2 + $0x1cc] sm:$0xf] %v1987
          %2259 = vst [vmem:[#allocation2 + $0x1f0] sm:$0xf] %v1997
          %2260 = vst [vmem:[#allocation2 + $0x214] sm:$0xf] %v2011
          %2261 = vst [vmem:[#allocation2 + $0x238] sm:$0xf] %v2021
          %2262 = vst [vmem:[#allocation2 + $0x25c] sm:$0xf] %v2035
          %2263 = vst [vmem:[#allocation2 + $0x280] sm:$0xf] %v2045
          %2264 = vst [vmem:[#allocation2 + $0x2a4] sm:$0xf] %v2059
          %2265 = vst [vmem:[#allocation2 + $0x2c8] sm:$0xf] %v2069
          %2266 = vst [vmem:[#allocation2 + $0x2ec] sm:$0xf] %v2083
          %2267 = vst [vmem:[#allocation2 + $0x310] sm:$0xf] %v2093
          %2268 = vst [vmem:[#allocation2 + $0x334] sm:$0xf] %v2107
          %2269 = vst [vmem:[#allocation2 + $0x358] sm:$0xf] %v2117
          %2270 = vst [vmem:[#allocation2 + $0x37c] sm:$0xf] %v2131
          %2271 = vst [vmem:[#allocation2 + $0x3a0] sm:$0xf] %v2141
          %2272 = vst [vmem:[#allocation2 + $0x3c4] sm:$0xf] %v2155
          %2273 = vst [vmem:[#allocation2 + $0x3e8] sm:$0xf] %v2165
          %2274 = vst [vmem:[#allocation2 + $0x40c] sm:$0xf] %v2179
          %2275 = vst [vmem:[#allocation2 + $0x430] sm:$0xf] %v2189
          %2276 = vst [vmem:[#allocation2 + $0x454] sm:$0xf] %v2203
          %2277 = vst [vmem:[#allocation2 + $0x478] sm:$0xf] %v2213
          %v2326 = vrot.slane %v1750, 5
          %v2327 = vrot.slane %v2326, 4
          %v2328 = vrot.slane %v1751, 5
          %v2329 = vsel %vm813, %v2327, %v2328
          %v2330 = vrot.slane %v2328, 4
          %v2331 = vrot.slane %v1752, 5
          %v2332 = vsel %vm813, %v2330, %v2331
          %v2333 = vrot.slane %v1753, 5
          %v2334 = vrot.slane %v2333, 4
          %v2335 = vrot.slane %v1754, 5
          %v2336 = vsel %vm813, %v2334, %v2335
          %v2337 = vrot.slane %v2335, 4
          %v2338 = vrot.slane %v1755, 5
          %v2339 = vsel %vm813, %v2337, %v2338
          %v2340 = vrot.slane %v1756, 5
          %v2341 = vrot.slane %v2340, 4
          %v2342 = vrot.slane %v1757, 5
          %v2343 = vsel %vm813, %v2341, %v2342
          %v2344 = vrot.slane %v2342, 4
          %v2345 = vrot.slane %v1758, 5
          %v2346 = vsel %vm813, %v2344, %v2345
          %v2347 = vrot.slane %v1759, 5
          %v2348 = vrot.slane %v2347, 4
          %v2349 = vrot.slane %v1760, 5
          %v2350 = vsel %vm813, %v2348, %v2349
          %v2351 = vrot.slane %v2349, 4
          %v2352 = vrot.slane %v1761, 5
          %v2353 = vsel %vm813, %v2351, %v2352
          %v2354 = vrot.slane %v1762, 5
          %v2355 = vrot.slane %v2354, 4
          %v2356 = vrot.slane %v1763, 5
          %v2357 = vsel %vm813, %v2355, %v2356
          %v2358 = vrot.slane %v2356, 4
          %v2359 = vrot.slane %v1764, 5
          %v2360 = vsel %vm813, %v2358, %v2359
          %v2361 = vrot.slane %v1765, 5
          %v2362 = vrot.slane %v2361, 4
          %v2363 = vrot.slane %v1766, 5
          %v2364 = vsel %vm813, %v2362, %v2363
          %v2365 = vrot.slane %v2363, 4
          %v2366 = vrot.slane %v1767, 5
          %v2367 = vsel %vm813, %v2365, %v2366
          %v2368 = vrot.slane %v1768, 5
          %v2369 = vrot.slane %v2368, 4
          %v2370 = vrot.slane %v1769, 5
          %v2371 = vsel %vm813, %v2369, %v2370
          %v2372 = vrot.slane %v2370, 4
          %v2373 = vrot.slane %v1770, 5
          %v2374 = vsel %vm813, %v2372, %v2373
          %v2375 = vrot.slane %v1771, 5
          %v2376 = vrot.slane %v2375, 4
          %v2377 = vrot.slane %v1772, 5
          %v2378 = vsel %vm813, %v2376, %v2377
          %v2379 = vrot.slane %v2377, 4
          %v2380 = vrot.slane %v1773, 5
          %v2381 = vsel %vm813, %v2379, %v2380
          %v2382 = vrot.slane %v1774, 5
          %v2383 = vrot.slane %v2382, 4
          %v2384 = vrot.slane %v1775, 5
          %v2385 = vsel %vm813, %v2383, %v2384
          %v2386 = vrot.slane %v2384, 4
          %v2387 = vrot.slane %v1776, 5
          %v2388 = vsel %vm813, %v2386, %v2387
          %v2389 = vrot.slane %v1777, 5
          %v2390 = vrot.slane %v2389, 4
          %v2391 = vrot.slane %v1778, 5
          %v2392 = vsel %vm813, %v2390, %v2391
          %v2393 = vrot.slane %v2391, 4
          %v2394 = vrot.slane %v1779, 5
          %v2395 = vsel %vm813, %v2393, %v2394
          %v2396 = vrot.slane %v1780, 5
          %v2397 = vrot.slane %v2396, 4
          %v2398 = vrot.slane %v1781, 5
          %v2399 = vsel %vm813, %v2397, %v2398
          %v2400 = vrot.slane %v2398, 4
          %v2401 = vrot.slane %v1782, 5
          %v2402 = vsel %vm813, %v2400, %v2401
          %v2403 = vrot.slane %v1783, 5
          %v2404 = vrot.slane %v2403, 4
          %v2405 = vrot.slane %v1784, 5
          %v2406 = vsel %vm813, %v2404, %v2405
          %v2407 = vrot.slane %v2405, 4
          %v2408 = vrot.slane %v1785, 5
          %v2409 = vsel %vm813, %v2407, %v2408
          %v2410 = vrot.slane %v1786, 5
          %v2411 = vrot.slane %v2410, 4
          %v2412 = vrot.slane %v1787, 5
          %v2413 = vsel %vm813, %v2411, %v2412
          %v2414 = vrot.slane %v2412, 4
          %v2415 = vrot.slane %v1788, 5
          %v2416 = vsel %vm813, %v2414, %v2415
          %v2417 = vrot.slane %v1789, 5
          %v2418 = vrot.slane %v2417, 4
          %v2419 = vrot.slane %v1790, 5
          %v2420 = vsel %vm813, %v2418, %v2419
          %v2421 = vrot.slane %v2419, 4
          %v2422 = vrot.slane %v1791, 5
          %v2423 = vsel %vm813, %v2421, %v2422
          %v2424 = vrot.slane %v1792, 5
          %v2425 = vrot.slane %v2424, 4
          %v2426 = vrot.slane %v1793, 5
          %v2427 = vsel %vm813, %v2425, %v2426
          %v2428 = vrot.slane %v2426, 4
          %v2429 = vrot.slane %v1794, 5
          %v2430 = vsel %vm813, %v2428, %v2429
          %v2431 = vrot.slane %v1795, 5
          %v2432 = vrot.slane %v2431, 4
          %v2433 = vrot.slane %v1796, 5
          %v2434 = vsel %vm813, %v2432, %v2433
          %v2435 = vrot.slane %v2433, 4
          %v2436 = vrot.slane %v1797, 5
          %v2437 = vsel %vm813, %v2435, %v2436
          %2470 = vst [vmem:[#allocation2 + $0x20] sm:$0xf] %v2329
          %2471 = vst [vmem:[#allocation2 + $0x44] sm:$0xf] %v2332
          %2472 = vst [vmem:[#allocation2 + $0x68] sm:$0xf] %v2336
          %2473 = vst [vmem:[#allocation2 + $0x8c] sm:$0xf] %v2339
          %2474 = vst [vmem:[#allocation2 + $0xb0] sm:$0xf] %v2343
          %2475 = vst [vmem:[#allocation2 + $0xd4] sm:$0xf] %v2346
          %2476 = vst [vmem:[#allocation2 + $0xf8] sm:$0xf] %v2350
          %2477 = vst [vmem:[#allocation2 + $0x11c] sm:$0xf] %v2353
          %2478 = vst [vmem:[#allocation2 + $0x140] sm:$0xf] %v2357
          %2479 = vst [vmem:[#allocation2 + $0x164] sm:$0xf] %v2360
          %2480 = vst [vmem:[#allocation2 + $0x188] sm:$0xf] %v2364
          %2481 = vst [vmem:[#allocation2 + $0x1ac] sm:$0xf] %v2367
          %2482 = vst [vmem:[#allocation2 + $0x1d0] sm:$0xf] %v2371
          %2483 = vst [vmem:[#allocation2 + $0x1f4] sm:$0xf] %v2374
          %2484 = vst [vmem:[#allocation2 + $0x218] sm:$0xf] %v2378
          %2485 = vst [vmem:[#allocation2 + $0x23c] sm:$0xf] %v2381
          %2486 = vst [vmem:[#allocation2 + $0x260] sm:$0xf] %v2385
          %2487 = vst [vmem:[#allocation2 + $0x284] sm:$0xf] %v2388
          %2488 = vst [vmem:[#allocation2 + $0x2a8] sm:$0xf] %v2392
          %2489 = vst [vmem:[#allocation2 + $0x2cc] sm:$0xf] %v2395
          %2490 = vst [vmem:[#allocation2 + $0x2f0] sm:$0xf] %v2399
          %2491 = vst [vmem:[#allocation2 + $0x314] sm:$0xf] %v2402
          %2492 = vst [vmem:[#allocation2 + $0x338] sm:$0xf] %v2406
          %2493 = vst [vmem:[#allocation2 + $0x35c] sm:$0xf] %v2409
          %2494 = vst [vmem:[#allocation2 + $0x380] sm:$0xf] %v2413
          %2495 = vst [vmem:[#allocation2 + $0x3a4] sm:$0xf] %v2416
          %2496 = vst [vmem:[#allocation2 + $0x3c8] sm:$0xf] %v2420
          %2497 = vst [vmem:[#allocation2 + $0x3ec] sm:$0xf] %v2423
          %2498 = vst [vmem:[#allocation2 + $0x410] sm:$0xf] %v2427
          %2499 = vst [vmem:[#allocation2 + $0x434] sm:$0xf] %v2430
          %2500 = vst [vmem:[#allocation2 + $0x458] sm:$0xf] %v2434
          %2501 = vst [vmem:[#allocation2 + $0x47c] sm:$0xf] %v2437
        $region36: #{tpu_custom_call.1} parent=31 // pred_fallthru
          _
        %v2502 = vld [vmem:[#allocation2] sm:$0xff]
        %v2503 = vld [vmem:[#allocation2 + $0x8] sm:$0xff]
        %v2504 = vld [vmem:[#allocation2 + $0x10] sm:$0xff]
        %v2505 = vld [vmem:[#allocation2 + $0x18] sm:$0xff]
        %v2506 = vld [vmem:[#allocation2 + $0x20] sm:$0xf]
        %v2507 = vld [vmem:[#allocation2 + $0x24] sm:$0xff]
        %v2508 = vld [vmem:[#allocation2 + $0x2c] sm:$0xff]
        %v2509 = vld [vmem:[#allocation2 + $0x34] sm:$0xff]
        %v2510 = vld [vmem:[#allocation2 + $0x3c] sm:$0xff]
        %v2511 = vld [vmem:[#allocation2 + $0x44] sm:$0xf]
        %v2512 = vld [vmem:[#allocation2 + $0x48] sm:$0xff]
        %v2513 = vld [vmem:[#allocation2 + $0x50] sm:$0xff]
        %v2514 = vld [vmem:[#allocation2 + $0x58] sm:$0xff]
        %v2515 = vld [vmem:[#allocation2 + $0x60] sm:$0xff]
        %v2516 = vld [vmem:[#allocation2 + $0x68] sm:$0xf]
        %v2517 = vld [vmem:[#allocation2 + $0x6c] sm:$0xff]
        %v2518 = vld [vmem:[#allocation2 + $0x74] sm:$0xff]
        %v2519 = vld [vmem:[#allocation2 + $0x7c] sm:$0xff]
        %v2520 = vld [vmem:[#allocation2 + $0x84] sm:$0xff]
        %v2521 = vld [vmem:[#allocation2 + $0x8c] sm:$0xf]
        %v2522 = vld [vmem:[#allocation2 + $0x90] sm:$0xff]
        %v2523 = vld [vmem:[#allocation2 + $0x98] sm:$0xff]
        %v2524 = vld [vmem:[#allocation2 + $0xa0] sm:$0xff]
        %v2525 = vld [vmem:[#allocation2 + $0xa8] sm:$0xff]
        %v2526 = vld [vmem:[#allocation2 + $0xb0] sm:$0xf]
        %v2527 = vld [vmem:[#allocation2 + $0xb4] sm:$0xff]
        %v2528 = vld [vmem:[#allocation2 + $0xbc] sm:$0xff]
        %v2529 = vld [vmem:[#allocation2 + $0xc4] sm:$0xff]
        %v2530 = vld [vmem:[#allocation2 + $0xcc] sm:$0xff]
        %v2531 = vld [vmem:[#allocation2 + $0xd4] sm:$0xf]
        %v2532 = vld [vmem:[#allocation2 + $0xd8] sm:$0xff]
        %v2533 = vld [vmem:[#allocation2 + $0xe0] sm:$0xff]
        %v2534 = vld [vmem:[#allocation2 + $0xe8] sm:$0xff]
        %v2535 = vld [vmem:[#allocation2 + $0xf0] sm:$0xff]
        %v2536 = vld [vmem:[#allocation2 + $0xf8] sm:$0xf]
        %v2537 = vld [vmem:[#allocation2 + $0xfc] sm:$0xff]
        %v2538 = vld [vmem:[#allocation2 + $0x104] sm:$0xff]
        %v2539 = vld [vmem:[#allocation2 + $0x10c] sm:$0xff]
        %v2540 = vld [vmem:[#allocation2 + $0x114] sm:$0xff]
        %v2541 = vld [vmem:[#allocation2 + $0x11c] sm:$0xf]
        %v2542 = vld [vmem:[#allocation2 + $0x120] sm:$0xff]
        %v2543 = vld [vmem:[#allocation2 + $0x128] sm:$0xff]
        %v2544 = vld [vmem:[#allocation2 + $0x130] sm:$0xff]
        %v2545 = vld [vmem:[#allocation2 + $0x138] sm:$0xff]
        %v2546 = vld [vmem:[#allocation2 + $0x140] sm:$0xf]
        %v2547 = vld [vmem:[#allocation2 + $0x144] sm:$0xff]
        %v2548 = vld [vmem:[#allocation2 + $0x14c] sm:$0xff]
        %v2549 = vld [vmem:[#allocation2 + $0x154] sm:$0xff]
        %v2550 = vld [vmem:[#allocation2 + $0x15c] sm:$0xff]
        %v2551 = vld [vmem:[#allocation2 + $0x164] sm:$0xf]
        %v2552 = vld [vmem:[#allocation2 + $0x168] sm:$0xff]
        %v2553 = vld [vmem:[#allocation2 + $0x170] sm:$0xff]
        %v2554 = vld [vmem:[#allocation2 + $0x178] sm:$0xff]
        %v2555 = vld [vmem:[#allocation2 + $0x180] sm:$0xff]
        %v2556 = vld [vmem:[#allocation2 + $0x188] sm:$0xf]
        %v2557 = vld [vmem:[#allocation2 + $0x18c] sm:$0xff]
        %v2558 = vld [vmem:[#allocation2 + $0x194] sm:$0xff]
        %v2559 = vld [vmem:[#allocation2 + $0x19c] sm:$0xff]
        %v2560 = vld [vmem:[#allocation2 + $0x1a4] sm:$0xff]
        %v2561 = vld [vmem:[#allocation2 + $0x1ac] sm:$0xf]
        %v2562 = vld [vmem:[#allocation2 + $0x1b0] sm:$0xff]
        %v2563 = vld [vmem:[#allocation2 + $0x1b8] sm:$0xff]
        %v2564 = vld [vmem:[#allocation2 + $0x1c0] sm:$0xff]
        %v2565 = vld [vmem:[#allocation2 + $0x1c8] sm:$0xff]
        %v2566 = vld [vmem:[#allocation2 + $0x1d0] sm:$0xf]
        %v2567 = vld [vmem:[#allocation2 + $0x1d4] sm:$0xff]
        %v2568 = vld [vmem:[#allocation2 + $0x1dc] sm:$0xff]
        %v2569 = vld [vmem:[#allocation2 + $0x1e4] sm:$0xff]
        %v2570 = vld [vmem:[#allocation2 + $0x1ec] sm:$0xff]
        %v2571 = vld [vmem:[#allocation2 + $0x1f4] sm:$0xf]
        %v2572 = vld [vmem:[#allocation2 + $0x1f8] sm:$0xff]
        %v2573 = vld [vmem:[#allocation2 + $0x200] sm:$0xff]
        %v2574 = vld [vmem:[#allocation2 + $0x208] sm:$0xff]
        %v2575 = vld [vmem:[#allocation2 + $0x210] sm:$0xff]
        %v2576 = vld [vmem:[#allocation2 + $0x218] sm:$0xf]
        %v2577 = vld [vmem:[#allocation2 + $0x21c] sm:$0xff]
        %v2578 = vld [vmem:[#allocation2 + $0x224] sm:$0xff]
        %v2579 = vld [vmem:[#allocation2 + $0x22c] sm:$0xff]
        %v2580 = vld [vmem:[#allocation2 + $0x234] sm:$0xff]
        %v2581 = vld [vmem:[#allocation2 + $0x23c] sm:$0xf]
        %v2582 = vld [vmem:[#allocation2 + $0x240] sm:$0xff]
        %v2583 = vld [vmem:[#allocation2 + $0x248] sm:$0xff]
        %v2584 = vld [vmem:[#allocation2 + $0x250] sm:$0xff]
        %v2585 = vld [vmem:[#allocation2 + $0x258] sm:$0xff]
        %v2586 = vld [vmem:[#allocation2 + $0x260] sm:$0xf]
        %v2587 = vld [vmem:[#allocation2 + $0x264] sm:$0xff]
        %v2588 = vld [vmem:[#allocation2 + $0x26c] sm:$0xff]
        %v2589 = vld [vmem:[#allocation2 + $0x274] sm:$0xff]
        %v2590 = vld [vmem:[#allocation2 + $0x27c] sm:$0xff]
        %v2591 = vld [vmem:[#allocation2 + $0x284] sm:$0xf]
        %v2592 = vld [vmem:[#allocation2 + $0x288] sm:$0xff]
        %v2593 = vld [vmem:[#allocation2 + $0x290] sm:$0xff]
        %v2594 = vld [vmem:[#allocation2 + $0x298] sm:$0xff]
        %v2595 = vld [vmem:[#allocation2 + $0x2a0] sm:$0xff]
        %v2596 = vld [vmem:[#allocation2 + $0x2a8] sm:$0xf]
        %v2597 = vld [vmem:[#allocation2 + $0x2ac] sm:$0xff]
        %v2598 = vld [vmem:[#allocation2 + $0x2b4] sm:$0xff]
        %v2599 = vld [vmem:[#allocation2 + $0x2bc] sm:$0xff]
        %v2600 = vld [vmem:[#allocation2 + $0x2c4] sm:$0xff]
        %v2601 = vld [vmem:[#allocation2 + $0x2cc] sm:$0xf]
        %v2602 = vld [vmem:[#allocation2 + $0x2d0] sm:$0xff]
        %v2603 = vld [vmem:[#allocation2 + $0x2d8] sm:$0xff]
        %v2604 = vld [vmem:[#allocation2 + $0x2e0] sm:$0xff]
        %v2605 = vld [vmem:[#allocation2 + $0x2e8] sm:$0xff]
        %v2606 = vld [vmem:[#allocation2 + $0x2f0] sm:$0xf]
        %v2607 = vld [vmem:[#allocation2 + $0x2f4] sm:$0xff]
        %v2608 = vld [vmem:[#allocation2 + $0x2fc] sm:$0xff]
        %v2609 = vld [vmem:[#allocation2 + $0x304] sm:$0xff]
        %v2610 = vld [vmem:[#allocation2 + $0x30c] sm:$0xff]
        %v2611 = vld [vmem:[#allocation2 + $0x314] sm:$0xf]
        %v2612 = vld [vmem:[#allocation2 + $0x318] sm:$0xff]
        %v2613 = vld [vmem:[#allocation2 + $0x320] sm:$0xff]
        %v2614 = vld [vmem:[#allocation2 + $0x328] sm:$0xff]
        %v2615 = vld [vmem:[#allocation2 + $0x330] sm:$0xff]
        %v2616 = vld [vmem:[#allocation2 + $0x338] sm:$0xf]
        %v2617 = vld [vmem:[#allocation2 + $0x33c] sm:$0xff]
        %v2618 = vld [vmem:[#allocation2 + $0x344] sm:$0xff]
        %v2619 = vld [vmem:[#allocation2 + $0x34c] sm:$0xff]
        %v2620 = vld [vmem:[#allocation2 + $0x354] sm:$0xff]
        %v2621 = vld [vmem:[#allocation2 + $0x35c] sm:$0xf]
        %v2622 = vld [vmem:[#allocation2 + $0x360] sm:$0xff]
        %v2623 = vld [vmem:[#allocation2 + $0x368] sm:$0xff]
        %v2624 = vld [vmem:[#allocation2 + $0x370] sm:$0xff]
        %v2625 = vld [vmem:[#allocation2 + $0x378] sm:$0xff]
        %v2626 = vld [vmem:[#allocation2 + $0x380] sm:$0xf]
        %v2627 = vld [vmem:[#allocation2 + $0x384] sm:$0xff]
        %v2628 = vld [vmem:[#allocation2 + $0x38c] sm:$0xff]
        %v2629 = vld [vmem:[#allocation2 + $0x394] sm:$0xff]
        %v2630 = vld [vmem:[#allocation2 + $0x39c] sm:$0xff]
        %v2631 = vld [vmem:[#allocation2 + $0x3a4] sm:$0xf]
        %v2632 = vld [vmem:[#allocation2 + $0x3a8] sm:$0xff]
        %v2633 = vld [vmem:[#allocation2 + $0x3b0] sm:$0xff]
        %v2634 = vld [vmem:[#allocation2 + $0x3b8] sm:$0xff]
        %v2635 = vld [vmem:[#allocation2 + $0x3c0] sm:$0xff]
        %v2636 = vld [vmem:[#allocation2 + $0x3c8] sm:$0xf]
        %v2637 = vld [vmem:[#allocation2 + $0x3cc] sm:$0xff]
        %v2638 = vld [vmem:[#allocation2 + $0x3d4] sm:$0xff]
        %v2639 = vld [vmem:[#allocation2 + $0x3dc] sm:$0xff]
        %v2640 = vld [vmem:[#allocation2 + $0x3e4] sm:$0xff]
        %v2641 = vld [vmem:[#allocation2 + $0x3ec] sm:$0xf]
        %v2642 = vld [vmem:[#allocation2 + $0x3f0] sm:$0xff]
        %v2643 = vld [vmem:[#allocation2 + $0x3f8] sm:$0xff]
        %v2644 = vld [vmem:[#allocation2 + $0x400] sm:$0xff]
        %v2645 = vld [vmem:[#allocation2 + $0x408] sm:$0xff]
        %v2646 = vld [vmem:[#allocation2 + $0x410] sm:$0xf]
        %v2647 = vld [vmem:[#allocation2 + $0x414] sm:$0xff]
        %v2648 = vld [vmem:[#allocation2 + $0x41c] sm:$0xff]
        %v2649 = vld [vmem:[#allocation2 + $0x424] sm:$0xff]
        %v2650 = vld [vmem:[#allocation2 + $0x42c] sm:$0xff]
        %v2651 = vld [vmem:[#allocation2 + $0x434] sm:$0xf]
        %v2652 = vld [vmem:[#allocation2 + $0x438] sm:$0xff]
        %v2653 = vld [vmem:[#allocation2 + $0x440] sm:$0xff]
        %v2654 = vld [vmem:[#allocation2 + $0x448] sm:$0xff]
        %v2655 = vld [vmem:[#allocation2 + $0x450] sm:$0xff]
        %v2656 = vld [vmem:[#allocation2 + $0x458] sm:$0xf]
        %v2657 = vld [vmem:[#allocation2 + $0x45c] sm:$0xff]
        %v2658 = vld [vmem:[#allocation2 + $0x464] sm:$0xff]
        %v2659 = vld [vmem:[#allocation2 + $0x46c] sm:$0xff]
        %v2660 = vld [vmem:[#allocation2 + $0x474] sm:$0xff]
        %v2661 = vld [vmem:[#allocation2 + $0x47c] sm:$0xf]
        %v2662 = vld [vmem:[%s219] sm:$0xf]
        %v2663 = vld [vmem:[%s219 + $0x4] sm:$0xf]
        %v2664 = vld [vmem:[%s219 + $0x8] sm:$0xf]
        %v2665 = vld [vmem:[%s219 + $0xc] sm:$0xf]
        %v2666 = vld [vmem:[%s219 + $0x10] sm:$0xf]
        %v2667 = vld [vmem:[%s219 + $0x14] sm:$0xf]
        %v2668 = vld [vmem:[%s219 + $0x18] sm:$0xf]
        %v2669 = vld [vmem:[%s219 + $0x1c] sm:$0xf]
        %v2670 = vld [vmem:[%s219 + $0x20] sm:$0xf]
        %v2671 = vld [vmem:[%s219 + $0x24] sm:$0xf]
        %v2672 = vld [vmem:[%s219 + $0x28] sm:$0xf]
        %v2673 = vld [vmem:[%s219 + $0x2c] sm:$0xf]
        %v2674 = vld [vmem:[%s219 + $0x30] sm:$0xf]
        %v2675 = vld [vmem:[%s219 + $0x34] sm:$0xf]
        %v2676 = vld [vmem:[%s219 + $0x38] sm:$0xf]
        %v2677 = vld [vmem:[%s219 + $0x3c] sm:$0xf]
        %v2678 = vld [vmem:[%s219 + $0x40] sm:$0xf]
        %v2679 = vld [vmem:[%s219 + $0x44] sm:$0xf]
        %v2680 = vld [vmem:[%s219 + $0x48] sm:$0xf]
        %v2681 = vld [vmem:[%s219 + $0x4c] sm:$0xf]
        %v2682 = vld [vmem:[%s219 + $0x50] sm:$0xf]
        %v2683 = vld [vmem:[%s219 + $0x54] sm:$0xf]
        %v2684 = vld [vmem:[%s219 + $0x58] sm:$0xf]
        %v2685 = vld [vmem:[%s219 + $0x5c] sm:$0xf]
        %v2686 = vld [vmem:[%s219 + $0x60] sm:$0xf]
        %v2687 = vld [vmem:[%s219 + $0x64] sm:$0xf]
        %v2688 = vld [vmem:[%s219 + $0x68] sm:$0xf]
        %v2689 = vld [vmem:[%s219 + $0x6c] sm:$0xf]
        %v2690 = vld [vmem:[%s219 + $0x70] sm:$0xf]
        %v2691 = vld [vmem:[%s219 + $0x74] sm:$0xf]
        %v2692 = vld [vmem:[%s219 + $0x78] sm:$0xf]
        %v2693 = vld [vmem:[%s219 + $0x7c] sm:$0xf]
        %v2694 = vld [vmem:[%s219 + $0x80] sm:$0xf]
        %v2695 = vld [vmem:[%s219 + $0x84] sm:$0xf]
        %v2696 = vld [vmem:[%s219 + $0x88] sm:$0xf]
        %v2697 = vld [vmem:[%s219 + $0x8c] sm:$0xf]
        %v2698 = vld [vmem:[%s219 + $0x90] sm:$0xf]
        %v2699 = vld [vmem:[%s219 + $0x94] sm:$0xf]
        %v2700 = vld [vmem:[%s219 + $0x98] sm:$0xf]
        %v2701 = vld [vmem:[%s219 + $0x9c] sm:$0xf]
        %v2702 = vld [vmem:[%s219 + $0xa0] sm:$0xf]
        %v2703 = vld [vmem:[%s219 + $0xa4] sm:$0xf]
        %v2704 = vld [vmem:[%s219 + $0xa8] sm:$0xf]
        %v2705 = vld [vmem:[%s219 + $0xac] sm:$0xf]
        %v2706 = vld [vmem:[%s219 + $0xb0] sm:$0xf]
        %v2707 = vld [vmem:[%s219 + $0xb4] sm:$0xf]
        %v2708 = vld [vmem:[%s219 + $0xb8] sm:$0xf]
        %v2709 = vld [vmem:[%s219 + $0xbc] sm:$0xf]
        %v2710 = vld [vmem:[%s219 + $0xc0] sm:$0xf]
        %v2711 = vld [vmem:[%s219 + $0xc4] sm:$0xf]
        %v2712 = vld [vmem:[%s219 + $0xc8] sm:$0xf]
        %v2713 = vld [vmem:[%s219 + $0xcc] sm:$0xf]
        %v2714 = vld [vmem:[%s219 + $0xd0] sm:$0xf]
        %v2715 = vld [vmem:[%s219 + $0xd4] sm:$0xf]
        %v2716 = vld [vmem:[%s219 + $0xd8] sm:$0xf]
        %v2717 = vld [vmem:[%s219 + $0xdc] sm:$0xf]
        %v2718 = vld [vmem:[%s219 + $0xe0] sm:$0xf]
        %v2719 = vld [vmem:[%s219 + $0xe4] sm:$0xf]
        %v2720 = vld [vmem:[%s219 + $0xe8] sm:$0xf]
        %v2721 = vld [vmem:[%s219 + $0xec] sm:$0xf]
        %v2722 = vld [vmem:[%s219 + $0xf0] sm:$0xf]
        %v2723 = vld [vmem:[%s219 + $0xf4] sm:$0xf]
        %v2724 = vld [vmem:[%s219 + $0xf8] sm:$0xf]
        %v2725 = vld [vmem:[%s219 + $0xfc] sm:$0xf]
        %v2726 = vld [vmem:[%s219 + $0x100] sm:$0xf]
        %v2727 = vld [vmem:[%s219 + $0x104] sm:$0xf]
        %v2728 = vld [vmem:[%s219 + $0x108] sm:$0xf]
        %v2729 = vld [vmem:[%s219 + $0x10c] sm:$0xf]
        %v2730 = vld [vmem:[%s219 + $0x110] sm:$0xf]
        %v2731 = vld [vmem:[%s219 + $0x114] sm:$0xf]
        %v2732 = vld [vmem:[%s219 + $0x118] sm:$0xf]
        %v2733 = vld [vmem:[%s219 + $0x11c] sm:$0xf]
        %v2734 = vld [vmem:[%s219 + $0x120] sm:$0xf]
        %v2735 = vld [vmem:[%s219 + $0x124] sm:$0xf]
        %v2736 = vld [vmem:[%s219 + $0x128] sm:$0xf]
        %v2737 = vld [vmem:[%s219 + $0x12c] sm:$0xf]
        %v2738 = vld [vmem:[%s219 + $0x130] sm:$0xf]
        %v2739 = vld [vmem:[%s219 + $0x134] sm:$0xf]
        %v2740 = vld [vmem:[%s219 + $0x138] sm:$0xf]
        %v2741 = vld [vmem:[%s219 + $0x13c] sm:$0xf]
        %v2742 = vld [vmem:[%s219 + $0x140] sm:$0xf]
        %v2743 = vld [vmem:[%s219 + $0x144] sm:$0xf]
        %v2744 = vld [vmem:[%s219 + $0x148] sm:$0xf]
        %v2745 = vld [vmem:[%s219 + $0x14c] sm:$0xf]
        %v2746 = vld [vmem:[%s219 + $0x150] sm:$0xf]
        %v2747 = vld [vmem:[%s219 + $0x154] sm:$0xf]
        %v2748 = vld [vmem:[%s219 + $0x158] sm:$0xf]
        %v2749 = vld [vmem:[%s219 + $0x15c] sm:$0xf]
        %v2750 = vld [vmem:[%s219 + $0x160] sm:$0xf]
        %v2751 = vld [vmem:[%s219 + $0x164] sm:$0xf]
        %v2752 = vld [vmem:[%s219 + $0x168] sm:$0xf]
        %v2753 = vld [vmem:[%s219 + $0x16c] sm:$0xf]
        %v2754 = vld [vmem:[%s219 + $0x170] sm:$0xf]
        %v2755 = vld [vmem:[%s219 + $0x174] sm:$0xf]
        %v2756 = vld [vmem:[%s219 + $0x178] sm:$0xf]
        %v2757 = vld [vmem:[%s219 + $0x17c] sm:$0xf]
        %v2758 = vld [vmem:[%s219 + $0x180] sm:$0xf]
        %v2759 = vld [vmem:[%s219 + $0x184] sm:$0xf]
        %v2760 = vld [vmem:[%s219 + $0x188] sm:$0xf]
        %v2761 = vld [vmem:[%s219 + $0x18c] sm:$0xf]
        %v2762 = vld [vmem:[%s219 + $0x190] sm:$0xf]
        %v2763 = vld [vmem:[%s219 + $0x194] sm:$0xf]
        %v2764 = vld [vmem:[%s219 + $0x198] sm:$0xf]
        %v2765 = vld [vmem:[%s219 + $0x19c] sm:$0xf]
        %v2766 = vld [vmem:[%s219 + $0x1a0] sm:$0xf]
        %v2767 = vld [vmem:[%s219 + $0x1a4] sm:$0xf]
        %v2768 = vld [vmem:[%s219 + $0x1a8] sm:$0xf]
        %v2769 = vld [vmem:[%s219 + $0x1ac] sm:$0xf]
        %v2770 = vld [vmem:[%s219 + $0x1b0] sm:$0xf]
        %v2771 = vld [vmem:[%s219 + $0x1b4] sm:$0xf]
        %v2772 = vld [vmem:[%s219 + $0x1b8] sm:$0xf]
        %v2773 = vld [vmem:[%s219 + $0x1bc] sm:$0xf]
        %v2774 = vld [vmem:[%s219 + $0x1c0] sm:$0xf]
        %v2775 = vld [vmem:[%s219 + $0x1c4] sm:$0xf]
        %v2776 = vld [vmem:[%s219 + $0x1c8] sm:$0xf]
        %v2777 = vld [vmem:[%s219 + $0x1cc] sm:$0xf]
        %v2778 = vld [vmem:[%s219 + $0x1d0] sm:$0xf]
        %v2779 = vld [vmem:[%s219 + $0x1d4] sm:$0xf]
        %v2780 = vld [vmem:[%s219 + $0x1d8] sm:$0xf]
        %v2781 = vld [vmem:[%s219 + $0x1dc] sm:$0xf]
        %v2782 = vld [vmem:[%s219 + $0x1e0] sm:$0xf]
        %v2783 = vld [vmem:[%s219 + $0x1e4] sm:$0xf]
        %v2784 = vld [vmem:[%s219 + $0x1e8] sm:$0xf]
        %v2785 = vld [vmem:[%s219 + $0x1ec] sm:$0xf]
        %v2786 = vld [vmem:[%s219 + $0x1f0] sm:$0xf]
        %v2787 = vld [vmem:[%s219 + $0x1f4] sm:$0xf]
        %v2788 = vld [vmem:[%s219 + $0x1f8] sm:$0xf]
        %v2789 = vld [vmem:[%s219 + $0x1fc] sm:$0xf]
        %v2790 = vld [vmem:[%s219 + $0x200] sm:$0xf]
        %v2791 = vld [vmem:[%s219 + $0x204] sm:$0xf]
        %v2792 = vld [vmem:[%s219 + $0x208] sm:$0xf]
        %v2793 = vld [vmem:[%s219 + $0x20c] sm:$0xf]
        %v2794 = vld [vmem:[%s219 + $0x210] sm:$0xf]
        %v2795 = vld [vmem:[%s219 + $0x214] sm:$0xf]
        %v2796 = vld [vmem:[%s219 + $0x218] sm:$0xf]
        %v2797 = vld [vmem:[%s219 + $0x21c] sm:$0xf]
        %v2798 = vld [vmem:[%s219 + $0x220] sm:$0xf]
        %v2799 = vld [vmem:[%s219 + $0x224] sm:$0xf]
        %v2800 = vld [vmem:[%s219 + $0x228] sm:$0xf]
        %v2801 = vld [vmem:[%s219 + $0x22c] sm:$0xf]
        %v2802 = vld [vmem:[%s219 + $0x230] sm:$0xf]
        %v2803 = vld [vmem:[%s219 + $0x234] sm:$0xf]
        %v2804 = vld [vmem:[%s219 + $0x238] sm:$0xf]
        %v2805 = vld [vmem:[%s219 + $0x23c] sm:$0xf]
        %v2806 = vld [vmem:[%s222] sm:$0x1]
        %v2808 = vperm.slane %v2806, 0
        %v2970 = vunpack.c.l.b16 %v2502
        %v2971 = vunpack.c.h.b16 %v2502
        %v2972 = vunpack.c.l.b16 %v2503
        %v2973 = vunpack.c.h.b16 %v2503
        %v2974 = vunpack.c.l.b16 %v2504
        %v2975 = vunpack.c.h.b16 %v2504
        %v2976 = vunpack.c.l.b16 %v2505
        %v2977 = vunpack.c.h.b16 %v2505
        %v2978 = vunpack.c.l.b16 %v2506
        %v2979 = vunpack.c.l.b16 %v2507
        %v2980 = vunpack.c.h.b16 %v2507
        %v2981 = vunpack.c.l.b16 %v2508
        %v2982 = vunpack.c.h.b16 %v2508
        %v2983 = vunpack.c.l.b16 %v2509
        %v2984 = vunpack.c.h.b16 %v2509
        %v2985 = vunpack.c.l.b16 %v2510
        %v2986 = vunpack.c.h.b16 %v2510
        %v2987 = vunpack.c.l.b16 %v2511
        %v2988 = vunpack.c.l.b16 %v2512
        %v2989 = vunpack.c.h.b16 %v2512
        %v2990 = vunpack.c.l.b16 %v2513
        %v2991 = vunpack.c.h.b16 %v2513
        %v2992 = vunpack.c.l.b16 %v2514
        %v2993 = vunpack.c.h.b16 %v2514
        %v2994 = vunpack.c.l.b16 %v2515
        %v2995 = vunpack.c.h.b16 %v2515
        %v2996 = vunpack.c.l.b16 %v2516
        %v2997 = vunpack.c.l.b16 %v2517
        %v2998 = vunpack.c.h.b16 %v2517
        %v2999 = vunpack.c.l.b16 %v2518
        %v3000 = vunpack.c.h.b16 %v2518
        %v3001 = vunpack.c.l.b16 %v2519
        %v3002 = vunpack.c.h.b16 %v2519
        %v3003 = vunpack.c.l.b16 %v2520
        %v3004 = vunpack.c.h.b16 %v2520
        %v3005 = vunpack.c.l.b16 %v2521
        %v3006 = vunpack.c.l.b16 %v2522
        %v3007 = vunpack.c.h.b16 %v2522
        %v3008 = vunpack.c.l.b16 %v2523
        %v3009 = vunpack.c.h.b16 %v2523
        %v3010 = vunpack.c.l.b16 %v2524
        %v3011 = vunpack.c.h.b16 %v2524
        %v3012 = vunpack.c.l.b16 %v2525
        %v3013 = vunpack.c.h.b16 %v2525
        %v3014 = vunpack.c.l.b16 %v2526
        %v3015 = vunpack.c.l.b16 %v2527
        %v3016 = vunpack.c.h.b16 %v2527
        %v3017 = vunpack.c.l.b16 %v2528
        %v3018 = vunpack.c.h.b16 %v2528
        %v3019 = vunpack.c.l.b16 %v2529
        %v3020 = vunpack.c.h.b16 %v2529
        %v3021 = vunpack.c.l.b16 %v2530
        %v3022 = vunpack.c.h.b16 %v2530
        %v3023 = vunpack.c.l.b16 %v2531
        %v3024 = vunpack.c.l.b16 %v2532
        %v3025 = vunpack.c.h.b16 %v2532
        %v3026 = vunpack.c.l.b16 %v2533
        %v3027 = vunpack.c.h.b16 %v2533
        %v3028 = vunpack.c.l.b16 %v2534
        %v3029 = vunpack.c.h.b16 %v2534
        %v3030 = vunpack.c.l.b16 %v2535
        %v3031 = vunpack.c.h.b16 %v2535
        %v3032 = vunpack.c.l.b16 %v2536
        %v3033 = vunpack.c.l.b16 %v2537
        %v3034 = vunpack.c.h.b16 %v2537
        %v3035 = vunpack.c.l.b16 %v2538
        %v3036 = vunpack.c.h.b16 %v2538
        %v3037 = vunpack.c.l.b16 %v2539
        %v3038 = vunpack.c.h.b16 %v2539
        %v3039 = vunpack.c.l.b16 %v2540
        %v3040 = vunpack.c.h.b16 %v2540
        %v3041 = vunpack.c.l.b16 %v2541
        %v3042 = vunpack.c.l.b16 %v2542
        %v3043 = vunpack.c.h.b16 %v2542
        %v3044 = vunpack.c.l.b16 %v2543
        %v3045 = vunpack.c.h.b16 %v2543
        %v3046 = vunpack.c.l.b16 %v2544
        %v3047 = vunpack.c.h.b16 %v2544
        %v3048 = vunpack.c.l.b16 %v2545
        %v3049 = vunpack.c.h.b16 %v2545
        %v3050 = vunpack.c.l.b16 %v2546
        %v3051 = vunpack.c.l.b16 %v2547
        %v3052 = vunpack.c.h.b16 %v2547
        %v3053 = vunpack.c.l.b16 %v2548
        %v3054 = vunpack.c.h.b16 %v2548
        %v3055 = vunpack.c.l.b16 %v2549
        %v3056 = vunpack.c.h.b16 %v2549
        %v3057 = vunpack.c.l.b16 %v2550
        %v3058 = vunpack.c.h.b16 %v2550
        %v3059 = vunpack.c.l.b16 %v2551
        %v3060 = vunpack.c.l.b16 %v2552
        %v3061 = vunpack.c.h.b16 %v2552
        %v3062 = vunpack.c.l.b16 %v2553
        %v3063 = vunpack.c.h.b16 %v2553
        %v3064 = vunpack.c.l.b16 %v2554
        %v3065 = vunpack.c.h.b16 %v2554
        %v3066 = vunpack.c.l.b16 %v2555
        %v3067 = vunpack.c.h.b16 %v2555
        %v3068 = vunpack.c.l.b16 %v2556
        %v3069 = vunpack.c.l.b16 %v2557
        %v3070 = vunpack.c.h.b16 %v2557
        %v3071 = vunpack.c.l.b16 %v2558
        %v3072 = vunpack.c.h.b16 %v2558
        %v3073 = vunpack.c.l.b16 %v2559
        %v3074 = vunpack.c.h.b16 %v2559
        %v3075 = vunpack.c.l.b16 %v2560
        %v3076 = vunpack.c.h.b16 %v2560
        %v3077 = vunpack.c.l.b16 %v2561
        %v3078 = vunpack.c.l.b16 %v2562
        %v3079 = vunpack.c.h.b16 %v2562
        %v3080 = vunpack.c.l.b16 %v2563
        %v3081 = vunpack.c.h.b16 %v2563
        %v3082 = vunpack.c.l.b16 %v2564
        %v3083 = vunpack.c.h.b16 %v2564
        %v3084 = vunpack.c.l.b16 %v2565
        %v3085 = vunpack.c.h.b16 %v2565
        %v3086 = vunpack.c.l.b16 %v2566
        %v3087 = vunpack.c.l.b16 %v2567
        %v3088 = vunpack.c.h.b16 %v2567
        %v3089 = vunpack.c.l.b16 %v2568
        %v3090 = vunpack.c.h.b16 %v2568
        %v3091 = vunpack.c.l.b16 %v2569
        %v3092 = vunpack.c.h.b16 %v2569
        %v3093 = vunpack.c.l.b16 %v2570
        %v3094 = vunpack.c.h.b16 %v2570
        %v3095 = vunpack.c.l.b16 %v2571
        %v3096 = vunpack.c.l.b16 %v2572
        %v3097 = vunpack.c.h.b16 %v2572
        %v3098 = vunpack.c.l.b16 %v2573
        %v3099 = vunpack.c.h.b16 %v2573
        %v3100 = vunpack.c.l.b16 %v2574
        %v3101 = vunpack.c.h.b16 %v2574
        %v3102 = vunpack.c.l.b16 %v2575
        %v3103 = vunpack.c.h.b16 %v2575
        %v3104 = vunpack.c.l.b16 %v2576
        %v3105 = vunpack.c.l.b16 %v2577
        %v3106 = vunpack.c.h.b16 %v2577
        %v3107 = vunpack.c.l.b16 %v2578
        %v3108 = vunpack.c.h.b16 %v2578
        %v3109 = vunpack.c.l.b16 %v2579
        %v3110 = vunpack.c.h.b16 %v2579
        %v3111 = vunpack.c.l.b16 %v2580
        %v3112 = vunpack.c.h.b16 %v2580
        %v3113 = vunpack.c.l.b16 %v2581
        %v3114 = vunpack.c.l.b16 %v2582
        %v3115 = vunpack.c.h.b16 %v2582
        %v3116 = vunpack.c.l.b16 %v2583
        %v3117 = vunpack.c.h.b16 %v2583
        %v3118 = vunpack.c.l.b16 %v2584
        %v3119 = vunpack.c.h.b16 %v2584
        %v3120 = vunpack.c.l.b16 %v2585
        %v3121 = vunpack.c.h.b16 %v2585
        %v3122 = vunpack.c.l.b16 %v2586
        %v3123 = vunpack.c.l.b16 %v2587
        %v3124 = vunpack.c.h.b16 %v2587
        %v3125 = vunpack.c.l.b16 %v2588
        %v3126 = vunpack.c.h.b16 %v2588
        %v3127 = vunpack.c.l.b16 %v2589
        %v3128 = vunpack.c.h.b16 %v2589
        %v3129 = vunpack.c.l.b16 %v2590
        %v3130 = vunpack.c.h.b16 %v2590
        %v3131 = vunpack.c.l.b16 %v2591
        %v3132 = vunpack.c.l.b16 %v2592
        %v3133 = vunpack.c.h.b16 %v2592
        %v3134 = vunpack.c.l.b16 %v2593
        %v3135 = vunpack.c.h.b16 %v2593
        %v3136 = vunpack.c.l.b16 %v2594
        %v3137 = vunpack.c.h.b16 %v2594
        %v3138 = vunpack.c.l.b16 %v2595
        %v3139 = vunpack.c.h.b16 %v2595
        %v3140 = vunpack.c.l.b16 %v2596
        %v3141 = vunpack.c.l.b16 %v2597
        %v3142 = vunpack.c.h.b16 %v2597
        %v3143 = vunpack.c.l.b16 %v2598
        %v3144 = vunpack.c.h.b16 %v2598
        %v3145 = vunpack.c.l.b16 %v2599
        %v3146 = vunpack.c.h.b16 %v2599
        %v3147 = vunpack.c.l.b16 %v2600
        %v3148 = vunpack.c.h.b16 %v2600
        %v3149 = vunpack.c.l.b16 %v2601
        %v3150 = vunpack.c.l.b16 %v2602
        %v3151 = vunpack.c.h.b16 %v2602
        %v3152 = vunpack.c.l.b16 %v2603
        %v3153 = vunpack.c.h.b16 %v2603
        %v3154 = vunpack.c.l.b16 %v2604
        %v3155 = vunpack.c.h.b16 %v2604
        %v3156 = vunpack.c.l.b16 %v2605
        %v3157 = vunpack.c.h.b16 %v2605
        %v3158 = vunpack.c.l.b16 %v2606
        %v3159 = vunpack.c.l.b16 %v2607
        %v3160 = vunpack.c.h.b16 %v2607
        %v3161 = vunpack.c.l.b16 %v2608
        %v3162 = vunpack.c.h.b16 %v2608
        %v3163 = vunpack.c.l.b16 %v2609
        %v3164 = vunpack.c.h.b16 %v2609
        %v3165 = vunpack.c.l.b16 %v2610
        %v3166 = vunpack.c.h.b16 %v2610
        %v3167 = vunpack.c.l.b16 %v2611
        %v3168 = vunpack.c.l.b16 %v2612
        %v3169 = vunpack.c.h.b16 %v2612
        %v3170 = vunpack.c.l.b16 %v2613
        %v3171 = vunpack.c.h.b16 %v2613
        %v3172 = vunpack.c.l.b16 %v2614
        %v3173 = vunpack.c.h.b16 %v2614
        %v3174 = vunpack.c.l.b16 %v2615
        %v3175 = vunpack.c.h.b16 %v2615
        %v3176 = vunpack.c.l.b16 %v2616
        %v3177 = vunpack.c.l.b16 %v2617
        %v3178 = vunpack.c.h.b16 %v2617
        %v3179 = vunpack.c.l.b16 %v2618
        %v3180 = vunpack.c.h.b16 %v2618
        %v3181 = vunpack.c.l.b16 %v2619
        %v3182 = vunpack.c.h.b16 %v2619
        %v3183 = vunpack.c.l.b16 %v2620
        %v3184 = vunpack.c.h.b16 %v2620
        %v3185 = vunpack.c.l.b16 %v2621
        %v3186 = vunpack.c.l.b16 %v2622
        %v3187 = vunpack.c.h.b16 %v2622
        %v3188 = vunpack.c.l.b16 %v2623
        %v3189 = vunpack.c.h.b16 %v2623
        %v3190 = vunpack.c.l.b16 %v2624
        %v3191 = vunpack.c.h.b16 %v2624
        %v3192 = vunpack.c.l.b16 %v2625
        %v3193 = vunpack.c.h.b16 %v2625
        %v3194 = vunpack.c.l.b16 %v2626
        %v3195 = vunpack.c.l.b16 %v2627
        %v3196 = vunpack.c.h.b16 %v2627
        %v3197 = vunpack.c.l.b16 %v2628
        %v3198 = vunpack.c.h.b16 %v2628
        %v3199 = vunpack.c.l.b16 %v2629
        %v3200 = vunpack.c.h.b16 %v2629
        %v3201 = vunpack.c.l.b16 %v2630
        %v3202 = vunpack.c.h.b16 %v2630
        %v3203 = vunpack.c.l.b16 %v2631
        %v3204 = vunpack.c.l.b16 %v2632
        %v3205 = vunpack.c.h.b16 %v2632
        %v3206 = vunpack.c.l.b16 %v2633
        %v3207 = vunpack.c.h.b16 %v2633
        %v3208 = vunpack.c.l.b16 %v2634
        %v3209 = vunpack.c.h.b16 %v2634
        %v3210 = vunpack.c.l.b16 %v2635
        %v3211 = vunpack.c.h.b16 %v2635
        %v3212 = vunpack.c.l.b16 %v2636
        %v3213 = vunpack.c.l.b16 %v2637
        %v3214 = vunpack.c.h.b16 %v2637
        %v3215 = vunpack.c.l.b16 %v2638
        %v3216 = vunpack.c.h.b16 %v2638
        %v3217 = vunpack.c.l.b16 %v2639
        %v3218 = vunpack.c.h.b16 %v2639
        %v3219 = vunpack.c.l.b16 %v2640
        %v3220 = vunpack.c.h.b16 %v2640
        %v3221 = vunpack.c.l.b16 %v2641
        %v3222 = vunpack.c.l.b16 %v2642
        %v3223 = vunpack.c.h.b16 %v2642
        %v3224 = vunpack.c.l.b16 %v2643
        %v3225 = vunpack.c.h.b16 %v2643
        %v3226 = vunpack.c.l.b16 %v2644
        %v3227 = vunpack.c.h.b16 %v2644
        %v3228 = vunpack.c.l.b16 %v2645
        %v3229 = vunpack.c.h.b16 %v2645
        %v3230 = vunpack.c.l.b16 %v2646
        %v3231 = vunpack.c.l.b16 %v2647
        %v3232 = vunpack.c.h.b16 %v2647
        %v3233 = vunpack.c.l.b16 %v2648
        %v3234 = vunpack.c.h.b16 %v2648
        %v3235 = vunpack.c.l.b16 %v2649
        %v3236 = vunpack.c.h.b16 %v2649
        %v3237 = vunpack.c.l.b16 %v2650
        %v3238 = vunpack.c.h.b16 %v2650
        %v3239 = vunpack.c.l.b16 %v2651
        %v3240 = vunpack.c.l.b16 %v2652
        %v3241 = vunpack.c.h.b16 %v2652
        %v3242 = vunpack.c.l.b16 %v2653
        %v3243 = vunpack.c.h.b16 %v2653
        %v3244 = vunpack.c.l.b16 %v2654
        %v3245 = vunpack.c.h.b16 %v2654
        %v3246 = vunpack.c.l.b16 %v2655
        %v3247 = vunpack.c.h.b16 %v2655
        %v3248 = vunpack.c.l.b16 %v2656
        %v3249 = vunpack.c.l.b16 %v2657
        %v3250 = vunpack.c.h.b16 %v2657
        %v3251 = vunpack.c.l.b16 %v2658
        %v3252 = vunpack.c.h.b16 %v2658
        %v3253 = vunpack.c.l.b16 %v2659
        %v3254 = vunpack.c.h.b16 %v2659
        %v3255 = vunpack.c.l.b16 %v2660
        %v3256 = vunpack.c.h.b16 %v2660
        %v3257 = vunpack.c.l.b16 %v2661
        %v3258 = vpack.c.b16 %v2979, %v2970
        %v3259 = vpack.c.b16 %v2980, %v2971
        %v3260 = vpack.c.b16 %v2981, %v2972
        %v3261 = vpack.c.b16 %v2982, %v2973
        %v3262 = vpack.c.b16 %v2983, %v2974
        %v3263 = vpack.c.b16 %v2984, %v2975
        %v3264 = vpack.c.b16 %v2985, %v2976
        %v3265 = vpack.c.b16 %v2986, %v2977
        %v3266 = vpack.c.b16 %v2987, %v2978
        %v3267 = vpack.c.b16 %v2997, %v2988
        %v3268 = vpack.c.b16 %v2998, %v2989
        %v3269 = vpack.c.b16 %v2999, %v2990
        %v3270 = vpack.c.b16 %v3000, %v2991
        %v3271 = vpack.c.b16 %v3001, %v2992
        %v3272 = vpack.c.b16 %v3002, %v2993
        %v3273 = vpack.c.b16 %v3003, %v2994
        %v3274 = vpack.c.b16 %v3004, %v2995
        %v3275 = vpack.c.b16 %v3005, %v2996
        %v3276 = vpack.c.b16 %v3015, %v3006
        %v3277 = vpack.c.b16 %v3016, %v3007
        %v3278 = vpack.c.b16 %v3017, %v3008
        %v3279 = vpack.c.b16 %v3018, %v3009
        %v3280 = vpack.c.b16 %v3019, %v3010
        %v3281 = vpack.c.b16 %v3020, %v3011
        %v3282 = vpack.c.b16 %v3021, %v3012
        %v3283 = vpack.c.b16 %v3022, %v3013
        %v3284 = vpack.c.b16 %v3023, %v3014
        %v3285 = vpack.c.b16 %v3033, %v3024
        %v3286 = vpack.c.b16 %v3034, %v3025
        %v3287 = vpack.c.b16 %v3035, %v3026
        %v3288 = vpack.c.b16 %v3036, %v3027
        %v3289 = vpack.c.b16 %v3037, %v3028
        %v3290 = vpack.c.b16 %v3038, %v3029
        %v3291 = vpack.c.b16 %v3039, %v3030
        %v3292 = vpack.c.b16 %v3040, %v3031
        %v3293 = vpack.c.b16 %v3041, %v3032
        %v3294 = vpack.c.b16 %v3051, %v3042
        %v3295 = vpack.c.b16 %v3052, %v3043
        %v3296 = vpack.c.b16 %v3053, %v3044
        %v3297 = vpack.c.b16 %v3054, %v3045
        %v3298 = vpack.c.b16 %v3055, %v3046
        %v3299 = vpack.c.b16 %v3056, %v3047
        %v3300 = vpack.c.b16 %v3057, %v3048
        %v3301 = vpack.c.b16 %v3058, %v3049
        %v3302 = vpack.c.b16 %v3059, %v3050
        %v3303 = vpack.c.b16 %v3069, %v3060
        %v3304 = vpack.c.b16 %v3070, %v3061
        %v3305 = vpack.c.b16 %v3071, %v3062
        %v3306 = vpack.c.b16 %v3072, %v3063
        %v3307 = vpack.c.b16 %v3073, %v3064
        %v3308 = vpack.c.b16 %v3074, %v3065
        %v3309 = vpack.c.b16 %v3075, %v3066
        %v3310 = vpack.c.b16 %v3076, %v3067
        %v3311 = vpack.c.b16 %v3077, %v3068
        %v3312 = vpack.c.b16 %v3087, %v3078
        %v3313 = vpack.c.b16 %v3088, %v3079
        %v3314 = vpack.c.b16 %v3089, %v3080
        %v3315 = vpack.c.b16 %v3090, %v3081
        %v3316 = vpack.c.b16 %v3091, %v3082
        %v3317 = vpack.c.b16 %v3092, %v3083
        %v3318 = vpack.c.b16 %v3093, %v3084
        %v3319 = vpack.c.b16 %v3094, %v3085
        %v3320 = vpack.c.b16 %v3095, %v3086
        %v3321 = vpack.c.b16 %v3105, %v3096
        %v3322 = vpack.c.b16 %v3106, %v3097
        %v3323 = vpack.c.b16 %v3107, %v3098
        %v3324 = vpack.c.b16 %v3108, %v3099
        %v3325 = vpack.c.b16 %v3109, %v3100
        %v3326 = vpack.c.b16 %v3110, %v3101
        %v3327 = vpack.c.b16 %v3111, %v3102
        %v3328 = vpack.c.b16 %v3112, %v3103
        %v3329 = vpack.c.b16 %v3113, %v3104
        %v3330 = vpack.c.b16 %v3123, %v3114
        %v3331 = vpack.c.b16 %v3124, %v3115
        %v3332 = vpack.c.b16 %v3125, %v3116
        %v3333 = vpack.c.b16 %v3126, %v3117
        %v3334 = vpack.c.b16 %v3127, %v3118
        %v3335 = vpack.c.b16 %v3128, %v3119
        %v3336 = vpack.c.b16 %v3129, %v3120
        %v3337 = vpack.c.b16 %v3130, %v3121
        %v3338 = vpack.c.b16 %v3131, %v3122
        %v3339 = vpack.c.b16 %v3141, %v3132
        %v3340 = vpack.c.b16 %v3142, %v3133
        %v3341 = vpack.c.b16 %v3143, %v3134
        %v3342 = vpack.c.b16 %v3144, %v3135
        %v3343 = vpack.c.b16 %v3145, %v3136
        %v3344 = vpack.c.b16 %v3146, %v3137
        %v3345 = vpack.c.b16 %v3147, %v3138
        %v3346 = vpack.c.b16 %v3148, %v3139
        %v3347 = vpack.c.b16 %v3149, %v3140
        %v3348 = vpack.c.b16 %v3159, %v3150
        %v3349 = vpack.c.b16 %v3160, %v3151
        %v3350 = vpack.c.b16 %v3161, %v3152
        %v3351 = vpack.c.b16 %v3162, %v3153
        %v3352 = vpack.c.b16 %v3163, %v3154
        %v3353 = vpack.c.b16 %v3164, %v3155
        %v3354 = vpack.c.b16 %v3165, %v3156
        %v3355 = vpack.c.b16 %v3166, %v3157
        %v3356 = vpack.c.b16 %v3167, %v3158
        %v3357 = vpack.c.b16 %v3177, %v3168
        %v3358 = vpack.c.b16 %v3178, %v3169
        %v3359 = vpack.c.b16 %v3179, %v3170
        %v3360 = vpack.c.b16 %v3180, %v3171
        %v3361 = vpack.c.b16 %v3181, %v3172
        %v3362 = vpack.c.b16 %v3182, %v3173
        %v3363 = vpack.c.b16 %v3183, %v3174
        %v3364 = vpack.c.b16 %v3184, %v3175
        %v3365 = vpack.c.b16 %v3185, %v3176
        %v3366 = vpack.c.b16 %v3195, %v3186
        %v3367 = vpack.c.b16 %v3196, %v3187
        %v3368 = vpack.c.b16 %v3197, %v3188
        %v3369 = vpack.c.b16 %v3198, %v3189
        %v3370 = vpack.c.b16 %v3199, %v3190
        %v3371 = vpack.c.b16 %v3200, %v3191
        %v3372 = vpack.c.b16 %v3201, %v3192
        %v3373 = vpack.c.b16 %v3202, %v3193
        %v3374 = vpack.c.b16 %v3203, %v3194
        %v3375 = vpack.c.b16 %v3213, %v3204
        %v3376 = vpack.c.b16 %v3214, %v3205
        %v3377 = vpack.c.b16 %v3215, %v3206
        %v3378 = vpack.c.b16 %v3216, %v3207
        %v3379 = vpack.c.b16 %v3217, %v3208
        %v3380 = vpack.c.b16 %v3218, %v3209
        %v3381 = vpack.c.b16 %v3219, %v3210
        %v3382 = vpack.c.b16 %v3220, %v3211
        %v3383 = vpack.c.b16 %v3221, %v3212
        %v3384 = vpack.c.b16 %v3231, %v3222
        %v3385 = vpack.c.b16 %v3232, %v3223
        %v3386 = vpack.c.b16 %v3233, %v3224
        %v3387 = vpack.c.b16 %v3234, %v3225
        %v3388 = vpack.c.b16 %v3235, %v3226
        %v3389 = vpack.c.b16 %v3236, %v3227
        %v3390 = vpack.c.b16 %v3237, %v3228
        %v3391 = vpack.c.b16 %v3238, %v3229
        %v3392 = vpack.c.b16 %v3239, %v3230
        %v3393 = vpack.c.b16 %v3249, %v3240
        %v3394 = vpack.c.b16 %v3250, %v3241
        %v3395 = vpack.c.b16 %v3251, %v3242
        %v3396 = vpack.c.b16 %v3252, %v3243
        %v3397 = vpack.c.b16 %v3253, %v3244
        %v3398 = vpack.c.b16 %v3254, %v3245
        %v3399 = vpack.c.b16 %v3255, %v3246
        %v3400 = vpack.c.b16 %v3256, %v3247
        %v3401 = vpack.c.b16 %v3257, %v3248
        %v3690 = vunpack.c.l.b16 %v2662
        %v3691 = vunpack.c.l.b16 %v2663
        %v3692 = vunpack.c.l.b16 %v2664
        %v3693 = vunpack.c.l.b16 %v2665
        %v3694 = vunpack.c.l.b16 %v2666
        %v3695 = vunpack.c.l.b16 %v2667
        %v3696 = vunpack.c.l.b16 %v2668
        %v3697 = vunpack.c.l.b16 %v2669
        %v3698 = vunpack.c.l.b16 %v2670
        %v3699 = vunpack.c.l.b16 %v2671
        %v3700 = vunpack.c.l.b16 %v2672
        %v3701 = vunpack.c.l.b16 %v2673
        %v3702 = vunpack.c.l.b16 %v2674
        %v3703 = vunpack.c.l.b16 %v2675
        %v3704 = vunpack.c.l.b16 %v2676
        %v3705 = vunpack.c.l.b16 %v2677
        %v3706 = vunpack.c.l.b16 %v2678
        %v3707 = vunpack.c.l.b16 %v2679
        %v3708 = vunpack.c.l.b16 %v2680
        %v3709 = vunpack.c.l.b16 %v2681
        %v3710 = vunpack.c.l.b16 %v2682
        %v3711 = vunpack.c.l.b16 %v2683
        %v3712 = vunpack.c.l.b16 %v2684
        %v3713 = vunpack.c.l.b16 %v2685
        %v3714 = vunpack.c.l.b16 %v2686
        %v3715 = vunpack.c.l.b16 %v2687
        %v3716 = vunpack.c.l.b16 %v2688
        %v3717 = vunpack.c.l.b16 %v2689
        %v3718 = vunpack.c.l.b16 %v2690
        %v3719 = vunpack.c.l.b16 %v2691
        %v3720 = vunpack.c.l.b16 %v2692
        %v3721 = vunpack.c.l.b16 %v2693
        %v3722 = vunpack.c.l.b16 %v2694
        %v3723 = vunpack.c.l.b16 %v2695
        %v3724 = vunpack.c.l.b16 %v2696
        %v3725 = vunpack.c.l.b16 %v2697
        %v3726 = vunpack.c.l.b16 %v2698
        %v3727 = vunpack.c.l.b16 %v2699
        %v3728 = vunpack.c.l.b16 %v2700
        %v3729 = vunpack.c.l.b16 %v2701
        %v3730 = vunpack.c.l.b16 %v2702
        %v3731 = vunpack.c.l.b16 %v2703
        %v3732 = vunpack.c.l.b16 %v2704
        %v3733 = vunpack.c.l.b16 %v2705
        %v3734 = vunpack.c.l.b16 %v2706
        %v3735 = vunpack.c.l.b16 %v2707
        %v3736 = vunpack.c.l.b16 %v2708
        %v3737 = vunpack.c.l.b16 %v2709
        %v3738 = vunpack.c.l.b16 %v2710
        %v3739 = vunpack.c.l.b16 %v2711
        %v3740 = vunpack.c.l.b16 %v2712
        %v3741 = vunpack.c.l.b16 %v2713
        %v3742 = vunpack.c.l.b16 %v2714
        %v3743 = vunpack.c.l.b16 %v2715
        %v3744 = vunpack.c.l.b16 %v2716
        %v3745 = vunpack.c.l.b16 %v2717
        %v3746 = vunpack.c.l.b16 %v2718
        %v3747 = vunpack.c.l.b16 %v2719
        %v3748 = vunpack.c.l.b16 %v2720
        %v3749 = vunpack.c.l.b16 %v2721
        %v3750 = vunpack.c.l.b16 %v2722
        %v3751 = vunpack.c.l.b16 %v2723
        %v3752 = vunpack.c.l.b16 %v2724
        %v3753 = vunpack.c.l.b16 %v2725
        %v3754 = vunpack.c.l.b16 %v2726
        %v3755 = vunpack.c.l.b16 %v2727
        %v3756 = vunpack.c.l.b16 %v2728
        %v3757 = vunpack.c.l.b16 %v2729
        %v3758 = vunpack.c.l.b16 %v2730
        %v3759 = vunpack.c.l.b16 %v2731
        %v3760 = vunpack.c.l.b16 %v2732
        %v3761 = vunpack.c.l.b16 %v2733
        %v3762 = vunpack.c.l.b16 %v2734
        %v3763 = vunpack.c.l.b16 %v2735
        %v3764 = vunpack.c.l.b16 %v2736
        %v3765 = vunpack.c.l.b16 %v2737
        %v3766 = vunpack.c.l.b16 %v2738
        %v3767 = vunpack.c.l.b16 %v2739
        %v3768 = vunpack.c.l.b16 %v2740
        %v3769 = vunpack.c.l.b16 %v2741
        %v3770 = vunpack.c.l.b16 %v2742
        %v3771 = vunpack.c.l.b16 %v2743
        %v3772 = vunpack.c.l.b16 %v2744
        %v3773 = vunpack.c.l.b16 %v2745
        %v3774 = vunpack.c.l.b16 %v2746
        %v3775 = vunpack.c.l.b16 %v2747
        %v3776 = vunpack.c.l.b16 %v2748
        %v3777 = vunpack.c.l.b16 %v2749
        %v3778 = vunpack.c.l.b16 %v2750
        %v3779 = vunpack.c.l.b16 %v2751
        %v3780 = vunpack.c.l.b16 %v2752
        %v3781 = vunpack.c.l.b16 %v2753
        %v3782 = vunpack.c.l.b16 %v2754
        %v3783 = vunpack.c.l.b16 %v2755
        %v3784 = vunpack.c.l.b16 %v2756
        %v3785 = vunpack.c.l.b16 %v2757
        %v3786 = vunpack.c.l.b16 %v2758
        %v3787 = vunpack.c.l.b16 %v2759
        %v3788 = vunpack.c.l.b16 %v2760
        %v3789 = vunpack.c.l.b16 %v2761
        %v3790 = vunpack.c.l.b16 %v2762
        %v3791 = vunpack.c.l.b16 %v2763
        %v3792 = vunpack.c.l.b16 %v2764
        %v3793 = vunpack.c.l.b16 %v2765
        %v3794 = vunpack.c.l.b16 %v2766
        %v3795 = vunpack.c.l.b16 %v2767
        %v3796 = vunpack.c.l.b16 %v2768
        %v3797 = vunpack.c.l.b16 %v2769
        %v3798 = vunpack.c.l.b16 %v2770
        %v3799 = vunpack.c.l.b16 %v2771
        %v3800 = vunpack.c.l.b16 %v2772
        %v3801 = vunpack.c.l.b16 %v2773
        %v3802 = vunpack.c.l.b16 %v2774
        %v3803 = vunpack.c.l.b16 %v2775
        %v3804 = vunpack.c.l.b16 %v2776
        %v3805 = vunpack.c.l.b16 %v2777
        %v3806 = vunpack.c.l.b16 %v2778
        %v3807 = vunpack.c.l.b16 %v2779
        %v3808 = vunpack.c.l.b16 %v2780
        %v3809 = vunpack.c.l.b16 %v2781
        %v3810 = vunpack.c.l.b16 %v2782
        %v3811 = vunpack.c.l.b16 %v2783
        %v3812 = vunpack.c.l.b16 %v2784
        %v3813 = vunpack.c.l.b16 %v2785
        %v3814 = vunpack.c.l.b16 %v2786
        %v3815 = vunpack.c.l.b16 %v2787
        %v3816 = vunpack.c.l.b16 %v2788
        %v3817 = vunpack.c.l.b16 %v2789
        %v3818 = vunpack.c.l.b16 %v2790
        %v3819 = vunpack.c.l.b16 %v2791
        %v3820 = vunpack.c.l.b16 %v2792
        %v3821 = vunpack.c.l.b16 %v2793
        %v3822 = vunpack.c.l.b16 %v2794
        %v3823 = vunpack.c.l.b16 %v2795
        %v3824 = vunpack.c.l.b16 %v2796
        %v3825 = vunpack.c.l.b16 %v2797
        %v3826 = vunpack.c.l.b16 %v2798
        %v3827 = vunpack.c.l.b16 %v2799
        %v3828 = vunpack.c.l.b16 %v2800
        %v3829 = vunpack.c.l.b16 %v2801
        %v3830 = vunpack.c.l.b16 %v2802
        %v3831 = vunpack.c.l.b16 %v2803
        %v3832 = vunpack.c.l.b16 %v2804
        %v3833 = vunpack.c.l.b16 %v2805
        %v3834 = vpack.c.b16 %v3691, %v3690
        %v3835 = vpack.c.b16 %v3693, %v3692
        %v3836 = vpack.c.b16 %v3695, %v3694
        %v3837 = vpack.c.b16 %v3697, %v3696
        %v3838 = vpack.c.b16 %v3699, %v3698
        %v3839 = vpack.c.b16 %v3701, %v3700
        %v3840 = vpack.c.b16 %v3703, %v3702
        %v3841 = vpack.c.b16 %v3705, %v3704
        %v3842 = vpack.c.b16 %v3707, %v3706
        %v3843 = vpack.c.b16 %v3709, %v3708
        %v3844 = vpack.c.b16 %v3711, %v3710
        %v3845 = vpack.c.b16 %v3713, %v3712
        %v3846 = vpack.c.b16 %v3715, %v3714
        %v3847 = vpack.c.b16 %v3717, %v3716
        %v3848 = vpack.c.b16 %v3719, %v3718
        %v3849 = vpack.c.b16 %v3721, %v3720
        %v3850 = vpack.c.b16 %v3723, %v3722
        %v3851 = vpack.c.b16 %v3725, %v3724
        %v3852 = vpack.c.b16 %v3727, %v3726
        %v3853 = vpack.c.b16 %v3729, %v3728
        %v3854 = vpack.c.b16 %v3731, %v3730
        %v3855 = vpack.c.b16 %v3733, %v3732
        %v3856 = vpack.c.b16 %v3735, %v3734
        %v3857 = vpack.c.b16 %v3737, %v3736
        %v3858 = vpack.c.b16 %v3739, %v3738
        %v3859 = vpack.c.b16 %v3741, %v3740
        %v3860 = vpack.c.b16 %v3743, %v3742
        %v3861 = vpack.c.b16 %v3745, %v3744
        %v3862 = vpack.c.b16 %v3747, %v3746
        %v3863 = vpack.c.b16 %v3749, %v3748
        %v3864 = vpack.c.b16 %v3751, %v3750
        %v3865 = vpack.c.b16 %v3753, %v3752
        %v3866 = vpack.c.b16 %v3755, %v3754
        %v3867 = vpack.c.b16 %v3757, %v3756
        %v3868 = vpack.c.b16 %v3759, %v3758
        %v3869 = vpack.c.b16 %v3761, %v3760
        %v3870 = vpack.c.b16 %v3763, %v3762
        %v3871 = vpack.c.b16 %v3765, %v3764
        %v3872 = vpack.c.b16 %v3767, %v3766
        %v3873 = vpack.c.b16 %v3769, %v3768
        %v3874 = vpack.c.b16 %v3771, %v3770
        %v3875 = vpack.c.b16 %v3773, %v3772
        %v3876 = vpack.c.b16 %v3775, %v3774
        %v3877 = vpack.c.b16 %v3777, %v3776
        %v3878 = vpack.c.b16 %v3779, %v3778
        %v3879 = vpack.c.b16 %v3781, %v3780
        %v3880 = vpack.c.b16 %v3783, %v3782
        %v3881 = vpack.c.b16 %v3785, %v3784
        %v3882 = vpack.c.b16 %v3787, %v3786
        %v3883 = vpack.c.b16 %v3789, %v3788
        %v3884 = vpack.c.b16 %v3791, %v3790
        %v3885 = vpack.c.b16 %v3793, %v3792
        %v3886 = vpack.c.b16 %v3795, %v3794
        %v3887 = vpack.c.b16 %v3797, %v3796
        %v3888 = vpack.c.b16 %v3799, %v3798
        %v3889 = vpack.c.b16 %v3801, %v3800
        %v3890 = vpack.c.b16 %v3803, %v3802
        %v3891 = vpack.c.b16 %v3805, %v3804
        %v3892 = vpack.c.b16 %v3807, %v3806
        %v3893 = vpack.c.b16 %v3809, %v3808
        %v3894 = vpack.c.b16 %v3811, %v3810
        %v3895 = vpack.c.b16 %v3813, %v3812
        %v3896 = vpack.c.b16 %v3815, %v3814
        %v3897 = vpack.c.b16 %v3817, %v3816
        %v3898 = vpack.c.b16 %v3819, %v3818
        %v3899 = vpack.c.b16 %v3821, %v3820
        %v3900 = vpack.c.b16 %v3823, %v3822
        %v3901 = vpack.c.b16 %v3825, %v3824
        %v3902 = vpack.c.b16 %v3827, %v3826
        %v3903 = vpack.c.b16 %v3829, %v3828
        %v3904 = vpack.c.b16 %v3831, %v3830
        %v3905 = vpack.c.b16 %v3833, %v3832
        %3978 = vmatpush.bf16.msra.mxu0 %v3841
        %3979 = vmatpush.bf16.msra.mxu0 %v3840
        %3980 = vmatpush.bf16.msra.mxu0 %v3839
        %3981 = vmatpush.bf16.msra.mxu0 %v3838
        %3982 = vmatpush.bf16.msra.mxu0 %v3837
        %3983 = vmatpush.bf16.msra.mxu0 %v3836
        %3984 = vmatpush.bf16.msra.mxu0 %v3835
        %3985 = vmatpush.bf16.msra.mxu0 %v3834
        %3986 = vmatmul.bf16.gmra.mxu0 %v3258
        %v3987 = vpop.f32.mrf.mxu0
        %v3988 = vadd.f32 %v2808, %v3987
        %v3989 = vpop.f32.mrf.mxu0
        %v3990 = vadd.f32 %v2808, %v3989
        %3991 = vmatmul.bf16.gmra.mxu0 %v3267
        %v3992 = vpop.f32.mrf.mxu0
        %v3993 = vadd.f32 %v2808, %v3992
        %v3994 = vpop.f32.mrf.mxu0
        %v3995 = vadd.f32 %v2808, %v3994
        %3996 = vmatmul.bf16.gmra.mxu0 %v3276
        %v3997 = vpop.f32.mrf.mxu0
        %v3998 = vadd.f32 %v2808, %v3997
        %v3999 = vpop.f32.mrf.mxu0
        %v4000 = vadd.f32 %v2808, %v3999
        %4001 = vmatmul.bf16.gmra.mxu0 %v3285
        %v4002 = vpop.f32.mrf.mxu0
        %v4003 = vadd.f32 %v2808, %v4002
        %v4004 = vpop.f32.mrf.mxu0
        %v4005 = vadd.f32 %v2808, %v4004
        %4006 = vmatmul.bf16.gmra.mxu0 %v3294
        %v4007 = vpop.f32.mrf.mxu0
        %v4008 = vadd.f32 %v2808, %v4007
        %v4009 = vpop.f32.mrf.mxu0
        %v4010 = vadd.f32 %v2808, %v4009
        %4011 = vmatmul.bf16.gmra.mxu0 %v3303
        %v4012 = vpop.f32.mrf.mxu0
        %v4013 = vadd.f32 %v2808, %v4012
        %v4014 = vpop.f32.mrf.mxu0
        %v4015 = vadd.f32 %v2808, %v4014
        %4016 = vmatmul.bf16.gmra.mxu0 %v3312
        %v4017 = vpop.f32.mrf.mxu0
        %v4018 = vadd.f32 %v2808, %v4017
        %v4019 = vpop.f32.mrf.mxu0
        %v4020 = vadd.f32 %v2808, %v4019
        %4021 = vmatmul.bf16.gmra.mxu0 %v3321
        %v4022 = vpop.f32.mrf.mxu0
        %v4023 = vadd.f32 %v2808, %v4022
        %v4024 = vpop.f32.mrf.mxu0
        %v4025 = vadd.f32 %v2808, %v4024
        %4026 = vmatmul.bf16.gmra.mxu0 %v3330
        %v4027 = vpop.f32.mrf.mxu0
        %v4028 = vadd.f32 %v2808, %v4027
        %v4029 = vpop.f32.mrf.mxu0
        %v4030 = vadd.f32 %v2808, %v4029
        %4031 = vmatmul.bf16.gmra.mxu0 %v3339
        %v4032 = vpop.f32.mrf.mxu0
        %v4033 = vadd.f32 %v2808, %v4032
        %v4034 = vpop.f32.mrf.mxu0
        %v4035 = vadd.f32 %v2808, %v4034
        %4036 = vmatmul.bf16.gmra.mxu0 %v3348
        %v4037 = vpop.f32.mrf.mxu0
        %v4038 = vadd.f32 %v2808, %v4037
        %v4039 = vpop.f32.mrf.mxu0
        %v4040 = vadd.f32 %v2808, %v4039
        %4041 = vmatmul.bf16.gmra.mxu0 %v3357
        %v4042 = vpop.f32.mrf.mxu0
        %v4043 = vadd.f32 %v2808, %v4042
        %v4044 = vpop.f32.mrf.mxu0
        %v4045 = vadd.f32 %v2808, %v4044
        %4046 = vmatmul.bf16.gmra.mxu0 %v3366
        %v4047 = vpop.f32.mrf.mxu0
        %v4048 = vadd.f32 %v2808, %v4047
        %v4049 = vpop.f32.mrf.mxu0
        %v4050 = vadd.f32 %v2808, %v4049
        %4051 = vmatmul.bf16.gmra.mxu0 %v3375
        %v4052 = vpop.f32.mrf.mxu0
        %v4053 = vadd.f32 %v2808, %v4052
        %v4054 = vpop.f32.mrf.mxu0
        %v4055 = vadd.f32 %v2808, %v4054
        %4056 = vmatmul.bf16.gmra.mxu0 %v3384
        %v4057 = vpop.f32.mrf.mxu0
        %v4058 = vadd.f32 %v2808, %v4057
        %v4059 = vpop.f32.mrf.mxu0
        %v4060 = vadd.f32 %v2808, %v4059
        %4061 = vmatmul.bf16.gmra.mxu0 %v3393
        %v4062 = vpop.f32.mrf.mxu0
        %v4063 = vadd.f32 %v2808, %v4062
        %v4064 = vpop.f32.mrf.mxu0
        %v4065 = vadd.f32 %v2808, %v4064
        %4066 = vdwg.mxu0
        %4067 = vmatpush.bf16.msra.mxu0 %v3849
        %4068 = vmatpush.bf16.msra.mxu0 %v3848
        %4069 = vmatpush.bf16.msra.mxu0 %v3847
        %4070 = vmatpush.bf16.msra.mxu0 %v3846
        %4071 = vmatpush.bf16.msra.mxu0 %v3845
        %4072 = vmatpush.bf16.msra.mxu0 %v3844
        %4073 = vmatpush.bf16.msra.mxu0 %v3843
        %4074 = vmatpush.bf16.msra.mxu0 %v3842
        %4075 = vmatmul.bf16.gmra.mxu0 %v3259
        %v4076 = vpop.f32.mrf.mxu0
        %v4077 = vadd.f32 %v3988, %v4076
        %v4078 = vpop.f32.mrf.mxu0
        %v4079 = vadd.f32 %v3990, %v4078
        %4080 = vmatmul.bf16.gmra.mxu0 %v3268
        %v4081 = vpop.f32.mrf.mxu0
        %v4082 = vadd.f32 %v3993, %v4081
        %v4083 = vpop.f32.mrf.mxu0
        %v4084 = vadd.f32 %v3995, %v4083
        %4085 = vmatmul.bf16.gmra.mxu0 %v3277
        %v4086 = vpop.f32.mrf.mxu0
        %v4087 = vadd.f32 %v3998, %v4086
        %v4088 = vpop.f32.mrf.mxu0
        %v4089 = vadd.f32 %v4000, %v4088
        %4090 = vmatmul.bf16.gmra.mxu0 %v3286
        %v4091 = vpop.f32.mrf.mxu0
        %v4092 = vadd.f32 %v4003, %v4091
        %v4093 = vpop.f32.mrf.mxu0
        %v4094 = vadd.f32 %v4005, %v4093
        %4095 = vmatmul.bf16.gmra.mxu0 %v3295
        %v4096 = vpop.f32.mrf.mxu0
        %v4097 = vadd.f32 %v4008, %v4096
        %v4098 = vpop.f32.mrf.mxu0
        %v4099 = vadd.f32 %v4010, %v4098
        %4100 = vmatmul.bf16.gmra.mxu0 %v3304
        %v4101 = vpop.f32.mrf.mxu0
        %v4102 = vadd.f32 %v4013, %v4101
        %v4103 = vpop.f32.mrf.mxu0
        %v4104 = vadd.f32 %v4015, %v4103
        %4105 = vmatmul.bf16.gmra.mxu0 %v3313
        %v4106 = vpop.f32.mrf.mxu0
        %v4107 = vadd.f32 %v4018, %v4106
        %v4108 = vpop.f32.mrf.mxu0
        %v4109 = vadd.f32 %v4020, %v4108
        %4110 = vmatmul.bf16.gmra.mxu0 %v3322
        %v4111 = vpop.f32.mrf.mxu0
        %v4112 = vadd.f32 %v4023, %v4111
        %v4113 = vpop.f32.mrf.mxu0
        %v4114 = vadd.f32 %v4025, %v4113
        %4115 = vmatmul.bf16.gmra.mxu0 %v3331
        %v4116 = vpop.f32.mrf.mxu0
        %v4117 = vadd.f32 %v4028, %v4116
        %v4118 = vpop.f32.mrf.mxu0
        %v4119 = vadd.f32 %v4030, %v4118
        %4120 = vmatmul.bf16.gmra.mxu0 %v3340
        %v4121 = vpop.f32.mrf.mxu0
        %v4122 = vadd.f32 %v4033, %v4121
        %v4123 = vpop.f32.mrf.mxu0
        %v4124 = vadd.f32 %v4035, %v4123
        %4125 = vmatmul.bf16.gmra.mxu0 %v3349
        %v4126 = vpop.f32.mrf.mxu0
        %v4127 = vadd.f32 %v4038, %v4126
        %v4128 = vpop.f32.mrf.mxu0
        %v4129 = vadd.f32 %v4040, %v4128
        %4130 = vmatmul.bf16.gmra.mxu0 %v3358
        %v4131 = vpop.f32.mrf.mxu0
        %v4132 = vadd.f32 %v4043, %v4131
        %v4133 = vpop.f32.mrf.mxu0
        %v4134 = vadd.f32 %v4045, %v4133
        %4135 = vmatmul.bf16.gmra.mxu0 %v3367
        %v4136 = vpop.f32.mrf.mxu0
        %v4137 = vadd.f32 %v4048, %v4136
        %v4138 = vpop.f32.mrf.mxu0
        %v4139 = vadd.f32 %v4050, %v4138
        %4140 = vmatmul.bf16.gmra.mxu0 %v3376
        %v4141 = vpop.f32.mrf.mxu0
        %v4142 = vadd.f32 %v4053, %v4141
        %v4143 = vpop.f32.mrf.mxu0
        %v4144 = vadd.f32 %v4055, %v4143
        %4145 = vmatmul.bf16.gmra.mxu0 %v3385
        %v4146 = vpop.f32.mrf.mxu0
        %v4147 = vadd.f32 %v4058, %v4146
        %v4148 = vpop.f32.mrf.mxu0
        %v4149 = vadd.f32 %v4060, %v4148
        %4150 = vmatmul.bf16.gmra.mxu0 %v3394
        %v4151 = vpop.f32.mrf.mxu0
        %v4152 = vadd.f32 %v4063, %v4151
        %v4153 = vpop.f32.mrf.mxu0
        %v4154 = vadd.f32 %v4065, %v4153
        %4155 = vdwg.mxu0
        %4156 = vmatpush.bf16.msra.mxu0 %v3857
        %4157 = vmatpush.bf16.msra.mxu0 %v3856
        %4158 = vmatpush.bf16.msra.mxu0 %v3855
        %4159 = vmatpush.bf16.msra.mxu0 %v3854
        %4160 = vmatpush.bf16.msra.mxu0 %v3853
        %4161 = vmatpush.bf16.msra.mxu0 %v3852
        %4162 = vmatpush.bf16.msra.mxu0 %v3851
        %4163 = vmatpush.bf16.msra.mxu0 %v3850
        %4164 = vmatmul.bf16.gmra.mxu0 %v3260
        %v4165 = vpop.f32.mrf.mxu0
        %v4166 = vadd.f32 %v4077, %v4165
        %v4167 = vpop.f32.mrf.mxu0
        %v4168 = vadd.f32 %v4079, %v4167
        %4169 = vmatmul.bf16.gmra.mxu0 %v3269
        %v4170 = vpop.f32.mrf.mxu0
        %v4171 = vadd.f32 %v4082, %v4170
        %v4172 = vpop.f32.mrf.mxu0
        %v4173 = vadd.f32 %v4084, %v4172
        %4174 = vmatmul.bf16.gmra.mxu0 %v3278
        %v4175 = vpop.f32.mrf.mxu0
        %v4176 = vadd.f32 %v4087, %v4175
        %v4177 = vpop.f32.mrf.mxu0
        %v4178 = vadd.f32 %v4089, %v4177
        %4179 = vmatmul.bf16.gmra.mxu0 %v3287
        %v4180 = vpop.f32.mrf.mxu0
        %v4181 = vadd.f32 %v4092, %v4180
        %v4182 = vpop.f32.mrf.mxu0
        %v4183 = vadd.f32 %v4094, %v4182
        %4184 = vmatmul.bf16.gmra.mxu0 %v3296
        %v4185 = vpop.f32.mrf.mxu0
        %v4186 = vadd.f32 %v4097, %v4185
        %v4187 = vpop.f32.mrf.mxu0
        %v4188 = vadd.f32 %v4099, %v4187
        %4189 = vmatmul.bf16.gmra.mxu0 %v3305
        %v4190 = vpop.f32.mrf.mxu0
        %v4191 = vadd.f32 %v4102, %v4190
        %v4192 = vpop.f32.mrf.mxu0
        %v4193 = vadd.f32 %v4104, %v4192
        %4194 = vmatmul.bf16.gmra.mxu0 %v3314
        %v4195 = vpop.f32.mrf.mxu0
        %v4196 = vadd.f32 %v4107, %v4195
        %v4197 = vpop.f32.mrf.mxu0
        %v4198 = vadd.f32 %v4109, %v4197
        %4199 = vmatmul.bf16.gmra.mxu0 %v3323
        %v4200 = vpop.f32.mrf.mxu0
        %v4201 = vadd.f32 %v4112, %v4200
        %v4202 = vpop.f32.mrf.mxu0
        %v4203 = vadd.f32 %v4114, %v4202
        %4204 = vmatmul.bf16.gmra.mxu0 %v3332
        %v4205 = vpop.f32.mrf.mxu0
        %v4206 = vadd.f32 %v4117, %v4205
        %v4207 = vpop.f32.mrf.mxu0
        %v4208 = vadd.f32 %v4119, %v4207
        %4209 = vmatmul.bf16.gmra.mxu0 %v3341
        %v4210 = vpop.f32.mrf.mxu0
        %v4211 = vadd.f32 %v4122, %v4210
        %v4212 = vpop.f32.mrf.mxu0
        %v4213 = vadd.f32 %v4124, %v4212
        %4214 = vmatmul.bf16.gmra.mxu0 %v3350
        %v4215 = vpop.f32.mrf.mxu0
        %v4216 = vadd.f32 %v4127, %v4215
        %v4217 = vpop.f32.mrf.mxu0
        %v4218 = vadd.f32 %v4129, %v4217
        %4219 = vmatmul.bf16.gmra.mxu0 %v3359
        %v4220 = vpop.f32.mrf.mxu0
        %v4221 = vadd.f32 %v4132, %v4220
        %v4222 = vpop.f32.mrf.mxu0
        %v4223 = vadd.f32 %v4134, %v4222
        %4224 = vmatmul.bf16.gmra.mxu0 %v3368
        %v4225 = vpop.f32.mrf.mxu0
        %v4226 = vadd.f32 %v4137, %v4225
        %v4227 = vpop.f32.mrf.mxu0
        %v4228 = vadd.f32 %v4139, %v4227
        %4229 = vmatmul.bf16.gmra.mxu0 %v3377
        %v4230 = vpop.f32.mrf.mxu0
        %v4231 = vadd.f32 %v4142, %v4230
        %v4232 = vpop.f32.mrf.mxu0
        %v4233 = vadd.f32 %v4144, %v4232
        %4234 = vmatmul.bf16.gmra.mxu0 %v3386
        %v4235 = vpop.f32.mrf.mxu0
        %v4236 = vadd.f32 %v4147, %v4235
        %v4237 = vpop.f32.mrf.mxu0
        %v4238 = vadd.f32 %v4149, %v4237
        %4239 = vmatmul.bf16.gmra.mxu0 %v3395
        %v4240 = vpop.f32.mrf.mxu0
        %v4241 = vadd.f32 %v4152, %v4240
        %v4242 = vpop.f32.mrf.mxu0
        %v4243 = vadd.f32 %v4154, %v4242
        %4244 = vdwg.mxu0
        %4245 = vmatpush.bf16.msra.mxu0 %v3865
        %4246 = vmatpush.bf16.msra.mxu0 %v3864
        %4247 = vmatpush.bf16.msra.mxu0 %v3863
        %4248 = vmatpush.bf16.msra.mxu0 %v3862
        %4249 = vmatpush.bf16.msra.mxu0 %v3861
        %4250 = vmatpush.bf16.msra.mxu0 %v3860
        %4251 = vmatpush.bf16.msra.mxu0 %v3859
        %4252 = vmatpush.bf16.msra.mxu0 %v3858
        %4253 = vmatmul.bf16.gmra.mxu0 %v3261
        %v4254 = vpop.f32.mrf.mxu0
        %v4255 = vadd.f32 %v4166, %v4254
        %v4256 = vpop.f32.mrf.mxu0
        %v4257 = vadd.f32 %v4168, %v4256
        %4258 = vmatmul.bf16.gmra.mxu0 %v3270
        %v4259 = vpop.f32.mrf.mxu0
        %v4260 = vadd.f32 %v4171, %v4259
        %v4261 = vpop.f32.mrf.mxu0
        %v4262 = vadd.f32 %v4173, %v4261
        %4263 = vmatmul.bf16.gmra.mxu0 %v3279
        %v4264 = vpop.f32.mrf.mxu0
        %v4265 = vadd.f32 %v4176, %v4264
        %v4266 = vpop.f32.mrf.mxu0
        %v4267 = vadd.f32 %v4178, %v4266
        %4268 = vmatmul.bf16.gmra.mxu0 %v3288
        %v4269 = vpop.f32.mrf.mxu0
        %v4270 = vadd.f32 %v4181, %v4269
        %v4271 = vpop.f32.mrf.mxu0
        %v4272 = vadd.f32 %v4183, %v4271
        %4273 = vmatmul.bf16.gmra.mxu0 %v3297
        %v4274 = vpop.f32.mrf.mxu0
        %v4275 = vadd.f32 %v4186, %v4274
        %v4276 = vpop.f32.mrf.mxu0
        %v4277 = vadd.f32 %v4188, %v4276
        %4278 = vmatmul.bf16.gmra.mxu0 %v3306
        %v4279 = vpop.f32.mrf.mxu0
        %v4280 = vadd.f32 %v4191, %v4279
        %v4281 = vpop.f32.mrf.mxu0
        %v4282 = vadd.f32 %v4193, %v4281
        %4283 = vmatmul.bf16.gmra.mxu0 %v3315
        %v4284 = vpop.f32.mrf.mxu0
        %v4285 = vadd.f32 %v4196, %v4284
        %v4286 = vpop.f32.mrf.mxu0
        %v4287 = vadd.f32 %v4198, %v4286
        %4288 = vmatmul.bf16.gmra.mxu0 %v3324
        %v4289 = vpop.f32.mrf.mxu0
        %v4290 = vadd.f32 %v4201, %v4289
        %v4291 = vpop.f32.mrf.mxu0
        %v4292 = vadd.f32 %v4203, %v4291
        %4293 = vmatmul.bf16.gmra.mxu0 %v3333
        %v4294 = vpop.f32.mrf.mxu0
        %v4295 = vadd.f32 %v4206, %v4294
        %v4296 = vpop.f32.mrf.mxu0
        %v4297 = vadd.f32 %v4208, %v4296
        %4298 = vmatmul.bf16.gmra.mxu0 %v3342
        %v4299 = vpop.f32.mrf.mxu0
        %v4300 = vadd.f32 %v4211, %v4299
        %v4301 = vpop.f32.mrf.mxu0
        %v4302 = vadd.f32 %v4213, %v4301
        %4303 = vmatmul.bf16.gmra.mxu0 %v3351
        %v4304 = vpop.f32.mrf.mxu0
        %v4305 = vadd.f32 %v4216, %v4304
        %v4306 = vpop.f32.mrf.mxu0
        %v4307 = vadd.f32 %v4218, %v4306
        %4308 = vmatmul.bf16.gmra.mxu0 %v3360
        %v4309 = vpop.f32.mrf.mxu0
        %v4310 = vadd.f32 %v4221, %v4309
        %v4311 = vpop.f32.mrf.mxu0
        %v4312 = vadd.f32 %v4223, %v4311
        %4313 = vmatmul.bf16.gmra.mxu0 %v3369
        %v4314 = vpop.f32.mrf.mxu0
        %v4315 = vadd.f32 %v4226, %v4314
        %v4316 = vpop.f32.mrf.mxu0
        %v4317 = vadd.f32 %v4228, %v4316
        %4318 = vmatmul.bf16.gmra.mxu0 %v3378
        %v4319 = vpop.f32.mrf.mxu0
        %v4320 = vadd.f32 %v4231, %v4319
        %v4321 = vpop.f32.mrf.mxu0
        %v4322 = vadd.f32 %v4233, %v4321
        %4323 = vmatmul.bf16.gmra.mxu0 %v3387
        %v4324 = vpop.f32.mrf.mxu0
        %v4325 = vadd.f32 %v4236, %v4324
        %v4326 = vpop.f32.mrf.mxu0
        %v4327 = vadd.f32 %v4238, %v4326
        %4328 = vmatmul.bf16.gmra.mxu0 %v3396
        %v4329 = vpop.f32.mrf.mxu0
        %v4330 = vadd.f32 %v4241, %v4329
        %v4331 = vpop.f32.mrf.mxu0
        %v4332 = vadd.f32 %v4243, %v4331
        %4333 = vdwg.mxu0
        %4334 = vmatpush.bf16.msra.mxu0 %v3873
        %4335 = vmatpush.bf16.msra.mxu0 %v3872
        %4336 = vmatpush.bf16.msra.mxu0 %v3871
        %4337 = vmatpush.bf16.msra.mxu0 %v3870
        %4338 = vmatpush.bf16.msra.mxu0 %v3869
        %4339 = vmatpush.bf16.msra.mxu0 %v3868
        %4340 = vmatpush.bf16.msra.mxu0 %v3867
        %4341 = vmatpush.bf16.msra.mxu0 %v3866
        %4342 = vmatmul.bf16.gmra.mxu0 %v3262
        %v4343 = vpop.f32.mrf.mxu0
        %v4344 = vadd.f32 %v4255, %v4343
        %v4345 = vpop.f32.mrf.mxu0
        %v4346 = vadd.f32 %v4257, %v4345
        %4347 = vmatmul.bf16.gmra.mxu0 %v3271
        %v4348 = vpop.f32.mrf.mxu0
        %v4349 = vadd.f32 %v4260, %v4348
        %v4350 = vpop.f32.mrf.mxu0
        %v4351 = vadd.f32 %v4262, %v4350
        %4352 = vmatmul.bf16.gmra.mxu0 %v3280
        %v4353 = vpop.f32.mrf.mxu0
        %v4354 = vadd.f32 %v4265, %v4353
        %v4355 = vpop.f32.mrf.mxu0
        %v4356 = vadd.f32 %v4267, %v4355
        %4357 = vmatmul.bf16.gmra.mxu0 %v3289
        %v4358 = vpop.f32.mrf.mxu0
        %v4359 = vadd.f32 %v4270, %v4358
        %v4360 = vpop.f32.mrf.mxu0
        %v4361 = vadd.f32 %v4272, %v4360
        %4362 = vmatmul.bf16.gmra.mxu0 %v3298
        %v4363 = vpop.f32.mrf.mxu0
        %v4364 = vadd.f32 %v4275, %v4363
        %v4365 = vpop.f32.mrf.mxu0
        %v4366 = vadd.f32 %v4277, %v4365
        %4367 = vmatmul.bf16.gmra.mxu0 %v3307
        %v4368 = vpop.f32.mrf.mxu0
        %v4369 = vadd.f32 %v4280, %v4368
        %v4370 = vpop.f32.mrf.mxu0
        %v4371 = vadd.f32 %v4282, %v4370
        %4372 = vmatmul.bf16.gmra.mxu0 %v3316
        %v4373 = vpop.f32.mrf.mxu0
        %v4374 = vadd.f32 %v4285, %v4373
        %v4375 = vpop.f32.mrf.mxu0
        %v4376 = vadd.f32 %v4287, %v4375
        %4377 = vmatmul.bf16.gmra.mxu0 %v3325
        %v4378 = vpop.f32.mrf.mxu0
        %v4379 = vadd.f32 %v4290, %v4378
        %v4380 = vpop.f32.mrf.mxu0
        %v4381 = vadd.f32 %v4292, %v4380
        %4382 = vmatmul.bf16.gmra.mxu0 %v3334
        %v4383 = vpop.f32.mrf.mxu0
        %v4384 = vadd.f32 %v4295, %v4383
        %v4385 = vpop.f32.mrf.mxu0
        %v4386 = vadd.f32 %v4297, %v4385
        %4387 = vmatmul.bf16.gmra.mxu0 %v3343
        %v4388 = vpop.f32.mrf.mxu0
        %v4389 = vadd.f32 %v4300, %v4388
        %v4390 = vpop.f32.mrf.mxu0
        %v4391 = vadd.f32 %v4302, %v4390
        %4392 = vmatmul.bf16.gmra.mxu0 %v3352
        %v4393 = vpop.f32.mrf.mxu0
        %v4394 = vadd.f32 %v4305, %v4393
        %v4395 = vpop.f32.mrf.mxu0
        %v4396 = vadd.f32 %v4307, %v4395
        %4397 = vmatmul.bf16.gmra.mxu0 %v3361
        %v4398 = vpop.f32.mrf.mxu0
        %v4399 = vadd.f32 %v4310, %v4398
        %v4400 = vpop.f32.mrf.mxu0
        %v4401 = vadd.f32 %v4312, %v4400
        %4402 = vmatmul.bf16.gmra.mxu0 %v3370
        %v4403 = vpop.f32.mrf.mxu0
        %v4404 = vadd.f32 %v4315, %v4403
        %v4405 = vpop.f32.mrf.mxu0
        %v4406 = vadd.f32 %v4317, %v4405
        %4407 = vmatmul.bf16.gmra.mxu0 %v3379
        %v4408 = vpop.f32.mrf.mxu0
        %v4409 = vadd.f32 %v4320, %v4408
        %v4410 = vpop.f32.mrf.mxu0
        %v4411 = vadd.f32 %v4322, %v4410
        %4412 = vmatmul.bf16.gmra.mxu0 %v3388
        %v4413 = vpop.f32.mrf.mxu0
        %v4414 = vadd.f32 %v4325, %v4413
        %v4415 = vpop.f32.mrf.mxu0
        %v4416 = vadd.f32 %v4327, %v4415
        %4417 = vmatmul.bf16.gmra.mxu0 %v3397
        %v4418 = vpop.f32.mrf.mxu0
        %v4419 = vadd.f32 %v4330, %v4418
        %v4420 = vpop.f32.mrf.mxu0
        %v4421 = vadd.f32 %v4332, %v4420
        %4422 = vdwg.mxu0
        %4423 = vmatpush.bf16.msra.mxu0 %v3881
        %4424 = vmatpush.bf16.msra.mxu0 %v3880
        %4425 = vmatpush.bf16.msra.mxu0 %v3879
        %4426 = vmatpush.bf16.msra.mxu0 %v3878
        %4427 = vmatpush.bf16.msra.mxu0 %v3877
        %4428 = vmatpush.bf16.msra.mxu0 %v3876
        %4429 = vmatpush.bf16.msra.mxu0 %v3875
        %4430 = vmatpush.bf16.msra.mxu0 %v3874
        %4431 = vmatmul.bf16.gmra.mxu0 %v3263
        %v4432 = vpop.f32.mrf.mxu0
        %v4433 = vadd.f32 %v4344, %v4432
        %v4434 = vpop.f32.mrf.mxu0
        %v4435 = vadd.f32 %v4346, %v4434
        %4436 = vmatmul.bf16.gmra.mxu0 %v3272
        %v4437 = vpop.f32.mrf.mxu0
        %v4438 = vadd.f32 %v4349, %v4437
        %v4439 = vpop.f32.mrf.mxu0
        %v4440 = vadd.f32 %v4351, %v4439
        %4441 = vmatmul.bf16.gmra.mxu0 %v3281
        %v4442 = vpop.f32.mrf.mxu0
        %v4443 = vadd.f32 %v4354, %v4442
        %v4444 = vpop.f32.mrf.mxu0
        %v4445 = vadd.f32 %v4356, %v4444
        %4446 = vmatmul.bf16.gmra.mxu0 %v3290
        %v4447 = vpop.f32.mrf.mxu0
        %v4448 = vadd.f32 %v4359, %v4447
        %v4449 = vpop.f32.mrf.mxu0
        %v4450 = vadd.f32 %v4361, %v4449
        %4451 = vmatmul.bf16.gmra.mxu0 %v3299
        %v4452 = vpop.f32.mrf.mxu0
        %v4453 = vadd.f32 %v4364, %v4452
        %v4454 = vpop.f32.mrf.mxu0
        %v4455 = vadd.f32 %v4366, %v4454
        %4456 = vmatmul.bf16.gmra.mxu0 %v3308
        %v4457 = vpop.f32.mrf.mxu0
        %v4458 = vadd.f32 %v4369, %v4457
        %v4459 = vpop.f32.mrf.mxu0
        %v4460 = vadd.f32 %v4371, %v4459
        %4461 = vmatmul.bf16.gmra.mxu0 %v3317
        %v4462 = vpop.f32.mrf.mxu0
        %v4463 = vadd.f32 %v4374, %v4462
        %v4464 = vpop.f32.mrf.mxu0
        %v4465 = vadd.f32 %v4376, %v4464
        %4466 = vmatmul.bf16.gmra.mxu0 %v3326
        %v4467 = vpop.f32.mrf.mxu0
        %v4468 = vadd.f32 %v4379, %v4467
        %v4469 = vpop.f32.mrf.mxu0
        %v4470 = vadd.f32 %v4381, %v4469
        %4471 = vmatmul.bf16.gmra.mxu0 %v3335
        %v4472 = vpop.f32.mrf.mxu0
        %v4473 = vadd.f32 %v4384, %v4472
        %v4474 = vpop.f32.mrf.mxu0
        %v4475 = vadd.f32 %v4386, %v4474
        %4476 = vmatmul.bf16.gmra.mxu0 %v3344
        %v4477 = vpop.f32.mrf.mxu0
        %v4478 = vadd.f32 %v4389, %v4477
        %v4479 = vpop.f32.mrf.mxu0
        %v4480 = vadd.f32 %v4391, %v4479
        %4481 = vmatmul.bf16.gmra.mxu0 %v3353
        %v4482 = vpop.f32.mrf.mxu0
        %v4483 = vadd.f32 %v4394, %v4482
        %v4484 = vpop.f32.mrf.mxu0
        %v4485 = vadd.f32 %v4396, %v4484
        %4486 = vmatmul.bf16.gmra.mxu0 %v3362
        %v4487 = vpop.f32.mrf.mxu0
        %v4488 = vadd.f32 %v4399, %v4487
        %v4489 = vpop.f32.mrf.mxu0
        %v4490 = vadd.f32 %v4401, %v4489
        %4491 = vmatmul.bf16.gmra.mxu0 %v3371
        %v4492 = vpop.f32.mrf.mxu0
        %v4493 = vadd.f32 %v4404, %v4492
        %v4494 = vpop.f32.mrf.mxu0
        %v4495 = vadd.f32 %v4406, %v4494
        %4496 = vmatmul.bf16.gmra.mxu0 %v3380
        %v4497 = vpop.f32.mrf.mxu0
        %v4498 = vadd.f32 %v4409, %v4497
        %v4499 = vpop.f32.mrf.mxu0
        %v4500 = vadd.f32 %v4411, %v4499
        %4501 = vmatmul.bf16.gmra.mxu0 %v3389
        %v4502 = vpop.f32.mrf.mxu0
        %v4503 = vadd.f32 %v4414, %v4502
        %v4504 = vpop.f32.mrf.mxu0
        %v4505 = vadd.f32 %v4416, %v4504
        %4506 = vmatmul.bf16.gmra.mxu0 %v3398
        %v4507 = vpop.f32.mrf.mxu0
        %v4508 = vadd.f32 %v4419, %v4507
        %v4509 = vpop.f32.mrf.mxu0
        %v4510 = vadd.f32 %v4421, %v4509
        %4511 = vdwg.mxu0
        %4512 = vmatpush.bf16.msra.mxu0 %v3889
        %4513 = vmatpush.bf16.msra.mxu0 %v3888
        %4514 = vmatpush.bf16.msra.mxu0 %v3887
        %4515 = vmatpush.bf16.msra.mxu0 %v3886
        %4516 = vmatpush.bf16.msra.mxu0 %v3885
        %4517 = vmatpush.bf16.msra.mxu0 %v3884
        %4518 = vmatpush.bf16.msra.mxu0 %v3883
        %4519 = vmatpush.bf16.msra.mxu0 %v3882
        %4520 = vmatmul.bf16.gmra.mxu0 %v3264
        %v4521 = vpop.f32.mrf.mxu0
        %v4522 = vadd.f32 %v4433, %v4521
        %v4523 = vpop.f32.mrf.mxu0
        %v4524 = vadd.f32 %v4435, %v4523
        %4525 = vmatmul.bf16.gmra.mxu0 %v3273
        %v4526 = vpop.f32.mrf.mxu0
        %v4527 = vadd.f32 %v4438, %v4526
        %v4528 = vpop.f32.mrf.mxu0
        %v4529 = vadd.f32 %v4440, %v4528
        %4530 = vmatmul.bf16.gmra.mxu0 %v3282
        %v4531 = vpop.f32.mrf.mxu0
        %v4532 = vadd.f32 %v4443, %v4531
        %v4533 = vpop.f32.mrf.mxu0
        %v4534 = vadd.f32 %v4445, %v4533
        %4535 = vmatmul.bf16.gmra.mxu0 %v3291
        %v4536 = vpop.f32.mrf.mxu0
        %v4537 = vadd.f32 %v4448, %v4536
        %v4538 = vpop.f32.mrf.mxu0
        %v4539 = vadd.f32 %v4450, %v4538
        %4540 = vmatmul.bf16.gmra.mxu0 %v3300
        %v4541 = vpop.f32.mrf.mxu0
        %v4542 = vadd.f32 %v4453, %v4541
        %v4543 = vpop.f32.mrf.mxu0
        %v4544 = vadd.f32 %v4455, %v4543
        %4545 = vmatmul.bf16.gmra.mxu0 %v3309
        %v4546 = vpop.f32.mrf.mxu0
        %v4547 = vadd.f32 %v4458, %v4546
        %v4548 = vpop.f32.mrf.mxu0
        %v4549 = vadd.f32 %v4460, %v4548
        %4550 = vmatmul.bf16.gmra.mxu0 %v3318
        %v4551 = vpop.f32.mrf.mxu0
        %v4552 = vadd.f32 %v4463, %v4551
        %v4553 = vpop.f32.mrf.mxu0
        %v4554 = vadd.f32 %v4465, %v4553
        %4555 = vmatmul.bf16.gmra.mxu0 %v3327
        %v4556 = vpop.f32.mrf.mxu0
        %v4557 = vadd.f32 %v4468, %v4556
        %v4558 = vpop.f32.mrf.mxu0
        %v4559 = vadd.f32 %v4470, %v4558
        %4560 = vmatmul.bf16.gmra.mxu0 %v3336
        %v4561 = vpop.f32.mrf.mxu0
        %v4562 = vadd.f32 %v4473, %v4561
        %v4563 = vpop.f32.mrf.mxu0
        %v4564 = vadd.f32 %v4475, %v4563
        %4565 = vmatmul.bf16.gmra.mxu0 %v3345
        %v4566 = vpop.f32.mrf.mxu0
        %v4567 = vadd.f32 %v4478, %v4566
        %v4568 = vpop.f32.mrf.mxu0
        %v4569 = vadd.f32 %v4480, %v4568
        %4570 = vmatmul.bf16.gmra.mxu0 %v3354
        %v4571 = vpop.f32.mrf.mxu0
        %v4572 = vadd.f32 %v4483, %v4571
        %v4573 = vpop.f32.mrf.mxu0
        %v4574 = vadd.f32 %v4485, %v4573
        %4575 = vmatmul.bf16.gmra.mxu0 %v3363
        %v4576 = vpop.f32.mrf.mxu0
        %v4577 = vadd.f32 %v4488, %v4576
        %v4578 = vpop.f32.mrf.mxu0
        %v4579 = vadd.f32 %v4490, %v4578
        %4580 = vmatmul.bf16.gmra.mxu0 %v3372
        %v4581 = vpop.f32.mrf.mxu0
        %v4582 = vadd.f32 %v4493, %v4581
        %v4583 = vpop.f32.mrf.mxu0
        %v4584 = vadd.f32 %v4495, %v4583
        %4585 = vmatmul.bf16.gmra.mxu0 %v3381
        %v4586 = vpop.f32.mrf.mxu0
        %v4587 = vadd.f32 %v4498, %v4586
        %v4588 = vpop.f32.mrf.mxu0
        %v4589 = vadd.f32 %v4500, %v4588
        %4590 = vmatmul.bf16.gmra.mxu0 %v3390
        %v4591 = vpop.f32.mrf.mxu0
        %v4592 = vadd.f32 %v4503, %v4591
        %v4593 = vpop.f32.mrf.mxu0
        %v4594 = vadd.f32 %v4505, %v4593
        %4595 = vmatmul.bf16.gmra.mxu0 %v3399
        %v4596 = vpop.f32.mrf.mxu0
        %v4597 = vadd.f32 %v4508, %v4596
        %v4598 = vpop.f32.mrf.mxu0
        %v4599 = vadd.f32 %v4510, %v4598
        %4600 = vdwg.mxu0
        %4601 = vmatpush.bf16.msra.mxu0 %v3897
        %4602 = vmatpush.bf16.msra.mxu0 %v3896
        %4603 = vmatpush.bf16.msra.mxu0 %v3895
        %4604 = vmatpush.bf16.msra.mxu0 %v3894
        %4605 = vmatpush.bf16.msra.mxu0 %v3893
        %4606 = vmatpush.bf16.msra.mxu0 %v3892
        %4607 = vmatpush.bf16.msra.mxu0 %v3891
        %4608 = vmatpush.bf16.msra.mxu0 %v3890
        %4609 = vmatmul.bf16.gmra.mxu0 %v3265
        %v4610 = vpop.f32.mrf.mxu0
        %v4611 = vadd.f32 %v4522, %v4610
        %v4612 = vpop.f32.mrf.mxu0
        %v4613 = vadd.f32 %v4524, %v4612
        %4614 = vmatmul.bf16.gmra.mxu0 %v3274
        %v4615 = vpop.f32.mrf.mxu0
        %v4616 = vadd.f32 %v4527, %v4615
        %v4617 = vpop.f32.mrf.mxu0
        %v4618 = vadd.f32 %v4529, %v4617
        %4619 = vmatmul.bf16.gmra.mxu0 %v3283
        %v4620 = vpop.f32.mrf.mxu0
        %v4621 = vadd.f32 %v4532, %v4620
        %v4622 = vpop.f32.mrf.mxu0
        %v4623 = vadd.f32 %v4534, %v4622
        %4624 = vmatmul.bf16.gmra.mxu0 %v3292
        %v4625 = vpop.f32.mrf.mxu0
        %v4626 = vadd.f32 %v4537, %v4625
        %v4627 = vpop.f32.mrf.mxu0
        %v4628 = vadd.f32 %v4539, %v4627
        %4629 = vmatmul.bf16.gmra.mxu0 %v3301
        %v4630 = vpop.f32.mrf.mxu0
        %v4631 = vadd.f32 %v4542, %v4630
        %v4632 = vpop.f32.mrf.mxu0
        %v4633 = vadd.f32 %v4544, %v4632
        %4634 = vmatmul.bf16.gmra.mxu0 %v3310
        %v4635 = vpop.f32.mrf.mxu0
        %v4636 = vadd.f32 %v4547, %v4635
        %v4637 = vpop.f32.mrf.mxu0
        %v4638 = vadd.f32 %v4549, %v4637
        %4639 = vmatmul.bf16.gmra.mxu0 %v3319
        %v4640 = vpop.f32.mrf.mxu0
        %v4641 = vadd.f32 %v4552, %v4640
        %v4642 = vpop.f32.mrf.mxu0
        %v4643 = vadd.f32 %v4554, %v4642
        %4644 = vmatmul.bf16.gmra.mxu0 %v3328
        %v4645 = vpop.f32.mrf.mxu0
        %v4646 = vadd.f32 %v4557, %v4645
        %v4647 = vpop.f32.mrf.mxu0
        %v4648 = vadd.f32 %v4559, %v4647
        %4649 = vmatmul.bf16.gmra.mxu0 %v3337
        %v4650 = vpop.f32.mrf.mxu0
        %v4651 = vadd.f32 %v4562, %v4650
        %v4652 = vpop.f32.mrf.mxu0
        %v4653 = vadd.f32 %v4564, %v4652
        %4654 = vmatmul.bf16.gmra.mxu0 %v3346
        %v4655 = vpop.f32.mrf.mxu0
        %v4656 = vadd.f32 %v4567, %v4655
        %v4657 = vpop.f32.mrf.mxu0
        %v4658 = vadd.f32 %v4569, %v4657
        %4659 = vmatmul.bf16.gmra.mxu0 %v3355
        %v4660 = vpop.f32.mrf.mxu0
        %v4661 = vadd.f32 %v4572, %v4660
        %v4662 = vpop.f32.mrf.mxu0
        %v4663 = vadd.f32 %v4574, %v4662
        %4664 = vmatmul.bf16.gmra.mxu0 %v3364
        %v4665 = vpop.f32.mrf.mxu0
        %v4666 = vadd.f32 %v4577, %v4665
        %v4667 = vpop.f32.mrf.mxu0
        %v4668 = vadd.f32 %v4579, %v4667
        %4669 = vmatmul.bf16.gmra.mxu0 %v3373
        %v4670 = vpop.f32.mrf.mxu0
        %v4671 = vadd.f32 %v4582, %v4670
        %v4672 = vpop.f32.mrf.mxu0
        %v4673 = vadd.f32 %v4584, %v4672
        %4674 = vmatmul.bf16.gmra.mxu0 %v3382
        %v4675 = vpop.f32.mrf.mxu0
        %v4676 = vadd.f32 %v4587, %v4675
        %v4677 = vpop.f32.mrf.mxu0
        %v4678 = vadd.f32 %v4589, %v4677
        %4679 = vmatmul.bf16.gmra.mxu0 %v3391
        %v4680 = vpop.f32.mrf.mxu0
        %v4681 = vadd.f32 %v4592, %v4680
        %v4682 = vpop.f32.mrf.mxu0
        %v4683 = vadd.f32 %v4594, %v4682
        %4684 = vmatmul.bf16.gmra.mxu0 %v3400
        %v4685 = vpop.f32.mrf.mxu0
        %v4686 = vadd.f32 %v4597, %v4685
        %v4687 = vpop.f32.mrf.mxu0
        %v4688 = vadd.f32 %v4599, %v4687
        %4689 = vdwg.mxu0
        %4690 = vmatpush.bf16.msra.mxu0 %v3905
        %4691 = vmatpush.bf16.msra.mxu0 %v3904
        %4692 = vmatpush.bf16.msra.mxu0 %v3903
        %4693 = vmatpush.bf16.msra.mxu0 %v3902
        %4694 = vmatpush.bf16.msra.mxu0 %v3901
        %4695 = vmatpush.bf16.msra.mxu0 %v3900
        %4696 = vmatpush.bf16.msra.mxu0 %v3899
        %4697 = vmatpush.bf16.msra.mxu0 %v3898
        %4698 = vmatmul.bf16.gmra.mxu0 %v3266
        %v4699 = vpop.f32.mrf.mxu0
        %v4700 = vadd.f32 %v4611, %v4699
        %v4701 = vpop.f32.mrf.mxu0
        %v4702 = vadd.f32 %v4613, %v4701
        %4703 = vmatmul.bf16.gmra.mxu0 %v3275
        %v4704 = vpop.f32.mrf.mxu0
        %v4705 = vadd.f32 %v4616, %v4704
        %v4706 = vpop.f32.mrf.mxu0
        %v4707 = vadd.f32 %v4618, %v4706
        %4708 = vmatmul.bf16.gmra.mxu0 %v3284
        %v4709 = vpop.f32.mrf.mxu0
        %v4710 = vadd.f32 %v4621, %v4709
        %v4711 = vpop.f32.mrf.mxu0
        %v4712 = vadd.f32 %v4623, %v4711
        %4713 = vmatmul.bf16.gmra.mxu0 %v3293
        %v4714 = vpop.f32.mrf.mxu0
        %v4715 = vadd.f32 %v4626, %v4714
        %v4716 = vpop.f32.mrf.mxu0
        %v4717 = vadd.f32 %v4628, %v4716
        %4718 = vmatmul.bf16.gmra.mxu0 %v3302
        %v4719 = vpop.f32.mrf.mxu0
        %v4720 = vadd.f32 %v4631, %v4719
        %v4721 = vpop.f32.mrf.mxu0
        %v4722 = vadd.f32 %v4633, %v4721
        %4723 = vmatmul.bf16.gmra.mxu0 %v3311
        %v4724 = vpop.f32.mrf.mxu0
        %v4725 = vadd.f32 %v4636, %v4724
        %v4726 = vpop.f32.mrf.mxu0
        %v4727 = vadd.f32 %v4638, %v4726
        %4728 = vmatmul.bf16.gmra.mxu0 %v3320
        %v4729 = vpop.f32.mrf.mxu0
        %v4730 = vadd.f32 %v4641, %v4729
        %v4731 = vpop.f32.mrf.mxu0
        %v4732 = vadd.f32 %v4643, %v4731
        %4733 = vmatmul.bf16.gmra.mxu0 %v3329
        %v4734 = vpop.f32.mrf.mxu0
        %v4735 = vadd.f32 %v4646, %v4734
        %v4736 = vpop.f32.mrf.mxu0
        %v4737 = vadd.f32 %v4648, %v4736
        %4738 = vmatmul.bf16.gmra.mxu0 %v3338
        %v4739 = vpop.f32.mrf.mxu0
        %v4740 = vadd.f32 %v4651, %v4739
        %v4741 = vpop.f32.mrf.mxu0
        %v4742 = vadd.f32 %v4653, %v4741
        %4743 = vmatmul.bf16.gmra.mxu0 %v3347
        %v4744 = vpop.f32.mrf.mxu0
        %v4745 = vadd.f32 %v4656, %v4744
        %v4746 = vpop.f32.mrf.mxu0
        %v4747 = vadd.f32 %v4658, %v4746
        %4748 = vmatmul.bf16.gmra.mxu0 %v3356
        %v4749 = vpop.f32.mrf.mxu0
        %v4750 = vadd.f32 %v4661, %v4749
        %v4751 = vpop.f32.mrf.mxu0
        %v4752 = vadd.f32 %v4663, %v4751
        %4753 = vmatmul.bf16.gmra.mxu0 %v3365
        %v4754 = vpop.f32.mrf.mxu0
        %v4755 = vadd.f32 %v4666, %v4754
        %v4756 = vpop.f32.mrf.mxu0
        %v4757 = vadd.f32 %v4668, %v4756
        %4758 = vmatmul.bf16.gmra.mxu0 %v3374
        %v4759 = vpop.f32.mrf.mxu0
        %v4760 = vadd.f32 %v4671, %v4759
        %v4761 = vpop.f32.mrf.mxu0
        %v4762 = vadd.f32 %v4673, %v4761
        %4763 = vmatmul.bf16.gmra.mxu0 %v3383
        %v4764 = vpop.f32.mrf.mxu0
        %v4765 = vadd.f32 %v4676, %v4764
        %v4766 = vpop.f32.mrf.mxu0
        %v4767 = vadd.f32 %v4678, %v4766
        %4768 = vmatmul.bf16.gmra.mxu0 %v3392
        %v4769 = vpop.f32.mrf.mxu0
        %v4770 = vadd.f32 %v4681, %v4769
        %v4771 = vpop.f32.mrf.mxu0
        %v4772 = vadd.f32 %v4683, %v4771
        %4773 = vmatmul.bf16.gmra.mxu0 %v3401
        %v4774 = vpop.f32.mrf.mxu0
        %v4775 = vadd.f32 %v4686, %v4774
        %v4776 = vpop.f32.mrf.mxu0
        %v4777 = vadd.f32 %v4688, %v4776
        %4778 = vdwg.mxu0
        %v4779 = vmax.f32 %v4700, 0.0
        %v4780 = vmax.f32 %v4702, 0.0
        %v4781 = vmax.f32 %v4705, 0.0
        %v4782 = vmax.f32 %v4707, 0.0
        %v4783 = vmax.f32 %v4710, 0.0
        %v4784 = vmax.f32 %v4712, 0.0
        %v4785 = vmax.f32 %v4715, 0.0
        %v4786 = vmax.f32 %v4717, 0.0
        %v4787 = vmax.f32 %v4720, 0.0
        %v4788 = vmax.f32 %v4722, 0.0
        %v4789 = vmax.f32 %v4725, 0.0
        %v4790 = vmax.f32 %v4727, 0.0
        %v4791 = vmax.f32 %v4730, 0.0
        %v4792 = vmax.f32 %v4732, 0.0
        %v4793 = vmax.f32 %v4735, 0.0
        %v4794 = vmax.f32 %v4737, 0.0
        %v4795 = vmax.f32 %v4740, 0.0
        %v4796 = vmax.f32 %v4742, 0.0
        %v4797 = vmax.f32 %v4745, 0.0
        %v4798 = vmax.f32 %v4747, 0.0
        %v4799 = vmax.f32 %v4750, 0.0
        %v4800 = vmax.f32 %v4752, 0.0
        %v4801 = vmax.f32 %v4755, 0.0
        %v4802 = vmax.f32 %v4757, 0.0
        %v4803 = vmax.f32 %v4760, 0.0
        %v4804 = vmax.f32 %v4762, 0.0
        %v4805 = vmax.f32 %v4765, 0.0
        %v4806 = vmax.f32 %v4767, 0.0
        %v4807 = vmax.f32 %v4770, 0.0
        %v4808 = vmax.f32 %v4772, 0.0
        %v4809 = vmax.f32 %v4775, 0.0
        %v4810 = vmax.f32 %v4777, 0.0
        %v4811 = vpack.c.bf16 %v4779, %v4779
        %v4812 = vpack.c.bf16 %v4780, %v4780
        %v4813 = vpack.c.bf16 %v4781, %v4781
        %v4814 = vpack.c.bf16 %v4782, %v4782
        %v4815 = vpack.c.bf16 %v4783, %v4783
        %v4816 = vpack.c.bf16 %v4784, %v4784
        %v4817 = vpack.c.bf16 %v4785, %v4785
        %v4818 = vpack.c.bf16 %v4786, %v4786
        %v4819 = vpack.c.bf16 %v4787, %v4787
        %v4820 = vpack.c.bf16 %v4788, %v4788
        %v4821 = vpack.c.bf16 %v4789, %v4789
        %v4822 = vpack.c.bf16 %v4790, %v4790
        %v4823 = vpack.c.bf16 %v4791, %v4791
        %v4824 = vpack.c.bf16 %v4792, %v4792
        %v4825 = vpack.c.bf16 %v4793, %v4793
        %v4826 = vpack.c.bf16 %v4794, %v4794
        %v4827 = vpack.c.bf16 %v4795, %v4795
        %v4828 = vpack.c.bf16 %v4796, %v4796
        %v4829 = vpack.c.bf16 %v4797, %v4797
        %v4830 = vpack.c.bf16 %v4798, %v4798
        %v4831 = vpack.c.bf16 %v4799, %v4799
        %v4832 = vpack.c.bf16 %v4800, %v4800
        %v4833 = vpack.c.bf16 %v4801, %v4801
        %v4834 = vpack.c.bf16 %v4802, %v4802
        %v4835 = vpack.c.bf16 %v4803, %v4803
        %v4836 = vpack.c.bf16 %v4804, %v4804
        %v4837 = vpack.c.bf16 %v4805, %v4805
        %v4838 = vpack.c.bf16 %v4806, %v4806
        %v4839 = vpack.c.bf16 %v4807, %v4807
        %v4840 = vpack.c.bf16 %v4808, %v4808
        %v4841 = vpack.c.bf16 %v4809, %v4809
        %v4842 = vpack.c.bf16 %v4810, %v4810
        %4843 = vst [vmem:[%s210] sm:$0xf] %v4811
        %4844 = vst [vmem:[%s210 + $0x4] sm:$0xf] %v4812
        %4845 = vst [vmem:[%s210 + $0x8] sm:$0xf] %v4813
        %4846 = vst [vmem:[%s210 + $0xc] sm:$0xf] %v4814
        %4847 = vst [vmem:[%s210 + $0x10] sm:$0xf] %v4815
        %4848 = vst [vmem:[%s210 + $0x14] sm:$0xf] %v4816
        %4849 = vst [vmem:[%s210 + $0x18] sm:$0xf] %v4817
        %4850 = vst [vmem:[%s210 + $0x1c] sm:$0xf] %v4818
        %4851 = vst [vmem:[%s210 + $0x20] sm:$0xf] %v4819
        %4852 = vst [vmem:[%s210 + $0x24] sm:$0xf] %v4820
        %4853 = vst [vmem:[%s210 + $0x28] sm:$0xf] %v4821
        %4854 = vst [vmem:[%s210 + $0x2c] sm:$0xf] %v4822
        %4855 = vst [vmem:[%s210 + $0x30] sm:$0xf] %v4823
        %4856 = vst [vmem:[%s210 + $0x34] sm:$0xf] %v4824
        %4857 = vst [vmem:[%s210 + $0x38] sm:$0xf] %v4825
        %4858 = vst [vmem:[%s210 + $0x3c] sm:$0xf] %v4826
        %4859 = vst [vmem:[%s210 + $0x40] sm:$0xf] %v4827
        %4860 = vst [vmem:[%s210 + $0x44] sm:$0xf] %v4828
        %4861 = vst [vmem:[%s210 + $0x48] sm:$0xf] %v4829
        %4862 = vst [vmem:[%s210 + $0x4c] sm:$0xf] %v4830
        %4863 = vst [vmem:[%s210 + $0x50] sm:$0xf] %v4831
        %4864 = vst [vmem:[%s210 + $0x54] sm:$0xf] %v4832
        %4865 = vst [vmem:[%s210 + $0x58] sm:$0xf] %v4833
        %4866 = vst [vmem:[%s210 + $0x5c] sm:$0xf] %v4834
        %4867 = vst [vmem:[%s210 + $0x60] sm:$0xf] %v4835
        %4868 = vst [vmem:[%s210 + $0x64] sm:$0xf] %v4836
        %4869 = vst [vmem:[%s210 + $0x68] sm:$0xf] %v4837
        %4870 = vst [vmem:[%s210 + $0x6c] sm:$0xf] %v4838
        %4871 = vst [vmem:[%s210 + $0x70] sm:$0xf] %v4839
        %4872 = vst [vmem:[%s210 + $0x74] sm:$0xf] %v4840
        %4873 = vst [vmem:[%s210 + $0x78] sm:$0xf] %v4841
        %4874 = vst [vmem:[%s210 + $0x7c] sm:$0xf] %v4842
        %s4875 = sand.u32 %s126, 1
        %s4876 = scalar_lea.sflag [#allocation4], %s4875
        %s4877 = sand.u32 %s126, 1
        %s4878 = smul.addr %s4877, 128
        %s4879 = scalar_lea.vmem [#allocation3], %s4878
        // Predicated region
        $region37: #{tpu_custom_call.1} parent=31 // pred_check
          %p4880 = pneg %p136
        $region38: #{tpu_custom_call.1} parent=31 // pred_check_branch
          %4882 = sbr.rel (%p4880) target = $region40
        $region39: #{tpu_custom_call.1} parent=31 // pred_region
          %s4883 = smul.u32 32, %s23
          %4885 = vsyncadd %s4876, 0
          %s4886 = sadd.s32 %s24, %s4883
          %s4887 = smul.addr %s22, 32
          %s4888 = sadd.s32 %s4886, %s4887
          %s4889 = smul.addr %s4888, 4
          %s4890 = scalar_lea.hbm %s3, %s4889
          %s4891 = sshll.u32 %s4879, 4
          %s4892 = int_to_ptr.vmem [resolvable:$true] %s4891
          %s4893 = sshll.u32 %s4890, 4
          %s4894 = int_to_ptr.hbm [resolvable:$true] %s4893
          %4899 = dma.vmem_to_hbm [thread:$0]  %s4892, 2048, %s4894, %s4876, 64, 64, 4
        $region40: #{tpu_custom_call.1} parent=31 // pred_fallthru
          _
      $region32: #{tpu_custom_call.1} parent=5 // pred_fallthru
        _
      %p4900 = scmp.le.s32.totalorder 2, %s12
      // Predicated region
      $region41: #{tpu_custom_call.1} parent=5 // pred_check
        %p4901 = pneg %p4900
      $region42: #{tpu_custom_call.1} parent=5 // pred_check_branch
        %4903 = sbr.rel (%p4901) target = $region44
      $region43: #{tpu_custom_call.1} parent=5 // pred_region
        %s4904 = ssub.s32 %s12, 2
        // Predicated region
        $region45: #{tpu_custom_call.1} parent=43 // pred_check
          %p4905 = pneg %p142
        $region46: #{tpu_custom_call.1} parent=43 // pred_check_branch
          %4907 = sbr.rel (%p4905) target = $region48
        $region47: #{tpu_custom_call.1} parent=43 // pred_region
          %s4908 = sand.u32 %s127, 1
          %s4909 = scalar_lea.sflag [#allocation4], %s4908
          %s4910 = sand.u32 %s127, 1
          %s4911 = smul.addr %s4910, 128
          %s4912 = scalar_lea.vmem [#allocation3], %s4911
          %4914 = dma.done %s4909, 2048
        $region48: #{tpu_custom_call.1} parent=43 // pred_fallthru
          _
      $region44: #{tpu_custom_call.1} parent=5 // pred_fallthru
        _
    $region6: #{tpu_custom_call.1} parent=1 // loop_footer
      %s16 = sadd.s32 1, %s12
    $region7: #{tpu_custom_call.1} parent=1 // loop_footer_branch
      %11 = sbr.rel target = $region3
    $region8: #{tpu_custom_call.1} parent=1 // loop_exit
      _
    %4915 = vsyncpa [#allocation4], 1
    %s4916 = scalar_lea.sflag [#allocation4], 1
    %4917 = vsyncpa %s4916, 1

</llo_original>
